<compile_context>
chip_gen: v7x
topology: tpu7x:2x2x1
jax: 0.10.0
libtpu: 0.0.40
codegen_flags: <defaults>
</compile_context>

<pallas_src>
import numpy as np
import jax
import jax.numpy as jnp
from jax.experimental import pallas as pl
from jax.experimental.pallas import tpu as pltpu


def adaptive_groups(channels: int) -> int:
    # assumption: largest divisor of `channels` that is <= 32 (GroupNorm-friendly).
    g = min(32, channels)
    while channels % g != 0:
        g -= 1
    return g


def group_onehot(C: int, G: int) -> np.ndarray:
    """(C, G) one-hot group-membership matrix (row c has a 1 in column c // (C//G))."""
    cg = C // G
    m = np.zeros((C, G), np.float32)
    m[np.arange(C), np.arange(C) // cg] = 1.0
    return m


def avg_pool_ceil(x_nhwc, s):
    """AvgPool2d(s, s, ceil_mode=True, count_include_pad=False) in NHWC (plain-JAX glue)."""
    if s == 1:
        return x_nhwc
    # TODO(synk): stride>1 shortcut average-pooling runs in plain JAX glue before the Pallas
    # kernel; the demo below uses stride=1.
    N, H, W, C = x_nhwc.shape
    Ho, Wo = -(-H // s), -(-W // s)
    pad = ((0, 0), (0, Ho * s - H), (0, Wo * s - W), (0, 0))
    xs = jnp.pad(x_nhwc, pad)
    ones = jnp.pad(jnp.ones((1, H, W, 1), x_nhwc.dtype), pad)
    sums = jax.lax.reduce_window(xs, 0.0, jax.lax.add, (1, s, s, 1), (1, s, s, 1), "VALID")
    cnts = jax.lax.reduce_window(ones, 0.0, jax.lax.add, (1, s, s, 1), (1, s, s, 1), "VALID")
    return sums / cnts


def bottleneck_block(x_nchw, params, *, stride=1, dilation=1):
    """Forward pass of BottleneckBlock. x_nchw: (N, Cin, H, W) f32 -> (N, 4*planes, Ho, Wo)."""
    x = jnp.transpose(x_nchw, (0, 2, 3, 1)).astype(jnp.float32)  # NCHW -> NHWC (glue)
    N, H, W, Cin = x.shape
    P = params["w1"].shape[1]
    Cex = params["w3"].shape[1]
    has_ds = (stride != 1) or (Cin != Cex)
    d, s = int(dilation), int(stride)
    Ho = (H - 1) // s + 1
    Wo = (W - 1) // s + 1

    G1 = adaptive_groups(Cin)
    G2 = adaptive_groups(P)
    Gd = adaptive_groups(Cex)
    # (C, G) one-hot + (G, C) broadcast pairs replace the old dense (C, C) group matrices:
    # group_sum(row) = (row @ oh) @ ohT -- identical result, KiB instead of MiB at Cex=2048.
    oh1 = jnp.asarray(group_onehot(Cin, G1)); oh1t = jnp.asarray(group_onehot(Cin, G1).T)
    oh2 = jnp.asarray(group_onehot(P, G2));   oh2t = jnp.asarray(group_onehot(P, G2).T)
    ohd = jnp.asarray(group_onehot(Cex, Gd)); ohdt = jnp.asarray(group_onehot(Cex, Gd).T)

    # A separate shortcut input block is only needed when the shortcut sees different pixels
    # than x itself, i.e. when stride > 1 (avg-pooled). Otherwise the already-loaded x block
    # is reused instead of DMA-ing the identical (1, H, W, Cin) tile twice per grid step.
    need_sc_input = has_ds and (s != 1)
    if need_sc_input:
        sc_in = avg_pool_ceil(x, s)                        # (N, Ho, Wo, Cin)

    eps = 1e-5
    bf16 = jnp.bfloat16

    # bf16 conv weights for the MXU; GroupNorm params / one-hot matrices stay f32.
    w1b = params["w1"].astype(bf16)                        # (Cin, P)
    w2col = params["w2"].reshape(9 * P, P).astype(bf16)    # (3,3,P,P) HWIO -> (9P, P)
    w3b = params["w3"].astype(bf16)                        # (P, Cex)
    if has_ds:
        wdb = params["wd"].astype(bf16)                    # (Cin, Cex)

    def gn(xf, oh, oht, gamma, beta, cg):
        """Two-pass GroupNorm on an (S, C) matrix for one sample.

        Column (sublane) reductions give per-channel sums; two skinny dots with the (C, G)
        one-hot and its (G, C) transpose broadcast the per-group totals back to channels.
        """
        S = xf.shape[0]
        inv_cnt = 1.0 / float(S * cg)
        sum_c = jnp.sum(xf, axis=0, keepdims=True)                               # (1, C)
        mean_c = jnp.dot(jnp.dot(sum_c, oh, preferred_element_type=jnp.float32),
                         oht, preferred_element_type=jnp.float32) * inv_cnt      # (1, C)
        xc = xf - mean_c
        ss_c = jnp.sum(xc * xc, axis=0, keepdims=True)                           # (1, C)
        var_c = jnp.dot(jnp.dot(ss_c, oh, preferred_element_type=jnp.float32),
                        oht, preferred_element_type=jnp.float32) * inv_cnt       # (1, C)
        scale = jax.lax.rsqrt(var_c + eps) * gamma                               # (1, C)
        return xc * scale + beta

    def kernel(*refs):
        it = iter(refs)
        x_ref = next(it)
        sc_ref = next(it) if need_sc_input else None
        g1w, g1b, oh1r, oh1tr, w1r = (next(it) for _ in range(5))
        g2w, g2b, oh2r, oh2tr, w2r = (next(it) for _ in range(5))
        g3w, g3b, w3r = (next(it) for _ in range(3))
        if has_ds:
            wdr, gdw, gdb, ohdr, ohdtr = (next(it) for _ in range(5))
        out_ref = next(it)
        pad_scr = next(it)

        xf = x_ref[0].reshape(H * W, Cin)

        # GN1 -> ReLU -> conv1x1 (bf16 operands, f32 MXU accumulation)
        h = jnp.maximum(gn(xf, oh1r[...], oh1tr[...], g1w[...], g1b[...], Cin // G1), 0.0)
        h = jnp.dot(h.astype(bf16), w1r[...], preferred_element_type=jnp.float32)    # (H*W, P)

        # GN2 -> ReLU
        h = jnp.maximum(gn(h, oh2r[...], oh2tr[...], g2w[...], g2b[...], P // G2), 0.0)

        # conv3x3 (padding = dilation) as a single bf16 im2col matmul. Only the thin border
        # strips of the (bf16) padded scratch are cleared each step; the interior is always
        # fully overwritten just below.
        pad_scr[0:d, :, :] = jnp.zeros((d, W + 2 * d, P), bf16)
        pad_scr[d + H:2 * d + H, :, :] = jnp.zeros((d, W + 2 * d, P), bf16)
        pad_scr[d:d + H, 0:d, :] = jnp.zeros((H, d, P), bf16)
        pad_scr[d:d + H, d + W:2 * d + W, :] = jnp.zeros((H, d, P), bf16)
        pad_scr[d:d + H, d:d + W, :] = h.astype(bf16).reshape(H, W, P)
        padv = pad_scr[...]                                                           # bf16

        patches = []
        for ky in range(3):
            for kx in range(3):
                if s == 1:
                    patch = padv[ky * d:ky * d + H, kx * d:kx * d + W, :]
                else:
                    # TODO(synk): strided in-kernel slice only exercised with stride=1 here;
                    # verify Mosaic lowering before using stride>1 in production.
                    patch = jax.lax.slice(
                        padv,
                        (ky * d, kx * d, 0),
                        (ky * d + (Ho - 1) * s + 1, kx * d + (Wo - 1) * s + 1, P),
                        (s, s, 1))
                patches.append(patch.reshape(Ho * Wo, P))
        col = jnp.concatenate(patches, axis=1)                                # (Ho*Wo, 9P) bf16
        acc = jnp.dot(col, w2r[...], preferred_element_type=jnp.float32)      # (Ho*Wo, P)

        # GN3 -> ReLU -> conv1x1 (expansion)
        h = jnp.maximum(gn(acc, oh2r[...], oh2tr[...], g3w[...], g3b[...], P // G2), 0.0)
        out = jnp.dot(h.astype(bf16), w3r[...], preferred_element_type=jnp.float32)  # (Ho*Wo, Cex)

        # shortcut: identity, or avgpool + conv1x1 + GN. When stride == 1 the pooled input
        # equals x, so the already-loaded x block is reused (no second DMA).
        if has_ds:
            sc_base = sc_ref[0].reshape(Ho * Wo, Cin) if need_sc_input else xf
            scf = jnp.dot(sc_base.astype(bf16), wdr[...], preferred_element_type=jnp.float32)
            scf = gn(scf, ohdr[...], ohdtr[...], gdw[...], gdb[...], Cex // Gd)
        else:
            scf = xf

        # TODO(synk): for Cex < 128 (demo) this is a masked vst; a lane-dense (Ho, Wo*Cex)
        # output slab would be ~4x cheaper on the store path but needs a minor-dim-changing
        # reshape whose Mosaic lowering is not guaranteed, so it is left out here.
        out_ref[0] = (out + scf).reshape(Ho, Wo, Cex)

    # ---- inputs -------------------------------------------------------------
    g1w = params["gn1_w"].reshape(1, Cin); g1b = params["gn1_b"].reshape(1, Cin)
    g2w = params["gn2_w"].reshape(1, P);   g2b = params["gn2_b"].reshape(1, P)
    g3w = params["gn3_w"].reshape(1, P);   g3b = params["gn3_b"].reshape(1, P)

    inputs = [x]
    if need_sc_input:
        inputs.append(sc_in)
    n_blocked = len(inputs)
    inputs += [g1w, g1b, oh1, oh1t, w1b,
               g2w, g2b, oh2, oh2t, w2col,
               g3w, g3b, w3b]
    if has_ds:
        inputs += [wdb,
                   params["gnd_w"].reshape(1, Cex), params["gnd_b"].reshape(1, Cex),
                   ohd, ohdt]

    # TODO(synk): the grid-invariant operands below are double-buffered by default; single-
    # buffering them (pl.BlockSpec(..., pipeline_mode=pl.Buffered(1))) would halve their VMEM
    # footprint on v7x, but that pipeline_mode path is not validated here so it is left out.
    def full_spec(a):
        nd = a.ndim
        return pl.BlockSpec(a.shape, lambda b, nd=nd: (0,) * nd)

    in_specs = [pl.BlockSpec((1, H, W, Cin), lambda b: (b, 0, 0, 0))]
    if need_sc_input:
        in_specs.append(pl.BlockSpec((1, Ho, Wo, Cin), lambda b: (b, 0, 0, 0)))
    in_specs += [full_spec(a) for a in inputs[n_blocked:]]

    # Explicit scoped-VMEM budget: per-sample blocks AND invariant operands counted double-
    # buffered, plus the bf16 padded scratch / im2col and live f32 intermediates, with ~2x
    # headroom, clamped to 75% of this generation's physical VMEM (64 MiB v7x, 128 MiB v5e/v6e).
    def nbytes(a):
        return int(np.prod(a.shape)) * a.dtype.itemsize

    blk_bytes = sum(nbytes(a) // N for a in inputs[:n_blocked]) + Ho * Wo * Cex * 4
    const_bytes = sum(nbytes(a) for a in inputs[n_blocked:])
    pad_bytes = (H + 2 * d) * (W + 2 * d) * P * 2
    col_bytes = Ho * Wo * 9 * P * 2
    live_bytes = 6 * max(H * W, Ho * Wo) * max(Cin, P, Cex) * 4
    per_step = 2 * (blk_bytes + const_bytes) + pad_bytes + col_bytes + live_bytes
    try:
        vmem_cap = int(pltpu.get_tpu_info().vmem_capacity_bytes)
    except Exception:
        vmem_cap = 64 << 20   # conservative fallback (v7x-sized)
    vmem_limit = int(min(max(2 * per_step, 32 << 20), int(0.75 * vmem_cap)))

    # TODO(synk): for production feature maps (e.g. 56x56x256) whole-sample residency exceeds
    # v7x's 64 MiB VMEM — add a spatial row-tile grid axis (d-row halo) with a separate
    # per-sample GroupNorm stats pass, and a multi-sample batch block for small-channel stages.
    out = pl.pallas_call(
        kernel,
        out_shape=jax.ShapeDtypeStruct((N, Ho, Wo, Cex), jnp.float32),
        grid_spec=pltpu.PrefetchScalarGridSpec(
            num_scalar_prefetch=0,
            grid=(N,),
            in_specs=in_specs,
            out_specs=pl.BlockSpec((1, Ho, Wo, Cex), lambda b: (b, 0, 0, 0)),
            scratch_shapes=[pltpu.VMEM((H + 2 * d, W + 2 * d, P), jnp.bfloat16)]),
        compiler_params=pltpu.CompilerParams(
            dimension_semantics=("parallel",),
            vmem_limit_bytes=vmem_limit),
    )(*inputs)

    return jnp.transpose(out, (0, 3, 1, 2))  # NHWC -> NCHW (glue)


# ---------------- deterministic parameter initialization ----------------
def init_params(key, in_planes, planes, *, expansion=4, stride=1):
    ex = planes * expansion
    keys = jax.random.split(key, 12)

    def conv_w(k, cin, cout, fan_in):
        return jax.random.normal(k, (cin, cout), jnp.float32) / np.sqrt(fan_in)

    p = {
        "gn1_w": 1.0 + 0.1 * jax.random.normal(keys[0], (in_planes,), jnp.float32),
        "gn1_b": 0.1 * jax.random.normal(keys[1], (in_planes,), jnp.float32),
        "w1": conv_w(keys[2], in_planes, planes, in_planes),                       # conv1x1 (Cin, P)
        "gn2_w": 1.0 + 0.1 * jax.random.normal(keys[3], (planes,), jnp.float32),
        "gn2_b": 0.1 * jax.random.normal(keys[4], (planes,), jnp.float32),
        "w2": jax.random.normal(keys[5], (3, 3, planes, planes), jnp.float32)
              / np.sqrt(9 * planes),                                               # conv3x3 HWIO
        "gn3_w": 1.0 + 0.1 * jax.random.normal(keys[6], (planes,), jnp.float32),
        "gn3_b": 0.1 * jax.random.normal(keys[7], (planes,), jnp.float32),
        "w3": conv_w(keys[8], planes, ex, planes),                                 # conv1x1 (P, 4P)
    }
    if stride != 1 or in_planes != ex:
        p["wd"] = conv_w(keys[9], in_planes, ex, in_planes)                        # downsample conv1x1
        p["gnd_w"] = 1.0 + 0.1 * jax.random.normal(keys[10], (ex,), jnp.float32)
        p["gnd_b"] = 0.1 * jax.random.normal(keys[11], (ex,), jnp.float32)
    return p


# ---------------- pure-JAX reference (bf16-conv aware, for correctness check) ----------------
def reference(x_nchw, params, *, stride=1, dilation=1):
    bf16 = jnp.bfloat16
    x = jnp.transpose(x_nchw, (0, 2, 3, 1)).astype(jnp.float32)
    Cin = x.shape[-1]
    P = params["w1"].shape[1]
    Cex = params["w3"].shape[1]
    has_ds = (stride != 1) or (Cin != Cex)

    def gn(t, w, b, groups, eps=1e-5):
        N, H, W, C = t.shape
        tg = t.reshape(N, H, W, groups, C // groups)
        mean = tg.mean(axis=(1, 2, 4), keepdims=True)
        var = ((tg - mean) ** 2).mean(axis=(1, 2, 4), keepdims=True)
        tn = ((tg - mean) * jax.lax.rsqrt(var + eps)).reshape(N, H, W, C)
        return tn * w + b

    relu = lambda t: jnp.maximum(t, 0.0)

    def conv1x1(t, w):
        return jnp.einsum("nhwc,co->nhwo", t.astype(bf16), w.astype(bf16),
                          preferred_element_type=jnp.float32)

    if has_ds:
        sc = avg_pool_ceil(x, stride)
        sc = conv1x1(sc, params["wd"])
        sc = gn(sc, params["gnd_w"], params["gnd_b"], adaptive_groups(Cex))
    else:
        sc = x

    h = relu(gn(x, params["gn1_w"], params["gn1_b"], adaptive_groups(Cin)))
    h = conv1x1(h, params["w1"])
    h = relu(gn(h, params["gn2_w"], params["gn2_b"], adaptive_groups(P)))
    h = jax.lax.conv_general_dilated(
        h.astype(bf16), params["w2"].astype(bf16),
        window_strides=(stride, stride),
        padding=((dilation, dilation), (dilation, dilation)),
        rhs_dilation=(dilation, dilation),
        dimension_numbers=("NHWC", "HWIO", "NHWC"),
        preferred_element_type=jnp.float32)
    h = relu(gn(h, params["gn3_w"], params["gn3_b"], adaptive_groups(P)))
    h = conv1x1(h, params["w3"])
    return jnp.transpose(h + sc, (0, 3, 1, 2))


if __name__ == "__main__":
    key = jax.random.PRNGKey(0)
    kx, kp = jax.random.split(key)

    # small shapes consistent with the module: batch=2, in_planes=8, planes=8 (expansion 4 -> 32)
    N, Cin, H, W = 2, 8, 16, 16
    planes, stride, dilation = 8, 1, 1

    x = jax.random.normal(kx, (N, Cin, H, W), jnp.float32)
    params = init_params(kp, Cin, planes, stride=stride)

    out = jax.block_until_ready(bottleneck_block(x, params, stride=stride, dilation=dilation))
    ref = jax.block_until_ready(reference(x, params, stride=stride, dilation=dilation))

    assert out.shape == (N, planes * 4, H, W), out.shape
    err = float(jnp.max(jnp.abs(out - ref)))
    assert err < 3e-2, f"max abs diff too large: {err}"
    print("KERNEL_OK")
</pallas_src>

<mosaic_0001>
module attributes {stable_mosaic.version = 11 : i64} {
  func.func @kernel(%arg0: i32, %arg1: memref<1x16x16x8xf32, #tpu.memory_space<vmem>>, %arg2: memref<1x8xf32, #tpu.memory_space<vmem>>, %arg3: memref<1x8xf32, #tpu.memory_space<vmem>>, %arg4: memref<8x8xf32, #tpu.memory_space<vmem>>, %arg5: memref<8x8xf32, #tpu.memory_space<vmem>>, %arg6: memref<8x8xbf16, #tpu.memory_space<vmem>>, %arg7: memref<1x8xf32, #tpu.memory_space<vmem>>, %arg8: memref<1x8xf32, #tpu.memory_space<vmem>>, %arg9: memref<8x8xf32, #tpu.memory_space<vmem>>, %arg10: memref<8x8xf32, #tpu.memory_space<vmem>>, %arg11: memref<72x8xbf16, #tpu.memory_space<vmem>>, %arg12: memref<1x8xf32, #tpu.memory_space<vmem>>, %arg13: memref<1x8xf32, #tpu.memory_space<vmem>>, %arg14: memref<8x32xbf16, #tpu.memory_space<vmem>>, %arg15: memref<8x32xbf16, #tpu.memory_space<vmem>>, %arg16: memref<1x32xf32, #tpu.memory_space<vmem>>, %arg17: memref<1x32xf32, #tpu.memory_space<vmem>>, %arg18: memref<32x32xf32, #tpu.memory_space<vmem>>, %arg19: memref<32x32xf32, #tpu.memory_space<vmem>>, %arg20: memref<1x16x16x32xf32, #tpu.memory_space<vmem>>, %arg21: memref<18x18x8xbf16, #tpu.memory_space<vmem>>) attributes {dimension_semantics = [#tpu.dimension_semantics<parallel>], iteration_bounds = array<i64: 2>, scalar_prefetch = 0 : i64, scratch_operands = 1 : i64, tpu.core_type = #tpu.core_type<tc>, window_params = [{transform_indices = @transform_0, window_bounds = array<i64: 1, 16, 16, 8>}, {pipeline_mode = #tpu.pipeline_mode<synchronous>, transform_indices = @transform_1, window_bounds = array<i64: 1, 8>}, {pipeline_mode = #tpu.pipeline_mode<synchronous>, transform_indices = @transform_2, window_bounds = array<i64: 1, 8>}, {pipeline_mode = #tpu.pipeline_mode<synchronous>, transform_indices = @transform_3, window_bounds = array<i64: 8, 8>}, {pipeline_mode = #tpu.pipeline_mode<synchronous>, transform_indices = @transform_4, window_bounds = array<i64: 8, 8>}, {pipeline_mode = #tpu.pipeline_mode<synchronous>, transform_indices = @transform_5, window_bounds = array<i64: 8, 8>}, {pipeline_mode = #tpu.pipeline_mode<synchronous>, transform_indices = @transform_6, window_bounds = array<i64: 1, 8>}, {pipeline_mode = #tpu.pipeline_mode<synchronous>, transform_indices = @transform_7, window_bounds = array<i64: 1, 8>}, {pipeline_mode = #tpu.pipeline_mode<synchronous>, transform_indices = @transform_8, window_bounds = array<i64: 8, 8>}, {pipeline_mode = #tpu.pipeline_mode<synchronous>, transform_indices = @transform_9, window_bounds = array<i64: 8, 8>}, {pipeline_mode = #tpu.pipeline_mode<synchronous>, transform_indices = @transform_10, window_bounds = array<i64: 72, 8>}, {pipeline_mode = #tpu.pipeline_mode<synchronous>, transform_indices = @transform_11, window_bounds = array<i64: 1, 8>}, {pipeline_mode = #tpu.pipeline_mode<synchronous>, transform_indices = @transform_12, window_bounds = array<i64: 1, 8>}, {pipeline_mode = #tpu.pipeline_mode<synchronous>, transform_indices = @transform_13, window_bounds = array<i64: 8, 32>}, {pipeline_mode = #tpu.pipeline_mode<synchronous>, transform_indices = @transform_14, window_bounds = array<i64: 8, 32>}, {pipeline_mode = #tpu.pipeline_mode<synchronous>, transform_indices = @transform_15, window_bounds = array<i64: 1, 32>}, {pipeline_mode = #tpu.pipeline_mode<synchronous>, transform_indices = @transform_16, window_bounds = array<i64: 1, 32>}, {pipeline_mode = #tpu.pipeline_mode<synchronous>, transform_indices = @transform_17, window_bounds = array<i64: 32, 32>}, {pipeline_mode = #tpu.pipeline_mode<synchronous>, transform_indices = @transform_18, window_bounds = array<i64: 32, 32>}, {transform_indices = @transform_19, window_bounds = array<i64: 1, 16, 16, 32>}]} {
    %c0 = arith.constant 0 : index
    %c0_0 = arith.constant 0 : index
    %c0_1 = arith.constant 0 : index
    %c0_2 = arith.constant 0 : index
    %0 = vector.load %arg1[%c0, %c0_0, %c0_1, %c0_2] : memref<1x16x16x8xf32, #tpu.memory_space<vmem>>, vector<1x16x16x8xf32>
    %1 = vector.shape_cast %0 : vector<1x16x16x8xf32> to vector<16x16x8xf32>
    %2 = vector.shape_cast %1 : vector<16x16x8xf32> to vector<256x8xf32>
    %c0_3 = arith.constant 0 : index
    %c0_4 = arith.constant 0 : index
    %3 = vector.load %arg4[%c0_3, %c0_4] : memref<8x8xf32, #tpu.memory_space<vmem>>, vector<8x8xf32>
    %c0_5 = arith.constant 0 : index
    %c0_6 = arith.constant 0 : index
    %4 = vector.load %arg5[%c0_5, %c0_6] : memref<8x8xf32, #tpu.memory_space<vmem>>, vector<8x8xf32>
    %c0_7 = arith.constant 0 : index
    %c0_8 = arith.constant 0 : index
    %5 = vector.load %arg2[%c0_7, %c0_8] : memref<1x8xf32, #tpu.memory_space<vmem>>, vector<1x8xf32>
    %c0_9 = arith.constant 0 : index
    %c0_10 = arith.constant 0 : index
    %6 = vector.load %arg3[%c0_9, %c0_10] : memref<1x8xf32, #tpu.memory_space<vmem>>, vector<1x8xf32>
    %cst = arith.constant dense<0.000000e+00> : vector<8xf32>
    %7 = vector.multi_reduction <add>, %2, %cst [0] : vector<256x8xf32> to vector<8xf32>
    %8 = vector.shape_cast %7 : vector<8xf32> to vector<1x8xf32>
    %cst_11 = arith.constant dense<0.000000e+00> : vector<1x8xf32>
    %9 = tpu.matmul %8, %3, %cst_11 {dimension_numbers = #tpu.dot_dimension_numbers<[1], [0], [0], [1], [0, 0, 1, 1], [], []>} : vector<1x8xf32>, vector<8x8xf32>, vector<1x8xf32> -> vector<1x8xf32>
    %cst_12 = arith.constant dense<0.000000e+00> : vector<1x8xf32>
    %10 = tpu.matmul %9, %4, %cst_12 {dimension_numbers = #tpu.dot_dimension_numbers<[1], [0], [0], [1], [0, 0, 1, 1], [], []>} : vector<1x8xf32>, vector<8x8xf32>, vector<1x8xf32> -> vector<1x8xf32>
    %cst_13 = arith.constant 3.906250e-03 : f32
    %11 = vector.broadcast %cst_13 : f32 to vector<1x8xf32>
    %12 = arith.mulf %10, %11 : vector<1x8xf32>
    %13 = vector.broadcast %12 : vector<1x8xf32> to vector<256x8xf32>
    %14 = arith.subf %2, %13 : vector<256x8xf32>
    %15 = arith.mulf %14, %14 : vector<256x8xf32>
    %cst_14 = arith.constant dense<0.000000e+00> : vector<8xf32>
    %16 = vector.multi_reduction <add>, %15, %cst_14 [0] : vector<256x8xf32> to vector<8xf32>
    %17 = vector.shape_cast %16 : vector<8xf32> to vector<1x8xf32>
    %cst_15 = arith.constant dense<0.000000e+00> : vector<1x8xf32>
    %18 = tpu.matmul %17, %3, %cst_15 {dimension_numbers = #tpu.dot_dimension_numbers<[1], [0], [0], [1], [0, 0, 1, 1], [], []>} : vector<1x8xf32>, vector<8x8xf32>, vector<1x8xf32> -> vector<1x8xf32>
    %cst_16 = arith.constant dense<0.000000e+00> : vector<1x8xf32>
    %19 = tpu.matmul %18, %4, %cst_16 {dimension_numbers = #tpu.dot_dimension_numbers<[1], [0], [0], [1], [0, 0, 1, 1], [], []>} : vector<1x8xf32>, vector<8x8xf32>, vector<1x8xf32> -> vector<1x8xf32>
    %cst_17 = arith.constant 3.906250e-03 : f32
    %20 = vector.broadcast %cst_17 : f32 to vector<1x8xf32>
    %21 = arith.mulf %19, %20 : vector<1x8xf32>
    %cst_18 = arith.constant 9.99999974E-6 : f32
    %22 = vector.broadcast %cst_18 : f32 to vector<1x8xf32>
    %23 = arith.addf %21, %22 : vector<1x8xf32>
    %24 = math.rsqrt %23 : vector<1x8xf32>
    %25 = arith.mulf %24, %5 : vector<1x8xf32>
    %26 = vector.broadcast %25 : vector<1x8xf32> to vector<256x8xf32>
    %27 = arith.mulf %14, %26 : vector<256x8xf32>
    %28 = vector.broadcast %6 : vector<1x8xf32> to vector<256x8xf32>
    %29 = arith.addf %27, %28 : vector<256x8xf32>
    %cst_19 = arith.constant 0.000000e+00 : f32
    %30 = vector.broadcast %cst_19 : f32 to vector<256x8xf32>
    %31 = arith.maximumf %29, %30 : vector<256x8xf32>
    %32 = arith.truncf %31 : vector<256x8xf32> to vector<256x8xbf16>
    %c0_20 = arith.constant 0 : index
    %c0_21 = arith.constant 0 : index
    %33 = vector.load %arg6[%c0_20, %c0_21] : memref<8x8xbf16, #tpu.memory_space<vmem>>, vector<8x8xbf16>
    %cst_22 = arith.constant dense<0.000000e+00> : vector<256x8xf32>
    %34 = tpu.matmul %32, %33, %cst_22 {dimension_numbers = #tpu.dot_dimension_numbers<[1], [0], [0], [1], [0, 0, 1, 1], [], []>} : vector<256x8xbf16>, vector<8x8xbf16>, vector<256x8xf32> -> vector<256x8xf32>
    %c0_23 = arith.constant 0 : index
    %c0_24 = arith.constant 0 : index
    %35 = vector.load %arg9[%c0_23, %c0_24] : memref<8x8xf32, #tpu.memory_space<vmem>>, vector<8x8xf32>
    %c0_25 = arith.constant 0 : index
    %c0_26 = arith.constant 0 : index
    %36 = vector.load %arg10[%c0_25, %c0_26] : memref<8x8xf32, #tpu.memory_space<vmem>>, vector<8x8xf32>
    %c0_27 = arith.constant 0 : index
    %c0_28 = arith.constant 0 : index
    %37 = vector.load %arg7[%c0_27, %c0_28] : memref<1x8xf32, #tpu.memory_space<vmem>>, vector<1x8xf32>
    %c0_29 = arith.constant 0 : index
    %c0_30 = arith.constant 0 : index
    %38 = vector.load %arg8[%c0_29, %c0_30] : memref<1x8xf32, #tpu.memory_space<vmem>>, vector<1x8xf32>
    %cst_31 = arith.constant dense<0.000000e+00> : vector<8xf32>
    %39 = vector.multi_reduction <add>, %34, %cst_31 [0] : vector<256x8xf32> to vector<8xf32>
    %40 = vector.shape_cast %39 : vector<8xf32> to vector<1x8xf32>
    %cst_32 = arith.constant dense<0.000000e+00> : vector<1x8xf32>
    %41 = tpu.matmul %40, %35, %cst_32 {dimension_numbers = #tpu.dot_dimension_numbers<[1], [0], [0], [1], [0, 0, 1, 1], [], []>} : vector<1x8xf32>, vector<8x8xf32>, vector<1x8xf32> -> vector<1x8xf32>
    %cst_33 = arith.constant dense<0.000000e+00> : vector<1x8xf32>
    %42 = tpu.matmul %41, %36, %cst_33 {dimension_numbers = #tpu.dot_dimension_numbers<[1], [0], [0], [1], [0, 0, 1, 1], [], []>} : vector<1x8xf32>, vector<8x8xf32>, vector<1x8xf32> -> vector<1x8xf32>
    %cst_34 = arith.constant 3.906250e-03 : f32
    %43 = vector.broadcast %cst_34 : f32 to vector<1x8xf32>
    %44 = arith.mulf %42, %43 : vector<1x8xf32>
    %45 = vector.broadcast %44 : vector<1x8xf32> to vector<256x8xf32>
    %46 = arith.subf %34, %45 : vector<256x8xf32>
    %47 = arith.mulf %46, %46 : vector<256x8xf32>
    %cst_35 = arith.constant dense<0.000000e+00> : vector<8xf32>
    %48 = vector.multi_reduction <add>, %47, %cst_35 [0] : vector<256x8xf32> to vector<8xf32>
    %49 = vector.shape_cast %48 : vector<8xf32> to vector<1x8xf32>
    %cst_36 = arith.constant dense<0.000000e+00> : vector<1x8xf32>
    %50 = tpu.matmul %49, %35, %cst_36 {dimension_numbers = #tpu.dot_dimension_numbers<[1], [0], [0], [1], [0, 0, 1, 1], [], []>} : vector<1x8xf32>, vector<8x8xf32>, vector<1x8xf32> -> vector<1x8xf32>
    %cst_37 = arith.constant dense<0.000000e+00> : vector<1x8xf32>
    %51 = tpu.matmul %50, %36, %cst_37 {dimension_numbers = #tpu.dot_dimension_numbers<[1], [0], [0], [1], [0, 0, 1, 1], [], []>} : vector<1x8xf32>, vector<8x8xf32>, vector<1x8xf32> -> vector<1x8xf32>
    %cst_38 = arith.constant 3.906250e-03 : f32
    %52 = vector.broadcast %cst_38 : f32 to vector<1x8xf32>
    %53 = arith.mulf %51, %52 : vector<1x8xf32>
    %cst_39 = arith.constant 9.99999974E-6 : f32
    %54 = vector.broadcast %cst_39 : f32 to vector<1x8xf32>
    %55 = arith.addf %53, %54 : vector<1x8xf32>
    %56 = math.rsqrt %55 : vector<1x8xf32>
    %57 = arith.mulf %56, %37 : vector<1x8xf32>
    %58 = vector.broadcast %57 : vector<1x8xf32> to vector<256x8xf32>
    %59 = arith.mulf %46, %58 : vector<256x8xf32>
    %60 = vector.broadcast %38 : vector<1x8xf32> to vector<256x8xf32>
    %61 = arith.addf %59, %60 : vector<256x8xf32>
    %cst_40 = arith.constant 0.000000e+00 : f32
    %62 = vector.broadcast %cst_40 : f32 to vector<256x8xf32>
    %63 = arith.maximumf %61, %62 : vector<256x8xf32>
    %cst_41 = arith.constant 0.000000e+00 : bf16
    %64 = vector.broadcast %cst_41 : bf16 to vector<1x18x8xbf16>
    %c0_42 = arith.constant 0 : index
    %c0_43 = arith.constant 0 : index
    %c0_44 = arith.constant 0 : index
    %65 = vector.load %arg21[%c0_42, %c0_43, %c0_44] : memref<18x18x8xbf16, #tpu.memory_space<vmem>>, vector<1x18x8xbf16>
    tpu.vector_store %arg21[%c0_42, %c0_43, %c0_44], %64 {strides = array<i32>} : memref<18x18x8xbf16, #tpu.memory_space<vmem>>, vector<1x18x8xbf16>,
    %cst_45 = arith.constant 0.000000e+00 : bf16
    %66 = vector.broadcast %cst_45 : bf16 to vector<1x18x8xbf16>
    %c17 = arith.constant 17 : index
    %c0_46 = arith.constant 0 : index
    %c0_47 = arith.constant 0 : index
    %67 = vector.load %arg21[%c17, %c0_46, %c0_47] : memref<18x18x8xbf16, #tpu.memory_space<vmem>>, vector<1x18x8xbf16>
    tpu.vector_store %arg21[%c17, %c0_46, %c0_47], %66 {strides = array<i32>} : memref<18x18x8xbf16, #tpu.memory_space<vmem>>, vector<1x18x8xbf16>,
    %cst_48 = arith.constant 0.000000e+00 : bf16
    %68 = vector.broadcast %cst_48 : bf16 to vector<16x1x8xbf16>
    %c1 = arith.constant 1 : index
    %c0_49 = arith.constant 0 : index
    %c0_50 = arith.constant 0 : index
    %69 = vector.load %arg21[%c1, %c0_49, %c0_50] : memref<18x18x8xbf16, #tpu.memory_space<vmem>>, vector<16x1x8xbf16>
    tpu.vector_store %arg21[%c1, %c0_49, %c0_50], %68 {strides = array<i32>} : memref<18x18x8xbf16, #tpu.memory_space<vmem>>, vector<16x1x8xbf16>,
    %cst_51 = arith.constant 0.000000e+00 : bf16
    %70 = vector.broadcast %cst_51 : bf16 to vector<16x1x8xbf16>
    %c1_52 = arith.constant 1 : index
    %c17_53 = arith.constant 17 : index
    %c0_54 = arith.constant 0 : index
    %71 = vector.load %arg21[%c1_52, %c17_53, %c0_54] : memref<18x18x8xbf16, #tpu.memory_space<vmem>>, vector<16x1x8xbf16>
    tpu.vector_store %arg21[%c1_52, %c17_53, %c0_54], %70 {strides = array<i32>} : memref<18x18x8xbf16, #tpu.memory_space<vmem>>, vector<16x1x8xbf16>,
    %72 = arith.truncf %63 : vector<256x8xf32> to vector<256x8xbf16>
    %73 = vector.shape_cast %72 : vector<256x8xbf16> to vector<16x16x8xbf16>
    %c1_55 = arith.constant 1 : index
    %c1_56 = arith.constant 1 : index
    %c0_57 = arith.constant 0 : index
    %74 = vector.load %arg21[%c1_55, %c1_56, %c0_57] : memref<18x18x8xbf16, #tpu.memory_space<vmem>>, vector<16x16x8xbf16>
    tpu.vector_store %arg21[%c1_55, %c1_56, %c0_57], %73 {strides = array<i32>} : memref<18x18x8xbf16, #tpu.memory_space<vmem>>, vector<16x16x8xbf16>,
    %c0_58 = arith.constant 0 : index
    %c0_59 = arith.constant 0 : index
    %c0_60 = arith.constant 0 : index
    %75 = vector.load %arg21[%c0_58, %c0_59, %c0_60] : memref<18x18x8xbf16, #tpu.memory_space<vmem>>, vector<18x18x8xbf16>
    %76 = vector.extract_strided_slice %75 {offsets = [0, 0, 0], sizes = [16, 16, 8], strides = [1, 1, 1]} : vector<18x18x8xbf16> to vector<16x16x8xbf16>
    %77 = vector.shape_cast %76 : vector<16x16x8xbf16> to vector<256x8xbf16>
    %78 = vector.extract_strided_slice %75 {offsets = [0, 1, 0], sizes = [16, 16, 8], strides = [1, 1, 1]} : vector<18x18x8xbf16> to vector<16x16x8xbf16>
    %79 = vector.shape_cast %78 : vector<16x16x8xbf16> to vector<256x8xbf16>
    %80 = vector.extract_strided_slice %75 {offsets = [0, 2, 0], sizes = [16, 16, 8], strides = [1, 1, 1]} : vector<18x18x8xbf16> to vector<16x16x8xbf16>
    %81 = vector.shape_cast %80 : vector<16x16x8xbf16> to vector<256x8xbf16>
    %82 = vector.extract_strided_slice %75 {offsets = [1, 0, 0], sizes = [16, 16, 8], strides = [1, 1, 1]} : vector<18x18x8xbf16> to vector<16x16x8xbf16>
    %83 = vector.shape_cast %82 : vector<16x16x8xbf16> to vector<256x8xbf16>
    %84 = vector.extract_strided_slice %75 {offsets = [1, 1, 0], sizes = [16, 16, 8], strides = [1, 1, 1]} : vector<18x18x8xbf16> to vector<16x16x8xbf16>
    %85 = vector.shape_cast %84 : vector<16x16x8xbf16> to vector<256x8xbf16>
    %86 = vector.extract_strided_slice %75 {offsets = [1, 2, 0], sizes = [16, 16, 8], strides = [1, 1, 1]} : vector<18x18x8xbf16> to vector<16x16x8xbf16>
    %87 = vector.shape_cast %86 : vector<16x16x8xbf16> to vector<256x8xbf16>
    %88 = vector.extract_strided_slice %75 {offsets = [2, 0, 0], sizes = [16, 16, 8], strides = [1, 1, 1]} : vector<18x18x8xbf16> to vector<16x16x8xbf16>
    %89 = vector.shape_cast %88 : vector<16x16x8xbf16> to vector<256x8xbf16>
    %90 = vector.extract_strided_slice %75 {offsets = [2, 1, 0], sizes = [16, 16, 8], strides = [1, 1, 1]} : vector<18x18x8xbf16> to vector<16x16x8xbf16>
    %91 = vector.shape_cast %90 : vector<16x16x8xbf16> to vector<256x8xbf16>
    %92 = vector.extract_strided_slice %75 {offsets = [2, 2, 0], sizes = [16, 16, 8], strides = [1, 1, 1]} : vector<18x18x8xbf16> to vector<16x16x8xbf16>
    %93 = vector.shape_cast %92 : vector<16x16x8xbf16> to vector<256x8xbf16>
    %94 = tpu.concatenate %77, %79, %81, %83, %85, %87, %89, %91, %93 in 1 : vector<256x8xbf16>, vector<256x8xbf16>, vector<256x8xbf16>, vector<256x8xbf16>, vector<256x8xbf16>, vector<256x8xbf16>, vector<256x8xbf16>, vector<256x8xbf16>, vector<256x8xbf16> -> vector<256x72xbf16>
    %c0_61 = arith.constant 0 : index
    %c0_62 = arith.constant 0 : index
    %95 = vector.load %arg11[%c0_61, %c0_62] : memref<72x8xbf16, #tpu.memory_space<vmem>>, vector<72x8xbf16>
    %cst_63 = arith.constant dense<0.000000e+00> : vector<256x8xf32>
    %96 = tpu.matmul %94, %95, %cst_63 {dimension_numbers = #tpu.dot_dimension_numbers<[1], [0], [0], [1], [0, 0, 1, 1], [], []>} : vector<256x72xbf16>, vector<72x8xbf16>, vector<256x8xf32> -> vector<256x8xf32>
    %c0_64 = arith.constant 0 : index
    %c0_65 = arith.constant 0 : index
    %97 = vector.load %arg9[%c0_64, %c0_65] : memref<8x8xf32, #tpu.memory_space<vmem>>, vector<8x8xf32>
    %c0_66 = arith.constant 0 : index
    %c0_67 = arith.constant 0 : index
    %98 = vector.load %arg10[%c0_66, %c0_67] : memref<8x8xf32, #tpu.memory_space<vmem>>, vector<8x8xf32>
    %c0_68 = arith.constant 0 : index
    %c0_69 = arith.constant 0 : index
    %99 = vector.load %arg12[%c0_68, %c0_69] : memref<1x8xf32, #tpu.memory_space<vmem>>, vector<1x8xf32>
    %c0_70 = arith.constant 0 : index
    %c0_71 = arith.constant 0 : index
    %100 = vector.load %arg13[%c0_70, %c0_71] : memref<1x8xf32, #tpu.memory_space<vmem>>, vector<1x8xf32>
    %cst_72 = arith.constant dense<0.000000e+00> : vector<8xf32>
    %101 = vector.multi_reduction <add>, %96, %cst_72 [0] : vector<256x8xf32> to vector<8xf32>
    %102 = vector.shape_cast %101 : vector<8xf32> to vector<1x8xf32>
    %cst_73 = arith.constant dense<0.000000e+00> : vector<1x8xf32>
    %103 = tpu.matmul %102, %97, %cst_73 {dimension_numbers = #tpu.dot_dimension_numbers<[1], [0], [0], [1], [0, 0, 1, 1], [], []>} : vector<1x8xf32>, vector<8x8xf32>, vector<1x8xf32> -> vector<1x8xf32>
    %cst_74 = arith.constant dense<0.000000e+00> : vector<1x8xf32>
    %104 = tpu.matmul %103, %98, %cst_74 {dimension_numbers = #tpu.dot_dimension_numbers<[1], [0], [0], [1], [0, 0, 1, 1], [], []>} : vector<1x8xf32>, vector<8x8xf32>, vector<1x8xf32> -> vector<1x8xf32>
    %cst_75 = arith.constant 3.906250e-03 : f32
    %105 = vector.broadcast %cst_75 : f32 to vector<1x8xf32>
    %106 = arith.mulf %104, %105 : vector<1x8xf32>
    %107 = vector.broadcast %106 : vector<1x8xf32> to vector<256x8xf32>
    %108 = arith.subf %96, %107 : vector<256x8xf32>
    %109 = arith.mulf %108, %108 : vector<256x8xf32>
    %cst_76 = arith.constant dense<0.000000e+00> : vector<8xf32>
    %110 = vector.multi_reduction <add>, %109, %cst_76 [0] : vector<256x8xf32> to vector<8xf32>
    %111 = vector.shape_cast %110 : vector<8xf32> to vector<1x8xf32>
    %cst_77 = arith.constant dense<0.000000e+00> : vector<1x8xf32>
    %112 = tpu.matmul %111, %97, %cst_77 {dimension_numbers = #tpu.dot_dimension_numbers<[1], [0], [0], [1], [0, 0, 1, 1], [], []>} : vector<1x8xf32>, vector<8x8xf32>, vector<1x8xf32> -> vector<1x8xf32>
    %cst_78 = arith.constant dense<0.000000e+00> : vector<1x8xf32>
    %113 = tpu.matmul %112, %98, %cst_78 {dimension_numbers = #tpu.dot_dimension_numbers<[1], [0], [0], [1], [0, 0, 1, 1], [], []>} : vector<1x8xf32>, vector<8x8xf32>, vector<1x8xf32> -> vector<1x8xf32>
    %cst_79 = arith.constant 3.906250e-03 : f32
    %114 = vector.broadcast %cst_79 : f32 to vector<1x8xf32>
    %115 = arith.mulf %113, %114 : vector<1x8xf32>
    %cst_80 = arith.constant 9.99999974E-6 : f32
    %116 = vector.broadcast %cst_80 : f32 to vector<1x8xf32>
    %117 = arith.addf %115, %116 : vector<1x8xf32>
    %118 = math.rsqrt %117 : vector<1x8xf32>
    %119 = arith.mulf %118, %99 : vector<1x8xf32>
    %120 = vector.broadcast %119 : vector<1x8xf32> to vector<256x8xf32>
    %121 = arith.mulf %108, %120 : vector<256x8xf32>
    %122 = vector.broadcast %100 : vector<1x8xf32> to vector<256x8xf32>
    %123 = arith.addf %121, %122 : vector<256x8xf32>
    %cst_81 = arith.constant 0.000000e+00 : f32
    %124 = vector.broadcast %cst_81 : f32 to vector<256x8xf32>
    %125 = arith.maximumf %123, %124 : vector<256x8xf32>
    %126 = arith.truncf %125 : vector<256x8xf32> to vector<256x8xbf16>
    %c0_82 = arith.constant 0 : index
    %c0_83 = arith.constant 0 : index
    %127 = vector.load %arg14[%c0_82, %c0_83] : memref<8x32xbf16, #tpu.memory_space<vmem>>, vector<8x32xbf16>
    %cst_84 = arith.constant dense<0.000000e+00> : vector<256x32xf32>
    %128 = tpu.matmul %126, %127, %cst_84 {dimension_numbers = #tpu.dot_dimension_numbers<[1], [0], [0], [1], [0, 0, 1, 1], [], []>} : vector<256x8xbf16>, vector<8x32xbf16>, vector<256x32xf32> -> vector<256x32xf32>
    %129 = arith.truncf %2 : vector<256x8xf32> to vector<256x8xbf16>
    %c0_85 = arith.constant 0 : index
    %c0_86 = arith.constant 0 : index
    %130 = vector.load %arg15[%c0_85, %c0_86] : memref<8x32xbf16, #tpu.memory_space<vmem>>, vector<8x32xbf16>
    %cst_87 = arith.constant dense<0.000000e+00> : vector<256x32xf32>
    %131 = tpu.matmul %129, %130, %cst_87 {dimension_numbers = #tpu.dot_dimension_numbers<[1], [0], [0], [1], [0, 0, 1, 1], [], []>} : vector<256x8xbf16>, vector<8x32xbf16>, vector<256x32xf32> -> vector<256x32xf32>
    %c0_88 = arith.constant 0 : index
    %c0_89 = arith.constant 0 : index
    %132 = vector.load %arg18[%c0_88, %c0_89] : memref<32x32xf32, #tpu.memory_space<vmem>>, vector<32x32xf32>
    %c0_90 = arith.constant 0 : index
    %c0_91 = arith.constant 0 : index
    %133 = vector.load %arg19[%c0_90, %c0_91] : memref<32x32xf32, #tpu.memory_space<vmem>>, vector<32x32xf32>
    %c0_92 = arith.constant 0 : index
    %c0_93 = arith.constant 0 : index
    %134 = vector.load %arg16[%c0_92, %c0_93] : memref<1x32xf32, #tpu.memory_space<vmem>>, vector<1x32xf32>
    %c0_94 = arith.constant 0 : index
    %c0_95 = arith.constant 0 : index
    %135 = vector.load %arg17[%c0_94, %c0_95] : memref<1x32xf32, #tpu.memory_space<vmem>>, vector<1x32xf32>
    %cst_96 = arith.constant dense<0.000000e+00> : vector<32xf32>
    %136 = vector.multi_reduction <add>, %131, %cst_96 [0] : vector<256x32xf32> to vector<32xf32>
    %137 = vector.shape_cast %136 : vector<32xf32> to vector<1x32xf32>
    %cst_97 = arith.constant dense<0.000000e+00> : vector<1x32xf32>
    %138 = tpu.matmul %137, %132, %cst_97 {dimension_numbers = #tpu.dot_dimension_numbers<[1], [0], [0], [1], [0, 0, 1, 1], [], []>} : vector<1x32xf32>, vector<32x32xf32>, vector<1x32xf32> -> vector<1x32xf32>
    %cst_98 = arith.constant dense<0.000000e+00> : vector<1x32xf32>
    %139 = tpu.matmul %138, %133, %cst_98 {dimension_numbers = #tpu.dot_dimension_numbers<[1], [0], [0], [1], [0, 0, 1, 1], [], []>} : vector<1x32xf32>, vector<32x32xf32>, vector<1x32xf32> -> vector<1x32xf32>
    %cst_99 = arith.constant 3.906250e-03 : f32
    %140 = vector.broadcast %cst_99 : f32 to vector<1x32xf32>
    %141 = arith.mulf %139, %140 : vector<1x32xf32>
    %142 = vector.broadcast %141 : vector<1x32xf32> to vector<256x32xf32>
    %143 = arith.subf %131, %142 : vector<256x32xf32>
    %144 = arith.mulf %143, %143 : vector<256x32xf32>
    %cst_100 = arith.constant dense<0.000000e+00> : vector<32xf32>
    %145 = vector.multi_reduction <add>, %144, %cst_100 [0] : vector<256x32xf32> to vector<32xf32>
    %146 = vector.shape_cast %145 : vector<32xf32> to vector<1x32xf32>
    %cst_101 = arith.constant dense<0.000000e+00> : vector<1x32xf32>
    %147 = tpu.matmul %146, %132, %cst_101 {dimension_numbers = #tpu.dot_dimension_numbers<[1], [0], [0], [1], [0, 0, 1, 1], [], []>} : vector<1x32xf32>, vector<32x32xf32>, vector<1x32xf32> -> vector<1x32xf32>
    %cst_102 = arith.constant dense<0.000000e+00> : vector<1x32xf32>
    %148 = tpu.matmul %147, %133, %cst_102 {dimension_numbers = #tpu.dot_dimension_numbers<[1], [0], [0], [1], [0, 0, 1, 1], [], []>} : vector<1x32xf32>, vector<32x32xf32>, vector<1x32xf32> -> vector<1x32xf32>
    %cst_103 = arith.constant 3.906250e-03 : f32
    %149 = vector.broadcast %cst_103 : f32 to vector<1x32xf32>
    %150 = arith.mulf %148, %149 : vector<1x32xf32>
    %cst_104 = arith.constant 9.99999974E-6 : f32
    %151 = vector.broadcast %cst_104 : f32 to vector<1x32xf32>
    %152 = arith.addf %150, %151 : vector<1x32xf32>
    %153 = math.rsqrt %152 : vector<1x32xf32>
    %154 = arith.mulf %153, %134 : vector<1x32xf32>
    %155 = vector.broadcast %154 : vector<1x32xf32> to vector<256x32xf32>
    %156 = arith.mulf %143, %155 : vector<256x32xf32>
    %157 = vector.broadcast %135 : vector<1x32xf32> to vector<256x32xf32>
    %158 = arith.addf %156, %157 : vector<256x32xf32>
    %159 = arith.addf %128, %158 : vector<256x32xf32>
    %160 = vector.shape_cast %159 : vector<256x32xf32> to vector<16x16x32xf32>
    %c0_105 = arith.constant 0 : index
    %c0_106 = arith.constant 0 : index
    %c0_107 = arith.constant 0 : index
    %c0_108 = arith.constant 0 : index
    %161 = vector.load %arg20[%c0_105, %c0_106, %c0_107, %c0_108] : memref<1x16x16x32xf32, #tpu.memory_space<vmem>>, vector<1x16x16x32xf32>
    %162 = vector.shape_cast %161 : vector<1x16x16x32xf32> to vector<16x16x32xf32>
    %163 = vector.shape_cast %160 : vector<16x16x32xf32> to vector<1x16x16x32xf32>
    tpu.vector_store %arg20[%c0_105, %c0_106, %c0_107, %c0_108], %163 {strides = array<i32>} : memref<1x16x16x32xf32, #tpu.memory_space<vmem>>, vector<1x16x16x32xf32>,
    return
  }
  func.func @transform_0(%arg0: i32) -> (i32, i32, i32, i32) {
    %c0_i32 = arith.constant 0 : i32
    %c0_i32_0 = arith.constant 0 : i32
    %c0_i32_1 = arith.constant 0 : i32
    %c0_i32_2 = arith.constant 0 : i32
    return %arg0, %c0_i32, %c0_i32_0, %c0_i32_1 : i32, i32, i32, i32
  }
  func.func @transform_1(%arg0: i32) -> (i32, i32) {
    %c0_i32 = arith.constant 0 : i32
    %c0_i32_0 = arith.constant 0 : i32
    %c0_i32_1 = arith.constant 0 : i32
    return %c0_i32, %c0_i32_0 : i32, i32
  }
  func.func @transform_2(%arg0: i32) -> (i32, i32) {
    %c0_i32 = arith.constant 0 : i32
    %c0_i32_0 = arith.constant 0 : i32
    %c0_i32_1 = arith.constant 0 : i32
    return %c0_i32, %c0_i32_0 : i32, i32
  }
  func.func @transform_3(%arg0: i32) -> (i32, i32) {
    %c0_i32 = arith.constant 0 : i32
    %c0_i32_0 = arith.constant 0 : i32
    %c0_i32_1 = arith.constant 0 : i32
    return %c0_i32, %c0_i32_0 : i32, i32
  }
  func.func @transform_4(%arg0: i32) -> (i32, i32) {
    %c0_i32 = arith.constant 0 : i32
    %c0_i32_0 = arith.constant 0 : i32
    %c0_i32_1 = arith.constant 0 : i32
    return %c0_i32, %c0_i32_0 : i32, i32
  }
  func.func @transform_5(%arg0: i32) -> (i32, i32) {
    %c0_i32 = arith.constant 0 : i32
    %c0_i32_0 = arith.constant 0 : i32
    %c0_i32_1 = arith.constant 0 : i32
    return %c0_i32, %c0_i32_0 : i32, i32
  }
  func.func @transform_6(%arg0: i32) -> (i32, i32) {
    %c0_i32 = arith.constant 0 : i32
    %c0_i32_0 = arith.constant 0 : i32
    %c0_i32_1 = arith.constant 0 : i32
    return %c0_i32, %c0_i32_0 : i32, i32
  }
  func.func @transform_7(%arg0: i32) -> (i32, i32) {
    %c0_i32 = arith.constant 0 : i32
    %c0_i32_0 = arith.constant 0 : i32
    %c0_i32_1 = arith.constant 0 : i32
    return %c0_i32, %c0_i32_0 : i32, i32
  }
  func.func @transform_8(%arg0: i32) -> (i32, i32) {
    %c0_i32 = arith.constant 0 : i32
    %c0_i32_0 = arith.constant 0 : i32
    %c0_i32_1 = arith.constant 0 : i32
    return %c0_i32, %c0_i32_0 : i32, i32
  }
  func.func @transform_9(%arg0: i32) -> (i32, i32) {
    %c0_i32 = arith.constant 0 : i32
    %c0_i32_0 = arith.constant 0 : i32
    %c0_i32_1 = arith.constant 0 : i32
    return %c0_i32, %c0_i32_0 : i32, i32
  }
  func.func @transform_10(%arg0: i32) -> (i32, i32) {
    %c0_i32 = arith.constant 0 : i32
    %c0_i32_0 = arith.constant 0 : i32
    %c0_i32_1 = arith.constant 0 : i32
    return %c0_i32, %c0_i32_0 : i32, i32
  }
  func.func @transform_11(%arg0: i32) -> (i32, i32) {
    %c0_i32 = arith.constant 0 : i32
    %c0_i32_0 = arith.constant 0 : i32
    %c0_i32_1 = arith.constant 0 : i32
    return %c0_i32, %c0_i32_0 : i32, i32
  }
  func.func @transform_12(%arg0: i32) -> (i32, i32) {
    %c0_i32 = arith.constant 0 : i32
    %c0_i32_0 = arith.constant 0 : i32
    %c0_i32_1 = arith.constant 0 : i32
    return %c0_i32, %c0_i32_0 : i32, i32
  }
  func.func @transform_13(%arg0: i32) -> (i32, i32) {
    %c0_i32 = arith.constant 0 : i32
    %c0_i32_0 = arith.constant 0 : i32
    %c0_i32_1 = arith.constant 0 : i32
    return %c0_i32, %c0_i32_0 : i32, i32
  }
  func.func @transform_14(%arg0: i32) -> (i32, i32) {
    %c0_i32 = arith.constant 0 : i32
    %c0_i32_0 = arith.constant 0 : i32
    %c0_i32_1 = arith.constant 0 : i32
    return %c0_i32, %c0_i32_0 : i32, i32
  }
  func.func @transform_15(%arg0: i32) -> (i32, i32) {
    %c0_i32 = arith.constant 0 : i32
    %c0_i32_0 = arith.constant 0 : i32
    %c0_i32_1 = arith.constant 0 : i32
    return %c0_i32, %c0_i32_0 : i32, i32
  }
  func.func @transform_16(%arg0: i32) -> (i32, i32) {
    %c0_i32 = arith.constant 0 : i32
    %c0_i32_0 = arith.constant 0 : i32
    %c0_i32_1 = arith.constant 0 : i32
    return %c0_i32, %c0_i32_0 : i32, i32
  }
  func.func @transform_17(%arg0: i32) -> (i32, i32) {
    %c0_i32 = arith.constant 0 : i32
    %c0_i32_0 = arith.constant 0 : i32
    %c0_i32_1 = arith.constant 0 : i32
    return %c0_i32, %c0_i32_0 : i32, i32
  }
  func.func @transform_18(%arg0: i32) -> (i32, i32) {
    %c0_i32 = arith.constant 0 : i32
    %c0_i32_0 = arith.constant 0 : i32
    %c0_i32_1 = arith.constant 0 : i32
    return %c0_i32, %c0_i32_0 : i32, i32
  }
  func.func @transform_19(%arg0: i32) -> (i32, i32, i32, i32) {
    %c0_i32 = arith.constant 0 : i32
    %c0_i32_0 = arith.constant 0 : i32
    %c0_i32_1 = arith.constant 0 : i32
    %c0_i32_2 = arith.constant 0 : i32
    return %arg0, %c0_i32, %c0_i32_0, %c0_i32_1 : i32, i32, i32, i32
  }
}

</mosaic_0001>

<llo_original>
// kernel: tpu_custom_call.1
$region0: #{tpu_custom_call.1}
  #allocation0 [shape = 'u32[]', space=smem, size = 0x4, offset = 0x4, fixed_abs, tag = 'smem constant byte address 0x4 - core index']
  #allocation1 [shape = 'u32[144,128]{1,0:T(1,128)}', space=vmem, size = 0x12000, scoped, tag = 'internal scratch']
  #allocation2 [shape = 'bf16[18,18,8]{2,1,0:T(8,128)(2,1)}', space=vmem, size = 0x1b000, scoped, tag = 'scratch operand']
  %s0 = inlined_call_operand.vmem [shape: f32[2,16,16,8], index: 0, kind: input, shape index: {}]
  %s1 = inlined_call_operand.vmem [shape: f32[1,8], index: 1, kind: input, shape index: {}]
  %s2 = inlined_call_operand.vmem [shape: f32[1,8], index: 2, kind: input, shape index: {}]
  %s3 = inlined_call_operand.vmem [shape: f32[8,8], index: 3, kind: input, shape index: {}]
  %s4 = inlined_call_operand.vmem [shape: f32[8,8], index: 4, kind: input, shape index: {}]
  %s5 = inlined_call_operand.vmem [shape: bf16[8,8], index: 5, kind: input, shape index: {}]
  %s6 = inlined_call_operand.vmem [shape: f32[1,8], index: 6, kind: input, shape index: {}]
  %s7 = inlined_call_operand.vmem [shape: f32[1,8], index: 7, kind: input, shape index: {}]
  %s8 = inlined_call_operand.vmem [shape: f32[8,8], index: 8, kind: input, shape index: {}]
  %s9 = inlined_call_operand.vmem [shape: f32[8,8], index: 9, kind: input, shape index: {}]
  %s10 = inlined_call_operand.vmem [shape: bf16[72,8], index: 10, kind: input, shape index: {}]
  %s11 = inlined_call_operand.vmem [shape: f32[1,8], index: 11, kind: input, shape index: {}]
  %s12 = inlined_call_operand.vmem [shape: f32[1,8], index: 12, kind: input, shape index: {}]
  %s13 = inlined_call_operand.vmem [shape: bf16[8,32], index: 13, kind: input, shape index: {}]
  %s14 = inlined_call_operand.vmem [shape: bf16[8,32], index: 14, kind: input, shape index: {}]
  %s15 = inlined_call_operand.vmem [shape: f32[1,32], index: 15, kind: input, shape index: {}]
  %s16 = inlined_call_operand.vmem [shape: f32[1,32], index: 16, kind: input, shape index: {}]
  %s17 = inlined_call_operand.vmem [shape: f32[32,32], index: 17, kind: input, shape index: {}]
  %s18 = inlined_call_operand.vmem [shape: f32[32,32], index: 18, kind: input, shape index: {}]
  %s19 = inlined_call_operand.hbm [shape: f32[2,16,16,32], index: 19, kind: output, shape index: {}]
  %s20 = sld [smem:[#allocation0]]
  $region109: #{tpu_custom_call.1} parent=0
    _
  %s22 = ssub.s32 1, %s20
  %s23 = scalar_select 0, %s22, %s20
  $region1: #{tpu_custom_call.1} parent=0
    #allocation3 [shape = 'u8[262144]{0}', space=vmem, size = 0x40000, scoped, tag = 'output window, operand 0']
    #allocation4 [shape = 's32[2]{0}', space=sflag, size = 0x8, scoped, tag = 'scoped memory for tpu_custom_call.1']
    %24 = vsyncpa [#allocation4], 0
    %s25 = scalar_lea.sflag [#allocation4], 1
    %26 = vsyncpa %s25, 0
    loop: start=0, step=1, limit=4
    $region2: #{tpu_custom_call.1} parent=1 // loop_pre_header
      _
    $region3: #{tpu_custom_call.1} parent=1 // loop_header
      %s28 = sphi 0, %s32
      %p29 = scmp.ge.s32.totalorder %s28, 4
      %s38 = sphi 0, %s40
      %s41 = sphi 0, %s38
      %s42 = sphi 0, %s41
      %s58 = sphi 0, %s42
      %s62 = sphi 0, %s62
      %s64 = sphi 0, %s62
      %s65 = sphi 0, %s64
      %s79 = sphi 0, %s65
      %s83 = sphi 0, %s83
      %s85 = sphi 0, %s83
      %s86 = sphi 0, %s85
      %s100 = sphi 0, %s86
      %s104 = sphi 0, %s104
      %s106 = sphi 0, %s104
      %s107 = sphi 0, %s106
      %s121 = sphi 0, %s107
      %s125 = sphi 0, %s125
      %s127 = sphi 0, %s125
      %s128 = sphi 0, %s127
      %s142 = sphi 0, %s128
      %s146 = sphi 0, %s146
      %s148 = sphi 0, %s146
      %s149 = sphi 0, %s148
      %s163 = sphi 0, %s149
      %s167 = sphi 0, %s167
      %s169 = sphi 0, %s167
      %s170 = sphi 0, %s169
      %s184 = sphi 0, %s170
      %s188 = sphi 0, %s188
      %s190 = sphi 0, %s188
      %s191 = sphi 0, %s190
      %s205 = sphi 0, %s191
      %s209 = sphi 0, %s209
      %s211 = sphi 0, %s209
      %s212 = sphi 0, %s211
      %s226 = sphi 0, %s212
      %s230 = sphi 0, %s230
      %s232 = sphi 0, %s230
      %s233 = sphi 0, %s232
      %s247 = sphi 0, %s233
      %s251 = sphi 0, %s251
      %s253 = sphi 0, %s251
      %s254 = sphi 0, %s253
      %s268 = sphi 0, %s254
      %s272 = sphi 0, %s272
      %s274 = sphi 0, %s272
      %s275 = sphi 0, %s274
      %s289 = sphi 0, %s275
      %s293 = sphi 0, %s293
      %s295 = sphi 0, %s293
      %s296 = sphi 0, %s295
      %s310 = sphi 0, %s296
      %s314 = sphi 0, %s314
      %s316 = sphi 0, %s314
      %s317 = sphi 0, %s316
      %s331 = sphi 0, %s317
      %s335 = sphi 0, %s335
      %s337 = sphi 0, %s335
      %s338 = sphi 0, %s337
      %s352 = sphi 0, %s338
      %s356 = sphi 0, %s356
      %s358 = sphi 0, %s356
      %s359 = sphi 0, %s358
      %s373 = sphi 0, %s359
      %s377 = sphi 0, %s377
      %s379 = sphi 0, %s377
      %s380 = sphi 0, %s379
      %s394 = sphi 0, %s380
      %s398 = sphi 0, %s398
      %s400 = sphi 0, %s398
      %s401 = sphi 0, %s400
      %s415 = sphi 0, %s401
      %s419 = sphi 0, %s419
      %s421 = sphi 0, %s419
      %s422 = sphi 0, %s421
      %s436 = sphi 0, %s422
      %s442 = sphi 0, %s444
      %s445 = sphi 0, %s442
      %s446 = sphi 0, %s445
      %s462 = sphi 0, %s446
    $region4: #{tpu_custom_call.1} parent=1 // loop_header_branch
      %31 = sbr.rel (%p29) target = $region8
    $region5: #{tpu_custom_call.1} parent=1 // loop_body
      %s33 = ssub.s32 %s28, 1
      %s34 = ssub.s32 %s28, 2
      %s35 = sadd.s32 %s28, 1
      %s36 = ssub.s32 %s28, %s35
      %p37 = scmp.eq.s32.totalorder %s36, 0
      %s39 = sadd.s32 %s38, 1
      %s40 = scalar_select %p37, %s38, %s39
      %p43 = pneg %p37
      %p44 = scmp.eq.s32.totalorder %s28, 1
      %p45 = por %p43, %p44
      %p46 = scmp.ne.s32.totalorder %s38, %s41
      %p47 = scmp.eq.s32.totalorder %s28, 0
      %p48 = por %p46, %p47
      %p49 = scmp.ne.s32.totalorder %s38, %s41
      %p50 = scmp.eq.s32.totalorder %s33, 1
      %p51 = por %p49, %p50
      %p52 = scmp.ne.s32.totalorder %s41, %s42
      %p53 = scmp.eq.s32.totalorder %s33, 0
      %p54 = por %p52, %p53
      %p55 = scmp.ne.s32.totalorder %s41, %s42
      %p56 = scmp.eq.s32.totalorder %s34, 1
      %p57 = por %p55, %p56
      %p59 = scmp.ne.s32.totalorder %s42, %s58
      %p60 = scmp.eq.s32.totalorder %s34, 0
      %p61 = por %p59, %p60
      %s63 = sadd.s32 %s62, 1
      %p66 = scmp.eq.s32.totalorder %s28, 1
      %p67 = scmp.ne.s32.totalorder %s62, %s64
      %p68 = scmp.eq.s32.totalorder %s28, 0
      %p69 = por %p67, %p68
      %p70 = scmp.ne.s32.totalorder %s62, %s64
      %p71 = scmp.eq.s32.totalorder %s33, 1
      %p72 = por %p70, %p71
      %p73 = scmp.ne.s32.totalorder %s64, %s65
      %p74 = scmp.eq.s32.totalorder %s33, 0
      %p75 = por %p73, %p74
      %p76 = scmp.ne.s32.totalorder %s64, %s65
      %p77 = scmp.eq.s32.totalorder %s34, 1
      %p78 = por %p76, %p77
      %p80 = scmp.ne.s32.totalorder %s65, %s79
      %p81 = scmp.eq.s32.totalorder %s34, 0
      %p82 = por %p80, %p81
      %s84 = sadd.s32 %s83, 1
      %p87 = scmp.eq.s32.totalorder %s28, 1
      %p88 = scmp.ne.s32.totalorder %s83, %s85
      %p89 = scmp.eq.s32.totalorder %s28, 0
      %p90 = por %p88, %p89
      %p91 = scmp.ne.s32.totalorder %s83, %s85
      %p92 = scmp.eq.s32.totalorder %s33, 1
      %p93 = por %p91, %p92
      %p94 = scmp.ne.s32.totalorder %s85, %s86
      %p95 = scmp.eq.s32.totalorder %s33, 0
      %p96 = por %p94, %p95
      %p97 = scmp.ne.s32.totalorder %s85, %s86
      %p98 = scmp.eq.s32.totalorder %s34, 1
      %p99 = por %p97, %p98
      %p101 = scmp.ne.s32.totalorder %s86, %s100
      %p102 = scmp.eq.s32.totalorder %s34, 0
      %p103 = por %p101, %p102
      %s105 = sadd.s32 %s104, 1
      %p108 = scmp.eq.s32.totalorder %s28, 1
      %p109 = scmp.ne.s32.totalorder %s104, %s106
      %p110 = scmp.eq.s32.totalorder %s28, 0
      %p111 = por %p109, %p110
      %p112 = scmp.ne.s32.totalorder %s104, %s106
      %p113 = scmp.eq.s32.totalorder %s33, 1
      %p114 = por %p112, %p113
      %p115 = scmp.ne.s32.totalorder %s106, %s107
      %p116 = scmp.eq.s32.totalorder %s33, 0
      %p117 = por %p115, %p116
      %p118 = scmp.ne.s32.totalorder %s106, %s107
      %p119 = scmp.eq.s32.totalorder %s34, 1
      %p120 = por %p118, %p119
      %p122 = scmp.ne.s32.totalorder %s107, %s121
      %p123 = scmp.eq.s32.totalorder %s34, 0
      %p124 = por %p122, %p123
      %s126 = sadd.s32 %s125, 1
      %p129 = scmp.eq.s32.totalorder %s28, 1
      %p130 = scmp.ne.s32.totalorder %s125, %s127
      %p131 = scmp.eq.s32.totalorder %s28, 0
      %p132 = por %p130, %p131
      %p133 = scmp.ne.s32.totalorder %s125, %s127
      %p134 = scmp.eq.s32.totalorder %s33, 1
      %p135 = por %p133, %p134
      %p136 = scmp.ne.s32.totalorder %s127, %s128
      %p137 = scmp.eq.s32.totalorder %s33, 0
      %p138 = por %p136, %p137
      %p139 = scmp.ne.s32.totalorder %s127, %s128
      %p140 = scmp.eq.s32.totalorder %s34, 1
      %p141 = por %p139, %p140
      %p143 = scmp.ne.s32.totalorder %s128, %s142
      %p144 = scmp.eq.s32.totalorder %s34, 0
      %p145 = por %p143, %p144
      %s147 = sadd.s32 %s146, 1
      %p150 = scmp.eq.s32.totalorder %s28, 1
      %p151 = scmp.ne.s32.totalorder %s146, %s148
      %p152 = scmp.eq.s32.totalorder %s28, 0
      %p153 = por %p151, %p152
      %p154 = scmp.ne.s32.totalorder %s146, %s148
      %p155 = scmp.eq.s32.totalorder %s33, 1
      %p156 = por %p154, %p155
      %p157 = scmp.ne.s32.totalorder %s148, %s149
      %p158 = scmp.eq.s32.totalorder %s33, 0
      %p159 = por %p157, %p158
      %p160 = scmp.ne.s32.totalorder %s148, %s149
      %p161 = scmp.eq.s32.totalorder %s34, 1
      %p162 = por %p160, %p161
      %p164 = scmp.ne.s32.totalorder %s149, %s163
      %p165 = scmp.eq.s32.totalorder %s34, 0
      %p166 = por %p164, %p165
      %s168 = sadd.s32 %s167, 1
      %p171 = scmp.eq.s32.totalorder %s28, 1
      %p172 = scmp.ne.s32.totalorder %s167, %s169
      %p173 = scmp.eq.s32.totalorder %s28, 0
      %p174 = por %p172, %p173
      %p175 = scmp.ne.s32.totalorder %s167, %s169
      %p176 = scmp.eq.s32.totalorder %s33, 1
      %p177 = por %p175, %p176
      %p178 = scmp.ne.s32.totalorder %s169, %s170
      %p179 = scmp.eq.s32.totalorder %s33, 0
      %p180 = por %p178, %p179
      %p181 = scmp.ne.s32.totalorder %s169, %s170
      %p182 = scmp.eq.s32.totalorder %s34, 1
      %p183 = por %p181, %p182
      %p185 = scmp.ne.s32.totalorder %s170, %s184
      %p186 = scmp.eq.s32.totalorder %s34, 0
      %p187 = por %p185, %p186
      %s189 = sadd.s32 %s188, 1
      %p192 = scmp.eq.s32.totalorder %s28, 1
      %p193 = scmp.ne.s32.totalorder %s188, %s190
      %p194 = scmp.eq.s32.totalorder %s28, 0
      %p195 = por %p193, %p194
      %p196 = scmp.ne.s32.totalorder %s188, %s190
      %p197 = scmp.eq.s32.totalorder %s33, 1
      %p198 = por %p196, %p197
      %p199 = scmp.ne.s32.totalorder %s190, %s191
      %p200 = scmp.eq.s32.totalorder %s33, 0
      %p201 = por %p199, %p200
      %p202 = scmp.ne.s32.totalorder %s190, %s191
      %p203 = scmp.eq.s32.totalorder %s34, 1
      %p204 = por %p202, %p203
      %p206 = scmp.ne.s32.totalorder %s191, %s205
      %p207 = scmp.eq.s32.totalorder %s34, 0
      %p208 = por %p206, %p207
      %s210 = sadd.s32 %s209, 1
      %p213 = scmp.eq.s32.totalorder %s28, 1
      %p214 = scmp.ne.s32.totalorder %s209, %s211
      %p215 = scmp.eq.s32.totalorder %s28, 0
      %p216 = por %p214, %p215
      %p217 = scmp.ne.s32.totalorder %s209, %s211
      %p218 = scmp.eq.s32.totalorder %s33, 1
      %p219 = por %p217, %p218
      %p220 = scmp.ne.s32.totalorder %s211, %s212
      %p221 = scmp.eq.s32.totalorder %s33, 0
      %p222 = por %p220, %p221
      %p223 = scmp.ne.s32.totalorder %s211, %s212
      %p224 = scmp.eq.s32.totalorder %s34, 1
      %p225 = por %p223, %p224
      %p227 = scmp.ne.s32.totalorder %s212, %s226
      %p228 = scmp.eq.s32.totalorder %s34, 0
      %p229 = por %p227, %p228
      %s231 = sadd.s32 %s230, 1
      %p234 = scmp.eq.s32.totalorder %s28, 1
      %p235 = scmp.ne.s32.totalorder %s230, %s232
      %p236 = scmp.eq.s32.totalorder %s28, 0
      %p237 = por %p235, %p236
      %p238 = scmp.ne.s32.totalorder %s230, %s232
      %p239 = scmp.eq.s32.totalorder %s33, 1
      %p240 = por %p238, %p239
      %p241 = scmp.ne.s32.totalorder %s232, %s233
      %p242 = scmp.eq.s32.totalorder %s33, 0
      %p243 = por %p241, %p242
      %p244 = scmp.ne.s32.totalorder %s232, %s233
      %p245 = scmp.eq.s32.totalorder %s34, 1
      %p246 = por %p244, %p245
      %p248 = scmp.ne.s32.totalorder %s233, %s247
      %p249 = scmp.eq.s32.totalorder %s34, 0
      %p250 = por %p248, %p249
      %s252 = sadd.s32 %s251, 1
      %p255 = scmp.eq.s32.totalorder %s28, 1
      %p256 = scmp.ne.s32.totalorder %s251, %s253
      %p257 = scmp.eq.s32.totalorder %s28, 0
      %p258 = por %p256, %p257
      %p259 = scmp.ne.s32.totalorder %s251, %s253
      %p260 = scmp.eq.s32.totalorder %s33, 1
      %p261 = por %p259, %p260
      %p262 = scmp.ne.s32.totalorder %s253, %s254
      %p263 = scmp.eq.s32.totalorder %s33, 0
      %p264 = por %p262, %p263
      %p265 = scmp.ne.s32.totalorder %s253, %s254
      %p266 = scmp.eq.s32.totalorder %s34, 1
      %p267 = por %p265, %p266
      %p269 = scmp.ne.s32.totalorder %s254, %s268
      %p270 = scmp.eq.s32.totalorder %s34, 0
      %p271 = por %p269, %p270
      %s273 = sadd.s32 %s272, 1
      %p276 = scmp.eq.s32.totalorder %s28, 1
      %p277 = scmp.ne.s32.totalorder %s272, %s274
      %p278 = scmp.eq.s32.totalorder %s28, 0
      %p279 = por %p277, %p278
      %p280 = scmp.ne.s32.totalorder %s272, %s274
      %p281 = scmp.eq.s32.totalorder %s33, 1
      %p282 = por %p280, %p281
      %p283 = scmp.ne.s32.totalorder %s274, %s275
      %p284 = scmp.eq.s32.totalorder %s33, 0
      %p285 = por %p283, %p284
      %p286 = scmp.ne.s32.totalorder %s274, %s275
      %p287 = scmp.eq.s32.totalorder %s34, 1
      %p288 = por %p286, %p287
      %p290 = scmp.ne.s32.totalorder %s275, %s289
      %p291 = scmp.eq.s32.totalorder %s34, 0
      %p292 = por %p290, %p291
      %s294 = sadd.s32 %s293, 1
      %p297 = scmp.eq.s32.totalorder %s28, 1
      %p298 = scmp.ne.s32.totalorder %s293, %s295
      %p299 = scmp.eq.s32.totalorder %s28, 0
      %p300 = por %p298, %p299
      %p301 = scmp.ne.s32.totalorder %s293, %s295
      %p302 = scmp.eq.s32.totalorder %s33, 1
      %p303 = por %p301, %p302
      %p304 = scmp.ne.s32.totalorder %s295, %s296
      %p305 = scmp.eq.s32.totalorder %s33, 0
      %p306 = por %p304, %p305
      %p307 = scmp.ne.s32.totalorder %s295, %s296
      %p308 = scmp.eq.s32.totalorder %s34, 1
      %p309 = por %p307, %p308
      %p311 = scmp.ne.s32.totalorder %s296, %s310
      %p312 = scmp.eq.s32.totalorder %s34, 0
      %p313 = por %p311, %p312
      %s315 = sadd.s32 %s314, 1
      %p318 = scmp.eq.s32.totalorder %s28, 1
      %p319 = scmp.ne.s32.totalorder %s314, %s316
      %p320 = scmp.eq.s32.totalorder %s28, 0
      %p321 = por %p319, %p320
      %p322 = scmp.ne.s32.totalorder %s314, %s316
      %p323 = scmp.eq.s32.totalorder %s33, 1
      %p324 = por %p322, %p323
      %p325 = scmp.ne.s32.totalorder %s316, %s317
      %p326 = scmp.eq.s32.totalorder %s33, 0
      %p327 = por %p325, %p326
      %p328 = scmp.ne.s32.totalorder %s316, %s317
      %p329 = scmp.eq.s32.totalorder %s34, 1
      %p330 = por %p328, %p329
      %p332 = scmp.ne.s32.totalorder %s317, %s331
      %p333 = scmp.eq.s32.totalorder %s34, 0
      %p334 = por %p332, %p333
      %s336 = sadd.s32 %s335, 1
      %p339 = scmp.eq.s32.totalorder %s28, 1
      %p340 = scmp.ne.s32.totalorder %s335, %s337
      %p341 = scmp.eq.s32.totalorder %s28, 0
      %p342 = por %p340, %p341
      %p343 = scmp.ne.s32.totalorder %s335, %s337
      %p344 = scmp.eq.s32.totalorder %s33, 1
      %p345 = por %p343, %p344
      %p346 = scmp.ne.s32.totalorder %s337, %s338
      %p347 = scmp.eq.s32.totalorder %s33, 0
      %p348 = por %p346, %p347
      %p349 = scmp.ne.s32.totalorder %s337, %s338
      %p350 = scmp.eq.s32.totalorder %s34, 1
      %p351 = por %p349, %p350
      %p353 = scmp.ne.s32.totalorder %s338, %s352
      %p354 = scmp.eq.s32.totalorder %s34, 0
      %p355 = por %p353, %p354
      %s357 = sadd.s32 %s356, 1
      %p360 = scmp.eq.s32.totalorder %s28, 1
      %p361 = scmp.ne.s32.totalorder %s356, %s358
      %p362 = scmp.eq.s32.totalorder %s28, 0
      %p363 = por %p361, %p362
      %p364 = scmp.ne.s32.totalorder %s356, %s358
      %p365 = scmp.eq.s32.totalorder %s33, 1
      %p366 = por %p364, %p365
      %p367 = scmp.ne.s32.totalorder %s358, %s359
      %p368 = scmp.eq.s32.totalorder %s33, 0
      %p369 = por %p367, %p368
      %p370 = scmp.ne.s32.totalorder %s358, %s359
      %p371 = scmp.eq.s32.totalorder %s34, 1
      %p372 = por %p370, %p371
      %p374 = scmp.ne.s32.totalorder %s359, %s373
      %p375 = scmp.eq.s32.totalorder %s34, 0
      %p376 = por %p374, %p375
      %s378 = sadd.s32 %s377, 1
      %p381 = scmp.eq.s32.totalorder %s28, 1
      %p382 = scmp.ne.s32.totalorder %s377, %s379
      %p383 = scmp.eq.s32.totalorder %s28, 0
      %p384 = por %p382, %p383
      %p385 = scmp.ne.s32.totalorder %s377, %s379
      %p386 = scmp.eq.s32.totalorder %s33, 1
      %p387 = por %p385, %p386
      %p388 = scmp.ne.s32.totalorder %s379, %s380
      %p389 = scmp.eq.s32.totalorder %s33, 0
      %p390 = por %p388, %p389
      %p391 = scmp.ne.s32.totalorder %s379, %s380
      %p392 = scmp.eq.s32.totalorder %s34, 1
      %p393 = por %p391, %p392
      %p395 = scmp.ne.s32.totalorder %s380, %s394
      %p396 = scmp.eq.s32.totalorder %s34, 0
      %p397 = por %p395, %p396
      %s399 = sadd.s32 %s398, 1
      %p402 = scmp.eq.s32.totalorder %s28, 1
      %p403 = scmp.ne.s32.totalorder %s398, %s400
      %p404 = scmp.eq.s32.totalorder %s28, 0
      %p405 = por %p403, %p404
      %p406 = scmp.ne.s32.totalorder %s398, %s400
      %p407 = scmp.eq.s32.totalorder %s33, 1
      %p408 = por %p406, %p407
      %p409 = scmp.ne.s32.totalorder %s400, %s401
      %p410 = scmp.eq.s32.totalorder %s33, 0
      %p411 = por %p409, %p410
      %p412 = scmp.ne.s32.totalorder %s400, %s401
      %p413 = scmp.eq.s32.totalorder %s34, 1
      %p414 = por %p412, %p413
      %p416 = scmp.ne.s32.totalorder %s401, %s415
      %p417 = scmp.eq.s32.totalorder %s34, 0
      %p418 = por %p416, %p417
      %s420 = sadd.s32 %s419, 1
      %p423 = scmp.eq.s32.totalorder %s28, 1
      %p424 = scmp.ne.s32.totalorder %s419, %s421
      %p425 = scmp.eq.s32.totalorder %s28, 0
      %p426 = por %p424, %p425
      %p427 = scmp.ne.s32.totalorder %s419, %s421
      %p428 = scmp.eq.s32.totalorder %s33, 1
      %p429 = por %p427, %p428
      %p430 = scmp.ne.s32.totalorder %s421, %s422
      %p431 = scmp.eq.s32.totalorder %s33, 0
      %p432 = por %p430, %p431
      %p433 = scmp.ne.s32.totalorder %s421, %s422
      %p434 = scmp.eq.s32.totalorder %s34, 1
      %p435 = por %p433, %p434
      %p437 = scmp.ne.s32.totalorder %s422, %s436
      %p438 = scmp.eq.s32.totalorder %s34, 0
      %p439 = por %p437, %p438
      %s440 = ssub.s32 %s28, %s35
      %p441 = scmp.eq.s32.totalorder %s440, 0
      %s443 = sadd.s32 %s442, 1
      %s444 = scalar_select %p441, %s442, %s443
      %p447 = pneg %p441
      %p448 = scmp.eq.s32.totalorder %s28, 1
      %p449 = por %p447, %p448
      %p450 = scmp.ne.s32.totalorder %s442, %s445
      %p451 = scmp.eq.s32.totalorder %s28, 0
      %p452 = por %p450, %p451
      %p453 = scmp.ne.s32.totalorder %s442, %s445
      %p454 = scmp.eq.s32.totalorder %s33, 1
      %p455 = por %p453, %p454
      %p456 = scmp.ne.s32.totalorder %s445, %s446
      %p457 = scmp.eq.s32.totalorder %s33, 0
      %p458 = por %p456, %p457
      %p459 = scmp.ne.s32.totalorder %s445, %s446
      %p460 = scmp.eq.s32.totalorder %s34, 1
      %p461 = por %p459, %p460
      %p463 = scmp.ne.s32.totalorder %s446, %s462
      %p464 = scmp.eq.s32.totalorder %s34, 0
      %p465 = por %p463, %p464
      %p466 = scmp.le.s32.totalorder 1, %s28
      %p467 = scmp.lt.s32.totalorder %s28, 3
      %p468 = pnand %p466, %p467
      %p469 = pneg %p468
      // Predicated region
      $region9: #{tpu_custom_call.1} parent=5 // pred_check
        _
      $region10: #{tpu_custom_call.1} parent=5 // pred_check_branch
        %471 = sbr.rel (%p468) target = $region12
      $region11: #{tpu_custom_call.1} parent=5 // pred_region
        %s472 = ssub.s32 %s28, 1
        // Predicated region
        $region13: #{tpu_custom_call.1} parent=11 // pred_check
          %p473 = pneg %p75
        $region14: #{tpu_custom_call.1} parent=11 // pred_check_branch
          %475 = sbr.rel (%p473) target = $region16
        $region15: #{tpu_custom_call.1} parent=11 // pred_region
          _
        $region16: #{tpu_custom_call.1} parent=11 // pred_fallthru
          _
        // Predicated region
        $region17: #{tpu_custom_call.1} parent=11 // pred_check
          %p476 = pneg %p96
        $region18: #{tpu_custom_call.1} parent=11 // pred_check_branch
          %478 = sbr.rel (%p476) target = $region20
        $region19: #{tpu_custom_call.1} parent=11 // pred_region
          _
        $region20: #{tpu_custom_call.1} parent=11 // pred_fallthru
          _
        // Predicated region
        $region21: #{tpu_custom_call.1} parent=11 // pred_check
          %p479 = pneg %p117
        $region22: #{tpu_custom_call.1} parent=11 // pred_check_branch
          %481 = sbr.rel (%p479) target = $region24
        $region23: #{tpu_custom_call.1} parent=11 // pred_region
          _
        $region24: #{tpu_custom_call.1} parent=11 // pred_fallthru
          _
        // Predicated region
        $region25: #{tpu_custom_call.1} parent=11 // pred_check
          %p482 = pneg %p138
        $region26: #{tpu_custom_call.1} parent=11 // pred_check_branch
          %484 = sbr.rel (%p482) target = $region28
        $region27: #{tpu_custom_call.1} parent=11 // pred_region
          _
        $region28: #{tpu_custom_call.1} parent=11 // pred_fallthru
          _
        // Predicated region
        $region29: #{tpu_custom_call.1} parent=11 // pred_check
          %p485 = pneg %p159
        $region30: #{tpu_custom_call.1} parent=11 // pred_check_branch
          %487 = sbr.rel (%p485) target = $region32
        $region31: #{tpu_custom_call.1} parent=11 // pred_region
          _
        $region32: #{tpu_custom_call.1} parent=11 // pred_fallthru
          _
        // Predicated region
        $region33: #{tpu_custom_call.1} parent=11 // pred_check
          %p488 = pneg %p180
        $region34: #{tpu_custom_call.1} parent=11 // pred_check_branch
          %490 = sbr.rel (%p488) target = $region36
        $region35: #{tpu_custom_call.1} parent=11 // pred_region
          _
        $region36: #{tpu_custom_call.1} parent=11 // pred_fallthru
          _
        // Predicated region
        $region37: #{tpu_custom_call.1} parent=11 // pred_check
          %p491 = pneg %p201
        $region38: #{tpu_custom_call.1} parent=11 // pred_check_branch
          %493 = sbr.rel (%p491) target = $region40
        $region39: #{tpu_custom_call.1} parent=11 // pred_region
          _
        $region40: #{tpu_custom_call.1} parent=11 // pred_fallthru
          _
        // Predicated region
        $region41: #{tpu_custom_call.1} parent=11 // pred_check
          %p494 = pneg %p222
        $region42: #{tpu_custom_call.1} parent=11 // pred_check_branch
          %496 = sbr.rel (%p494) target = $region44
        $region43: #{tpu_custom_call.1} parent=11 // pred_region
          _
        $region44: #{tpu_custom_call.1} parent=11 // pred_fallthru
          _
        // Predicated region
        $region45: #{tpu_custom_call.1} parent=11 // pred_check
          %p497 = pneg %p243
        $region46: #{tpu_custom_call.1} parent=11 // pred_check_branch
          %499 = sbr.rel (%p497) target = $region48
        $region47: #{tpu_custom_call.1} parent=11 // pred_region
          _
        $region48: #{tpu_custom_call.1} parent=11 // pred_fallthru
          _
        // Predicated region
        $region49: #{tpu_custom_call.1} parent=11 // pred_check
          %p500 = pneg %p264
        $region50: #{tpu_custom_call.1} parent=11 // pred_check_branch
          %502 = sbr.rel (%p500) target = $region52
        $region51: #{tpu_custom_call.1} parent=11 // pred_region
          _
        $region52: #{tpu_custom_call.1} parent=11 // pred_fallthru
          _
        // Predicated region
        $region53: #{tpu_custom_call.1} parent=11 // pred_check
          %p503 = pneg %p285
        $region54: #{tpu_custom_call.1} parent=11 // pred_check_branch
          %505 = sbr.rel (%p503) target = $region56
        $region55: #{tpu_custom_call.1} parent=11 // pred_region
          _
        $region56: #{tpu_custom_call.1} parent=11 // pred_fallthru
          _
        // Predicated region
        $region57: #{tpu_custom_call.1} parent=11 // pred_check
          %p506 = pneg %p306
        $region58: #{tpu_custom_call.1} parent=11 // pred_check_branch
          %508 = sbr.rel (%p506) target = $region60
        $region59: #{tpu_custom_call.1} parent=11 // pred_region
          _
        $region60: #{tpu_custom_call.1} parent=11 // pred_fallthru
          _
        // Predicated region
        $region61: #{tpu_custom_call.1} parent=11 // pred_check
          %p509 = pneg %p327
        $region62: #{tpu_custom_call.1} parent=11 // pred_check_branch
          %511 = sbr.rel (%p509) target = $region64
        $region63: #{tpu_custom_call.1} parent=11 // pred_region
          _
        $region64: #{tpu_custom_call.1} parent=11 // pred_fallthru
          _
        // Predicated region
        $region65: #{tpu_custom_call.1} parent=11 // pred_check
          %p512 = pneg %p348
        $region66: #{tpu_custom_call.1} parent=11 // pred_check_branch
          %514 = sbr.rel (%p512) target = $region68
        $region67: #{tpu_custom_call.1} parent=11 // pred_region
          _
        $region68: #{tpu_custom_call.1} parent=11 // pred_fallthru
          _
        // Predicated region
        $region69: #{tpu_custom_call.1} parent=11 // pred_check
          %p515 = pneg %p369
        $region70: #{tpu_custom_call.1} parent=11 // pred_check_branch
          %517 = sbr.rel (%p515) target = $region72
        $region71: #{tpu_custom_call.1} parent=11 // pred_region
          _
        $region72: #{tpu_custom_call.1} parent=11 // pred_fallthru
          _
        // Predicated region
        $region73: #{tpu_custom_call.1} parent=11 // pred_check
          %p518 = pneg %p390
        $region74: #{tpu_custom_call.1} parent=11 // pred_check_branch
          %520 = sbr.rel (%p518) target = $region76
        $region75: #{tpu_custom_call.1} parent=11 // pred_region
          _
        $region76: #{tpu_custom_call.1} parent=11 // pred_fallthru
          _
        // Predicated region
        $region77: #{tpu_custom_call.1} parent=11 // pred_check
          %p521 = pneg %p411
        $region78: #{tpu_custom_call.1} parent=11 // pred_check_branch
          %523 = sbr.rel (%p521) target = $region80
        $region79: #{tpu_custom_call.1} parent=11 // pred_region
          _
        $region80: #{tpu_custom_call.1} parent=11 // pred_fallthru
          _
        // Predicated region
        $region81: #{tpu_custom_call.1} parent=11 // pred_check
          %p524 = pneg %p432
        $region82: #{tpu_custom_call.1} parent=11 // pred_check_branch
          %526 = sbr.rel (%p524) target = $region84
        $region83: #{tpu_custom_call.1} parent=11 // pred_region
          _
        $region84: #{tpu_custom_call.1} parent=11 // pred_fallthru
          _
      $region12: #{tpu_custom_call.1} parent=5 // pred_fallthru
        _
      %p527 = scmp.lt.s32.totalorder %s28, 2
      // Predicated region
      $region85: #{tpu_custom_call.1} parent=5 // pred_check
        %p528 = pneg %p527
      $region86: #{tpu_custom_call.1} parent=5 // pred_check_branch
        %530 = sbr.rel (%p528) target = $region88
      $region87: #{tpu_custom_call.1} parent=5 // pred_region
        // Predicated region
        $region89: #{tpu_custom_call.1} parent=87 // pred_check
          %p531 = pneg %p48
        $region90: #{tpu_custom_call.1} parent=87 // pred_check_branch
          %533 = sbr.rel (%p531) target = $region92
        $region91: #{tpu_custom_call.1} parent=87 // pred_region
          %p534 = scmp.lt.s32.totalorder %s28, 1
          %s535 = scalar_select %p534, %s28, 1
          %s536 = smul.addr %s535, 32
          %s537 = smul.addr %s536, 8
          %s538 = scalar_lea.vmem %s0, %s537
        $region92: #{tpu_custom_call.1} parent=87 // pred_fallthru
          _
      $region88: #{tpu_custom_call.1} parent=5 // pred_fallthru
        _
      %p539 = scmp.le.s32.totalorder 1, %s28
      %p540 = scmp.lt.s32.totalorder %s28, 3
      %p541 = pnand %p539, %p540
      %p542 = pneg %p541
      // Predicated region
      $region93: #{tpu_custom_call.1} parent=5 // pred_check
        _
      $region94: #{tpu_custom_call.1} parent=5 // pred_check_branch
        %544 = sbr.rel (%p541) target = $region96
      $region95: #{tpu_custom_call.1} parent=5 // pred_region
        %s545 = ssub.s32 %s28, 1
        %p546 = scmp.lt.s32.totalorder %s33, 1
        %s547 = scalar_select %p546, %s33, 1
        %s548 = smul.addr %s547, 32
        %s549 = smul.addr %s548, 8
        %s550 = scalar_lea.vmem %s0, %s549
        %p551 = pneg %p54
        %p552 = pneg %p51
        %p553 = pneg %p75
        %p554 = pneg %p72
        %p555 = pneg %p96
        %p556 = pneg %p93
        %p557 = pneg %p117
        %p558 = pneg %p114
        %p559 = pneg %p138
        %p560 = pneg %p135
        %p561 = pneg %p159
        %p562 = pneg %p156
        %p563 = pneg %p180
        %p564 = pneg %p177
        %p565 = pneg %p201
        %p566 = pneg %p198
        %p567 = pneg %p222
        %p568 = pneg %p219
        %p569 = pneg %p243
        %p570 = pneg %p240
        %p571 = pneg %p264
        %p572 = pneg %p261
        %p573 = pneg %p285
        %p574 = pneg %p282
        %p575 = pneg %p306
        %p576 = pneg %p303
        %p577 = pneg %p327
        %p578 = pneg %p324
        %p579 = pneg %p348
        %p580 = pneg %p345
        %p581 = pneg %p369
        %p582 = pneg %p366
        %p583 = pneg %p390
        %p584 = pneg %p387
        %p585 = pneg %p411
        %p586 = pneg %p408
        %p587 = pneg %p432
        %p588 = pneg %p429
        %p589 = pneg %p458
        %p590 = pneg %p455
        %s591 = sand.u32 %s445, 1
        %s592 = scalar_lea.sflag [#allocation4], %s591
        %s593 = sand.u32 %s445, 1
        %s594 = smul.addr %s593, 256
        %s595 = scalar_lea.vmem [#allocation3], %s594
        %p596 = scmp.lt.s32.totalorder %s33, 1
        %s597 = scalar_select %p596, %s33, 1
        %s598 = smul.addr %s597, 32
        %s599 = smul.addr %s598, 8
        %s600 = scalar_lea.vmem %s0, %s599
        %v602 = vld [vmem:[%s600] sm:$0xff]
        %v603 = vld [vmem:[%s600 + $0x8] sm:$0xff]
        %v604 = vld [vmem:[%s600 + $0x10] sm:$0xff]
        %v605 = vld [vmem:[%s600 + $0x18] sm:$0xff]
        %v606 = vld [vmem:[%s600 + $0x20] sm:$0xff]
        %v607 = vld [vmem:[%s600 + $0x28] sm:$0xff]
        %v608 = vld [vmem:[%s600 + $0x30] sm:$0xff]
        %v609 = vld [vmem:[%s600 + $0x38] sm:$0xff]
        %v610 = vld [vmem:[%s600 + $0x40] sm:$0xff]
        %v611 = vld [vmem:[%s600 + $0x48] sm:$0xff]
        %v612 = vld [vmem:[%s600 + $0x50] sm:$0xff]
        %v613 = vld [vmem:[%s600 + $0x58] sm:$0xff]
        %v614 = vld [vmem:[%s600 + $0x60] sm:$0xff]
        %v615 = vld [vmem:[%s600 + $0x68] sm:$0xff]
        %v616 = vld [vmem:[%s600 + $0x70] sm:$0xff]
        %v617 = vld [vmem:[%s600 + $0x78] sm:$0xff]
        %v618 = vld [vmem:[%s600 + $0x80] sm:$0xff]
        %v619 = vld [vmem:[%s600 + $0x88] sm:$0xff]
        %v620 = vld [vmem:[%s600 + $0x90] sm:$0xff]
        %v621 = vld [vmem:[%s600 + $0x98] sm:$0xff]
        %v622 = vld [vmem:[%s600 + $0xa0] sm:$0xff]
        %v623 = vld [vmem:[%s600 + $0xa8] sm:$0xff]
        %v624 = vld [vmem:[%s600 + $0xb0] sm:$0xff]
        %v625 = vld [vmem:[%s600 + $0xb8] sm:$0xff]
        %v626 = vld [vmem:[%s600 + $0xc0] sm:$0xff]
        %v627 = vld [vmem:[%s600 + $0xc8] sm:$0xff]
        %v628 = vld [vmem:[%s600 + $0xd0] sm:$0xff]
        %v629 = vld [vmem:[%s600 + $0xd8] sm:$0xff]
        %v630 = vld [vmem:[%s600 + $0xe0] sm:$0xff]
        %v631 = vld [vmem:[%s600 + $0xe8] sm:$0xff]
        %v632 = vld [vmem:[%s600 + $0xf0] sm:$0xff]
        %v633 = vld [vmem:[%s600 + $0xf8] sm:$0xff]
        %v634 = vld [vmem:[%s3] sm:$0xff]
        %v635 = vld [vmem:[%s4] sm:$0xff]
        %v636 = vld [vmem:[%s1] sm:$0x1]
        %v637 = vld [vmem:[%s2] sm:$0x1]
        %vm638 = vcmask 64512
        %v639 = vsel %vm638, %v602, 0.0
        %v640 = vsel %vm638, %v603, 0.0
        %v641 = vadd.f32 %v639, %v640
        %v642 = vsel %vm638, %v604, 0.0
        %v643 = vadd.f32 %v641, %v642
        %v644 = vsel %vm638, %v605, 0.0
        %v645 = vadd.f32 %v643, %v644
        %v646 = vsel %vm638, %v606, 0.0
        %v647 = vadd.f32 %v645, %v646
        %v648 = vsel %vm638, %v607, 0.0
        %v649 = vadd.f32 %v647, %v648
        %v650 = vsel %vm638, %v608, 0.0
        %v651 = vadd.f32 %v649, %v650
        %v652 = vsel %vm638, %v609, 0.0
        %v653 = vadd.f32 %v651, %v652
        %v654 = vsel %vm638, %v610, 0.0
        %v655 = vadd.f32 %v653, %v654
        %v656 = vsel %vm638, %v611, 0.0
        %v657 = vadd.f32 %v655, %v656
        %v658 = vsel %vm638, %v612, 0.0
        %v659 = vadd.f32 %v657, %v658
        %v660 = vsel %vm638, %v613, 0.0
        %v661 = vadd.f32 %v659, %v660
        %v662 = vsel %vm638, %v614, 0.0
        %v663 = vadd.f32 %v661, %v662
        %v664 = vsel %vm638, %v615, 0.0
        %v665 = vadd.f32 %v663, %v664
        %v666 = vsel %vm638, %v616, 0.0
        %v667 = vadd.f32 %v665, %v666
        %v668 = vsel %vm638, %v617, 0.0
        %v669 = vadd.f32 %v667, %v668
        %v670 = vsel %vm638, %v618, 0.0
        %v671 = vadd.f32 %v669, %v670
        %v672 = vsel %vm638, %v619, 0.0
        %v673 = vadd.f32 %v671, %v672
        %v674 = vsel %vm638, %v620, 0.0
        %v675 = vadd.f32 %v673, %v674
        %v676 = vsel %vm638, %v621, 0.0
        %v677 = vadd.f32 %v675, %v676
        %v678 = vsel %vm638, %v622, 0.0
        %v679 = vadd.f32 %v677, %v678
        %v680 = vsel %vm638, %v623, 0.0
        %v681 = vadd.f32 %v679, %v680
        %v682 = vsel %vm638, %v624, 0.0
        %v683 = vadd.f32 %v681, %v682
        %v684 = vsel %vm638, %v625, 0.0
        %v685 = vadd.f32 %v683, %v684
        %v686 = vsel %vm638, %v626, 0.0
        %v687 = vadd.f32 %v685, %v686
        %v688 = vsel %vm638, %v627, 0.0
        %v689 = vadd.f32 %v687, %v688
        %v690 = vsel %vm638, %v628, 0.0
        %v691 = vadd.f32 %v689, %v690
        %v692 = vsel %vm638, %v629, 0.0
        %v693 = vadd.f32 %v691, %v692
        %v694 = vsel %vm638, %v630, 0.0
        %v695 = vadd.f32 %v693, %v694
        %v696 = vsel %vm638, %v631, 0.0
        %v697 = vadd.f32 %v695, %v696
        %v698 = vsel %vm638, %v632, 0.0
        %v699 = vadd.f32 %v697, %v698
        %v700 = vsel %vm638, %v633, 0.0
        %v701 = vadd.f32 %v699, %v700
        %v702 = vrot.slane %v701, 4
        %v703 = vadd.f32 %v701, %v702
        %v704 = vrot.slane %v703, 2
        %v705 = vadd.f32 %v703, %v704
        %v706 = vrot.slane %v705, 1
        %v707 = vadd.f32 %v705, %v706
        %v709 = vsel %vm638, %v707, 0
        %711 = vmatprep.subr.mxu0 0.0
        %712 = vmatpush1.msra.mxu0 %v634
        %713 = vmatprep.subr.mxu0 0.0
        %714 = vmatpush1.msra.mxu0 0.0
        %715 = vmatprep.subr.mxu0 0.0
        %716 = vmatpush1.msra.mxu0 0.0
        %717 = vmatprep.subr.mxu0 0.0
        %718 = vmatpush1.msra.mxu0 0.0
        %719 = vmatprep.subr.mxu0 0.0
        %720 = vmatpush1.msra.mxu0 0.0
        %721 = vmatprep.subr.mxu0 0.0
        %722 = vmatpush1.msra.mxu0 0.0
        %723 = vmatprep.subr.mxu0 0.0
        %724 = vmatpush1.msra.mxu0 0.0
        %725 = vmatprep.subr.mxu0 0.0
        %726 = vmatpush1.msra.mxu0 0.0
        %727 = vmatprep.subr.mxu0 0.0
        %728 = vmatpush1.msra.mxu0 0.0
        %729 = vmatprep.subr.mxu0 0.0
        %730 = vmatpush1.msra.mxu0 0.0
        %731 = vmatprep.subr.mxu0 0.0
        %732 = vmatpush1.msra.mxu0 0.0
        %733 = vmatprep.subr.mxu0 0.0
        %734 = vmatpush1.msra.mxu0 0.0
        %735 = vmatprep.subr.mxu0 0.0
        %736 = vmatpush1.msra.mxu0 0.0
        %737 = vmatprep.subr.mxu0 0.0
        %738 = vmatpush1.msra.mxu0 0.0
        %739 = vmatprep.subr.mxu0 0.0
        %740 = vmatpush1.msra.mxu0 0.0
        %741 = vmatprep.subr.mxu0 0.0
        %742 = vmatpush1.msra.mxu0 0.0
        %743 = vmatprep.subr.mxu0 0.0
        %744 = vmatpush1.msra.mxu0 0.0
        %745 = vmatprep.subr.mxu0 0.0
        %746 = vmatpush1.msra.mxu0 0.0
        %747 = vmatprep.subr.mxu0 0.0
        %748 = vmatpush1.msra.mxu0 0.0
        %749 = vmatprep.subr.mxu0 0.0
        %750 = vmatpush1.msra.mxu0 0.0
        %751 = vmatprep.subr.mxu0 0.0
        %752 = vmatpush1.msra.mxu0 0.0
        %753 = vmatprep.subr.mxu0 0.0
        %754 = vmatpush1.msra.mxu0 0.0
        %755 = vmatprep.subr.mxu0 0.0
        %756 = vmatpush1.msra.mxu0 0.0
        %757 = vmatprep.subr.mxu0 0.0
        %758 = vmatpush1.msra.mxu0 0.0
        %759 = vmatprep.subr.mxu0 0.0
        %760 = vmatpush1.msra.mxu0 0.0
        %761 = vmatprep.subr.mxu0 0.0
        %762 = vmatpush1.msra.mxu0 0.0
        %763 = vmatprep.subr.mxu0 0.0
        %764 = vmatpush1.msra.mxu0 0.0
        %765 = vmatprep.subr.mxu0 0.0
        %766 = vmatpush1.msra.mxu0 0.0
        %767 = vmatprep.subr.mxu0 0.0
        %768 = vmatpush1.msra.mxu0 0.0
        %769 = vmatprep.subr.mxu0 0.0
        %770 = vmatpush1.msra.mxu0 0.0
        %771 = vmatprep.subr.mxu0 0.0
        %772 = vmatpush1.msra.mxu0 0.0
        %773 = vmatprep.subr.mxu0 0.0
        %774 = vmatpush1.msra.mxu0 0.0
        %775 = vmatprep.mubr.f32.mxu0 0.0
        %776 = vmatmul.mubr.f32.gmra.mrb[0].mxu0 %v709
        %v777 = vpop.f32.mrb[0].mxu0
        %v778 = vadd.f32 0.0, %v777
        %v779 = vpop.f32.mrb[0].mxu0
        %780 = vdwg.mxu0
        %v782 = vsel %vm638, %v778, 0
        %784 = vmatprep.subr.mxu0 0.0
        %785 = vmatpush1.msra.mxu0 %v635
        %786 = vmatprep.subr.mxu0 0.0
        %787 = vmatpush1.msra.mxu0 0.0
        %788 = vmatprep.subr.mxu0 0.0
        %789 = vmatpush1.msra.mxu0 0.0
        %790 = vmatprep.subr.mxu0 0.0
        %791 = vmatpush1.msra.mxu0 0.0
        %792 = vmatprep.subr.mxu0 0.0
        %793 = vmatpush1.msra.mxu0 0.0
        %794 = vmatprep.subr.mxu0 0.0
        %795 = vmatpush1.msra.mxu0 0.0
        %796 = vmatprep.subr.mxu0 0.0
        %797 = vmatpush1.msra.mxu0 0.0
        %798 = vmatprep.subr.mxu0 0.0
        %799 = vmatpush1.msra.mxu0 0.0
        %800 = vmatprep.subr.mxu0 0.0
        %801 = vmatpush1.msra.mxu0 0.0
        %802 = vmatprep.subr.mxu0 0.0
        %803 = vmatpush1.msra.mxu0 0.0
        %804 = vmatprep.subr.mxu0 0.0
        %805 = vmatpush1.msra.mxu0 0.0
        %806 = vmatprep.subr.mxu0 0.0
        %807 = vmatpush1.msra.mxu0 0.0
        %808 = vmatprep.subr.mxu0 0.0
        %809 = vmatpush1.msra.mxu0 0.0
        %810 = vmatprep.subr.mxu0 0.0
        %811 = vmatpush1.msra.mxu0 0.0
        %812 = vmatprep.subr.mxu0 0.0
        %813 = vmatpush1.msra.mxu0 0.0
        %814 = vmatprep.subr.mxu0 0.0
        %815 = vmatpush1.msra.mxu0 0.0
        %816 = vmatprep.subr.mxu0 0.0
        %817 = vmatpush1.msra.mxu0 0.0
        %818 = vmatprep.subr.mxu0 0.0
        %819 = vmatpush1.msra.mxu0 0.0
        %820 = vmatprep.subr.mxu0 0.0
        %821 = vmatpush1.msra.mxu0 0.0
        %822 = vmatprep.subr.mxu0 0.0
        %823 = vmatpush1.msra.mxu0 0.0
        %824 = vmatprep.subr.mxu0 0.0
        %825 = vmatpush1.msra.mxu0 0.0
        %826 = vmatprep.subr.mxu0 0.0
        %827 = vmatpush1.msra.mxu0 0.0
        %828 = vmatprep.subr.mxu0 0.0
        %829 = vmatpush1.msra.mxu0 0.0
        %830 = vmatprep.subr.mxu0 0.0
        %831 = vmatpush1.msra.mxu0 0.0
        %832 = vmatprep.subr.mxu0 0.0
        %833 = vmatpush1.msra.mxu0 0.0
        %834 = vmatprep.subr.mxu0 0.0
        %835 = vmatpush1.msra.mxu0 0.0
        %836 = vmatprep.subr.mxu0 0.0
        %837 = vmatpush1.msra.mxu0 0.0
        %838 = vmatprep.subr.mxu0 0.0
        %839 = vmatpush1.msra.mxu0 0.0
        %840 = vmatprep.subr.mxu0 0.0
        %841 = vmatpush1.msra.mxu0 0.0
        %842 = vmatprep.subr.mxu0 0.0
        %843 = vmatpush1.msra.mxu0 0.0
        %844 = vmatprep.subr.mxu0 0.0
        %845 = vmatpush1.msra.mxu0 0.0
        %846 = vmatprep.subr.mxu0 0.0
        %847 = vmatpush1.msra.mxu0 0.0
        %848 = vmatprep.mubr.f32.mxu0 0.0
        %849 = vmatmul.mubr.f32.gmra.mrb[0].mxu0 %v782
        %v850 = vpop.f32.mrb[0].mxu0
        %v851 = vadd.f32 0.0, %v850
        %v852 = vpop.f32.mrb[0].mxu0
        %853 = vdwg.mxu0
        %v854 = vmul.f32 %v851, 0.00390625
        %v855 = vlaneseq
        %v856 = vshrl.u32 %v855, 7
        %v857 = vsub.s32 0, %v856
        %v858 = vrot.slane %v854, %v857
        %v859 = vsub.f32 %v602, %v858
        %v860 = vsub.f32 %v603, %v858
        %v861 = vsub.f32 %v604, %v858
        %v862 = vsub.f32 %v605, %v858
        %v863 = vsub.f32 %v606, %v858
        %v864 = vsub.f32 %v607, %v858
        %v865 = vsub.f32 %v608, %v858
        %v866 = vsub.f32 %v609, %v858
        %v867 = vsub.f32 %v610, %v858
        %v868 = vsub.f32 %v611, %v858
        %v869 = vsub.f32 %v612, %v858
        %v870 = vsub.f32 %v613, %v858
        %v871 = vsub.f32 %v614, %v858
        %v872 = vsub.f32 %v615, %v858
        %v873 = vsub.f32 %v616, %v858
        %v874 = vsub.f32 %v617, %v858
        %v875 = vsub.f32 %v618, %v858
        %v876 = vsub.f32 %v619, %v858
        %v877 = vsub.f32 %v620, %v858
        %v878 = vsub.f32 %v621, %v858
        %v879 = vsub.f32 %v622, %v858
        %v880 = vsub.f32 %v623, %v858
        %v881 = vsub.f32 %v624, %v858
        %v882 = vsub.f32 %v625, %v858
        %v883 = vsub.f32 %v626, %v858
        %v884 = vsub.f32 %v627, %v858
        %v885 = vsub.f32 %v628, %v858
        %v886 = vsub.f32 %v629, %v858
        %v887 = vsub.f32 %v630, %v858
        %v888 = vsub.f32 %v631, %v858
        %v889 = vsub.f32 %v632, %v858
        %v890 = vsub.f32 %v633, %v858
        %v891 = vmul.f32 %v859, %v859
        %v892 = vmul.f32 %v860, %v860
        %v893 = vmul.f32 %v861, %v861
        %v894 = vmul.f32 %v862, %v862
        %v895 = vmul.f32 %v863, %v863
        %v896 = vmul.f32 %v864, %v864
        %v897 = vmul.f32 %v865, %v865
        %v898 = vmul.f32 %v866, %v866
        %v899 = vmul.f32 %v867, %v867
        %v900 = vmul.f32 %v868, %v868
        %v901 = vmul.f32 %v869, %v869
        %v902 = vmul.f32 %v870, %v870
        %v903 = vmul.f32 %v871, %v871
        %v904 = vmul.f32 %v872, %v872
        %v905 = vmul.f32 %v873, %v873
        %v906 = vmul.f32 %v874, %v874
        %v907 = vmul.f32 %v875, %v875
        %v908 = vmul.f32 %v876, %v876
        %v909 = vmul.f32 %v877, %v877
        %v910 = vmul.f32 %v878, %v878
        %v911 = vmul.f32 %v879, %v879
        %v912 = vmul.f32 %v880, %v880
        %v913 = vmul.f32 %v881, %v881
        %v914 = vmul.f32 %v882, %v882
        %v915 = vmul.f32 %v883, %v883
        %v916 = vmul.f32 %v884, %v884
        %v917 = vmul.f32 %v885, %v885
        %v918 = vmul.f32 %v886, %v886
        %v919 = vmul.f32 %v887, %v887
        %v920 = vmul.f32 %v888, %v888
        %v921 = vmul.f32 %v889, %v889
        %v922 = vmul.f32 %v890, %v890
        %v923 = vsel %vm638, %v891, 0.0
        %v924 = vsel %vm638, %v892, 0.0
        %v925 = vadd.f32 %v923, %v924
        %v926 = vsel %vm638, %v893, 0.0
        %v927 = vadd.f32 %v925, %v926
        %v928 = vsel %vm638, %v894, 0.0
        %v929 = vadd.f32 %v927, %v928
        %v930 = vsel %vm638, %v895, 0.0
        %v931 = vadd.f32 %v929, %v930
        %v932 = vsel %vm638, %v896, 0.0
        %v933 = vadd.f32 %v931, %v932
        %v934 = vsel %vm638, %v897, 0.0
        %v935 = vadd.f32 %v933, %v934
        %v936 = vsel %vm638, %v898, 0.0
        %v937 = vadd.f32 %v935, %v936
        %v938 = vsel %vm638, %v899, 0.0
        %v939 = vadd.f32 %v937, %v938
        %v940 = vsel %vm638, %v900, 0.0
        %v941 = vadd.f32 %v939, %v940
        %v942 = vsel %vm638, %v901, 0.0
        %v943 = vadd.f32 %v941, %v942
        %v944 = vsel %vm638, %v902, 0.0
        %v945 = vadd.f32 %v943, %v944
        %v946 = vsel %vm638, %v903, 0.0
        %v947 = vadd.f32 %v945, %v946
        %v948 = vsel %vm638, %v904, 0.0
        %v949 = vadd.f32 %v947, %v948
        %v950 = vsel %vm638, %v905, 0.0
        %v951 = vadd.f32 %v949, %v950
        %v952 = vsel %vm638, %v906, 0.0
        %v953 = vadd.f32 %v951, %v952
        %v954 = vsel %vm638, %v907, 0.0
        %v955 = vadd.f32 %v953, %v954
        %v956 = vsel %vm638, %v908, 0.0
        %v957 = vadd.f32 %v955, %v956
        %v958 = vsel %vm638, %v909, 0.0
        %v959 = vadd.f32 %v957, %v958
        %v960 = vsel %vm638, %v910, 0.0
        %v961 = vadd.f32 %v959, %v960
        %v962 = vsel %vm638, %v911, 0.0
        %v963 = vadd.f32 %v961, %v962
        %v964 = vsel %vm638, %v912, 0.0
        %v965 = vadd.f32 %v963, %v964
        %v966 = vsel %vm638, %v913, 0.0
        %v967 = vadd.f32 %v965, %v966
        %v968 = vsel %vm638, %v914, 0.0
        %v969 = vadd.f32 %v967, %v968
        %v970 = vsel %vm638, %v915, 0.0
        %v971 = vadd.f32 %v969, %v970
        %v972 = vsel %vm638, %v916, 0.0
        %v973 = vadd.f32 %v971, %v972
        %v974 = vsel %vm638, %v917, 0.0
        %v975 = vadd.f32 %v973, %v974
        %v976 = vsel %vm638, %v918, 0.0
        %v977 = vadd.f32 %v975, %v976
        %v978 = vsel %vm638, %v919, 0.0
        %v979 = vadd.f32 %v977, %v978
        %v980 = vsel %vm638, %v920, 0.0
        %v981 = vadd.f32 %v979, %v980
        %v982 = vsel %vm638, %v921, 0.0
        %v983 = vadd.f32 %v981, %v982
        %v984 = vsel %vm638, %v922, 0.0
        %v985 = vadd.f32 %v983, %v984
        %v986 = vrot.slane %v985, 4
        %v987 = vadd.f32 %v985, %v986
        %v988 = vrot.slane %v987, 2
        %v989 = vadd.f32 %v987, %v988
        %v990 = vrot.slane %v989, 1
        %v991 = vadd.f32 %v989, %v990
        %v993 = vsel %vm638, %v991, 0
        %995 = vmatprep.subr.mxu0 0.0
        %996 = vmatpush1.msra.mxu0 %v634
        %997 = vmatprep.subr.mxu0 0.0
        %998 = vmatpush1.msra.mxu0 0.0
        %999 = vmatprep.subr.mxu0 0.0
        %1000 = vmatpush1.msra.mxu0 0.0
        %1001 = vmatprep.subr.mxu0 0.0
        %1002 = vmatpush1.msra.mxu0 0.0
        %1003 = vmatprep.subr.mxu0 0.0
        %1004 = vmatpush1.msra.mxu0 0.0
        %1005 = vmatprep.subr.mxu0 0.0
        %1006 = vmatpush1.msra.mxu0 0.0
        %1007 = vmatprep.subr.mxu0 0.0
        %1008 = vmatpush1.msra.mxu0 0.0
        %1009 = vmatprep.subr.mxu0 0.0
        %1010 = vmatpush1.msra.mxu0 0.0
        %1011 = vmatprep.subr.mxu0 0.0
        %1012 = vmatpush1.msra.mxu0 0.0
        %1013 = vmatprep.subr.mxu0 0.0
        %1014 = vmatpush1.msra.mxu0 0.0
        %1015 = vmatprep.subr.mxu0 0.0
        %1016 = vmatpush1.msra.mxu0 0.0
        %1017 = vmatprep.subr.mxu0 0.0
        %1018 = vmatpush1.msra.mxu0 0.0
        %1019 = vmatprep.subr.mxu0 0.0
        %1020 = vmatpush1.msra.mxu0 0.0
        %1021 = vmatprep.subr.mxu0 0.0
        %1022 = vmatpush1.msra.mxu0 0.0
        %1023 = vmatprep.subr.mxu0 0.0
        %1024 = vmatpush1.msra.mxu0 0.0
        %1025 = vmatprep.subr.mxu0 0.0
        %1026 = vmatpush1.msra.mxu0 0.0
        %1027 = vmatprep.subr.mxu0 0.0
        %1028 = vmatpush1.msra.mxu0 0.0
        %1029 = vmatprep.subr.mxu0 0.0
        %1030 = vmatpush1.msra.mxu0 0.0
        %1031 = vmatprep.subr.mxu0 0.0
        %1032 = vmatpush1.msra.mxu0 0.0
        %1033 = vmatprep.subr.mxu0 0.0
        %1034 = vmatpush1.msra.mxu0 0.0
        %1035 = vmatprep.subr.mxu0 0.0
        %1036 = vmatpush1.msra.mxu0 0.0
        %1037 = vmatprep.subr.mxu0 0.0
        %1038 = vmatpush1.msra.mxu0 0.0
        %1039 = vmatprep.subr.mxu0 0.0
        %1040 = vmatpush1.msra.mxu0 0.0
        %1041 = vmatprep.subr.mxu0 0.0
        %1042 = vmatpush1.msra.mxu0 0.0
        %1043 = vmatprep.subr.mxu0 0.0
        %1044 = vmatpush1.msra.mxu0 0.0
        %1045 = vmatprep.subr.mxu0 0.0
        %1046 = vmatpush1.msra.mxu0 0.0
        %1047 = vmatprep.subr.mxu0 0.0
        %1048 = vmatpush1.msra.mxu0 0.0
        %1049 = vmatprep.subr.mxu0 0.0
        %1050 = vmatpush1.msra.mxu0 0.0
        %1051 = vmatprep.subr.mxu0 0.0
        %1052 = vmatpush1.msra.mxu0 0.0
        %1053 = vmatprep.subr.mxu0 0.0
        %1054 = vmatpush1.msra.mxu0 0.0
        %1055 = vmatprep.subr.mxu0 0.0
        %1056 = vmatpush1.msra.mxu0 0.0
        %1057 = vmatprep.subr.mxu0 0.0
        %1058 = vmatpush1.msra.mxu0 0.0
        %1059 = vmatprep.mubr.f32.mxu0 0.0
        %1060 = vmatmul.mubr.f32.gmra.mrb[0].mxu0 %v993
        %v1061 = vpop.f32.mrb[0].mxu0
        %v1062 = vadd.f32 0.0, %v1061
        %v1063 = vpop.f32.mrb[0].mxu0
        %1064 = vdwg.mxu0
        %v1066 = vsel %vm638, %v1062, 0
        %1068 = vmatprep.subr.mxu0 0.0
        %1069 = vmatpush1.msra.mxu0 %v635
        %1070 = vmatprep.subr.mxu0 0.0
        %1071 = vmatpush1.msra.mxu0 0.0
        %1072 = vmatprep.subr.mxu0 0.0
        %1073 = vmatpush1.msra.mxu0 0.0
        %1074 = vmatprep.subr.mxu0 0.0
        %1075 = vmatpush1.msra.mxu0 0.0
        %1076 = vmatprep.subr.mxu0 0.0
        %1077 = vmatpush1.msra.mxu0 0.0
        %1078 = vmatprep.subr.mxu0 0.0
        %1079 = vmatpush1.msra.mxu0 0.0
        %1080 = vmatprep.subr.mxu0 0.0
        %1081 = vmatpush1.msra.mxu0 0.0
        %1082 = vmatprep.subr.mxu0 0.0
        %1083 = vmatpush1.msra.mxu0 0.0
        %1084 = vmatprep.subr.mxu0 0.0
        %1085 = vmatpush1.msra.mxu0 0.0
        %1086 = vmatprep.subr.mxu0 0.0
        %1087 = vmatpush1.msra.mxu0 0.0
        %1088 = vmatprep.subr.mxu0 0.0
        %1089 = vmatpush1.msra.mxu0 0.0
        %1090 = vmatprep.subr.mxu0 0.0
        %1091 = vmatpush1.msra.mxu0 0.0
        %1092 = vmatprep.subr.mxu0 0.0
        %1093 = vmatpush1.msra.mxu0 0.0
        %1094 = vmatprep.subr.mxu0 0.0
        %1095 = vmatpush1.msra.mxu0 0.0
        %1096 = vmatprep.subr.mxu0 0.0
        %1097 = vmatpush1.msra.mxu0 0.0
        %1098 = vmatprep.subr.mxu0 0.0
        %1099 = vmatpush1.msra.mxu0 0.0
        %1100 = vmatprep.subr.mxu0 0.0
        %1101 = vmatpush1.msra.mxu0 0.0
        %1102 = vmatprep.subr.mxu0 0.0
        %1103 = vmatpush1.msra.mxu0 0.0
        %1104 = vmatprep.subr.mxu0 0.0
        %1105 = vmatpush1.msra.mxu0 0.0
        %1106 = vmatprep.subr.mxu0 0.0
        %1107 = vmatpush1.msra.mxu0 0.0
        %1108 = vmatprep.subr.mxu0 0.0
        %1109 = vmatpush1.msra.mxu0 0.0
        %1110 = vmatprep.subr.mxu0 0.0
        %1111 = vmatpush1.msra.mxu0 0.0
        %1112 = vmatprep.subr.mxu0 0.0
        %1113 = vmatpush1.msra.mxu0 0.0
        %1114 = vmatprep.subr.mxu0 0.0
        %1115 = vmatpush1.msra.mxu0 0.0
        %1116 = vmatprep.subr.mxu0 0.0
        %1117 = vmatpush1.msra.mxu0 0.0
        %1118 = vmatprep.subr.mxu0 0.0
        %1119 = vmatpush1.msra.mxu0 0.0
        %1120 = vmatprep.subr.mxu0 0.0
        %1121 = vmatpush1.msra.mxu0 0.0
        %1122 = vmatprep.subr.mxu0 0.0
        %1123 = vmatpush1.msra.mxu0 0.0
        %1124 = vmatprep.subr.mxu0 0.0
        %1125 = vmatpush1.msra.mxu0 0.0
        %1126 = vmatprep.subr.mxu0 0.0
        %1127 = vmatpush1.msra.mxu0 0.0
        %1128 = vmatprep.subr.mxu0 0.0
        %1129 = vmatpush1.msra.mxu0 0.0
        %1130 = vmatprep.subr.mxu0 0.0
        %1131 = vmatpush1.msra.mxu0 0.0
        %1132 = vmatprep.mubr.f32.mxu0 0.0
        %1133 = vmatmul.mubr.f32.gmra.mrb[0].mxu0 %v1066
        %v1134 = vpop.f32.mrb[0].mxu0
        %v1135 = vadd.f32 0.0, %v1134
        %v1136 = vpop.f32.mrb[0].mxu0
        %1137 = vdwg.mxu0
        %v1138 = vmul.f32 %v1135, 0.00390625
        %v1139 = vadd.f32 %v1138, 1e-05
        %v1140 = vrsqrt.pop %v1139
        %v1141 = vmul.f32 %v1140, %v636
        %v1142 = vlaneseq
        %v1143 = vshrl.u32 %v1142, 7
        %v1144 = vsub.s32 0, %v1143
        %v1145 = vrot.slane %v1141, %v1144
        %v1146 = vmul.f32 %v859, %v1145
        %v1147 = vmul.f32 %v860, %v1145
        %v1148 = vmul.f32 %v861, %v1145
        %v1149 = vmul.f32 %v862, %v1145
        %v1150 = vmul.f32 %v863, %v1145
        %v1151 = vmul.f32 %v864, %v1145
        %v1152 = vmul.f32 %v865, %v1145
        %v1153 = vmul.f32 %v866, %v1145
        %v1154 = vmul.f32 %v867, %v1145
        %v1155 = vmul.f32 %v868, %v1145
        %v1156 = vmul.f32 %v869, %v1145
        %v1157 = vmul.f32 %v870, %v1145
        %v1158 = vmul.f32 %v871, %v1145
        %v1159 = vmul.f32 %v872, %v1145
        %v1160 = vmul.f32 %v873, %v1145
        %v1161 = vmul.f32 %v874, %v1145
        %v1162 = vmul.f32 %v875, %v1145
        %v1163 = vmul.f32 %v876, %v1145
        %v1164 = vmul.f32 %v877, %v1145
        %v1165 = vmul.f32 %v878, %v1145
        %v1166 = vmul.f32 %v879, %v1145
        %v1167 = vmul.f32 %v880, %v1145
        %v1168 = vmul.f32 %v881, %v1145
        %v1169 = vmul.f32 %v882, %v1145
        %v1170 = vmul.f32 %v883, %v1145
        %v1171 = vmul.f32 %v884, %v1145
        %v1172 = vmul.f32 %v885, %v1145
        %v1173 = vmul.f32 %v886, %v1145
        %v1174 = vmul.f32 %v887, %v1145
        %v1175 = vmul.f32 %v888, %v1145
        %v1176 = vmul.f32 %v889, %v1145
        %v1177 = vmul.f32 %v890, %v1145
        %v1179 = vlaneseq
        %v1180 = vshrl.u32 %v1179, 7
        %v1181 = vsub.s32 0, %v1180
        %v1182 = vrot.slane %v637, %v1181
        %v1184 = vadd.f32 %v1146, %v1182
        %v1185 = vadd.f32 %v1147, %v1182
        %v1186 = vadd.f32 %v1148, %v1182
        %v1187 = vadd.f32 %v1149, %v1182
        %v1188 = vadd.f32 %v1150, %v1182
        %v1189 = vadd.f32 %v1151, %v1182
        %v1190 = vadd.f32 %v1152, %v1182
        %v1191 = vadd.f32 %v1153, %v1182
        %v1192 = vadd.f32 %v1154, %v1182
        %v1193 = vadd.f32 %v1155, %v1182
        %v1194 = vadd.f32 %v1156, %v1182
        %v1195 = vadd.f32 %v1157, %v1182
        %v1196 = vadd.f32 %v1158, %v1182
        %v1197 = vadd.f32 %v1159, %v1182
        %v1198 = vadd.f32 %v1160, %v1182
        %v1199 = vadd.f32 %v1161, %v1182
        %v1200 = vadd.f32 %v1162, %v1182
        %v1201 = vadd.f32 %v1163, %v1182
        %v1202 = vadd.f32 %v1164, %v1182
        %v1203 = vadd.f32 %v1165, %v1182
        %v1204 = vadd.f32 %v1166, %v1182
        %v1205 = vadd.f32 %v1167, %v1182
        %v1206 = vadd.f32 %v1168, %v1182
        %v1207 = vadd.f32 %v1169, %v1182
        %v1208 = vadd.f32 %v1170, %v1182
        %v1209 = vadd.f32 %v1171, %v1182
        %v1210 = vadd.f32 %v1172, %v1182
        %v1211 = vadd.f32 %v1173, %v1182
        %v1212 = vadd.f32 %v1174, %v1182
        %v1213 = vadd.f32 %v1175, %v1182
        %v1214 = vadd.f32 %v1176, %v1182
        %v1215 = vadd.f32 %v1177, %v1182
        %v1216 = vmax.f32 %v1184, 0.0
        %v1217 = vmax.f32 %v1185, 0.0
        %v1218 = vmax.f32 %v1186, 0.0
        %v1219 = vmax.f32 %v1187, 0.0
        %v1220 = vmax.f32 %v1188, 0.0
        %v1221 = vmax.f32 %v1189, 0.0
        %v1222 = vmax.f32 %v1190, 0.0
        %v1223 = vmax.f32 %v1191, 0.0
        %v1224 = vmax.f32 %v1192, 0.0
        %v1225 = vmax.f32 %v1193, 0.0
        %v1226 = vmax.f32 %v1194, 0.0
        %v1227 = vmax.f32 %v1195, 0.0
        %v1228 = vmax.f32 %v1196, 0.0
        %v1229 = vmax.f32 %v1197, 0.0
        %v1230 = vmax.f32 %v1198, 0.0
        %v1231 = vmax.f32 %v1199, 0.0
        %v1232 = vmax.f32 %v1200, 0.0
        %v1233 = vmax.f32 %v1201, 0.0
        %v1234 = vmax.f32 %v1202, 0.0
        %v1235 = vmax.f32 %v1203, 0.0
        %v1236 = vmax.f32 %v1204, 0.0
        %v1237 = vmax.f32 %v1205, 0.0
        %v1238 = vmax.f32 %v1206, 0.0
        %v1239 = vmax.f32 %v1207, 0.0
        %v1240 = vmax.f32 %v1208, 0.0
        %v1241 = vmax.f32 %v1209, 0.0
        %v1242 = vmax.f32 %v1210, 0.0
        %v1243 = vmax.f32 %v1211, 0.0
        %v1244 = vmax.f32 %v1212, 0.0
        %v1245 = vmax.f32 %v1213, 0.0
        %v1246 = vmax.f32 %v1214, 0.0
        %v1247 = vmax.f32 %v1215, 0.0
        %v1248 = vpack.c.bf16 %v1217, %v1216
        %v1249 = vpack.c.bf16 %v1219, %v1218
        %v1250 = vpack.c.bf16 %v1221, %v1220
        %v1251 = vpack.c.bf16 %v1223, %v1222
        %v1252 = vpack.c.bf16 %v1225, %v1224
        %v1253 = vpack.c.bf16 %v1227, %v1226
        %v1254 = vpack.c.bf16 %v1229, %v1228
        %v1255 = vpack.c.bf16 %v1231, %v1230
        %v1256 = vpack.c.bf16 %v1233, %v1232
        %v1257 = vpack.c.bf16 %v1235, %v1234
        %v1258 = vpack.c.bf16 %v1237, %v1236
        %v1259 = vpack.c.bf16 %v1239, %v1238
        %v1260 = vpack.c.bf16 %v1241, %v1240
        %v1261 = vpack.c.bf16 %v1243, %v1242
        %v1262 = vpack.c.bf16 %v1245, %v1244
        %v1263 = vpack.c.bf16 %v1247, %v1246
        %v1264 = vld [vmem:[%s5] sm:$0xf]
        %v1266 = vsel %vm638, %v1248, 0
        %v1269 = vsel %vm638, %v1249, 0
        %v1272 = vsel %vm638, %v1250, 0
        %v1275 = vsel %vm638, %v1251, 0
        %v1278 = vsel %vm638, %v1252, 0
        %v1281 = vsel %vm638, %v1253, 0
        %v1284 = vsel %vm638, %v1254, 0
        %v1287 = vsel %vm638, %v1255, 0
        %v1290 = vsel %vm638, %v1256, 0
        %v1293 = vsel %vm638, %v1257, 0
        %v1296 = vsel %vm638, %v1258, 0
        %v1299 = vsel %vm638, %v1259, 0
        %v1302 = vsel %vm638, %v1260, 0
        %v1305 = vsel %vm638, %v1261, 0
        %v1308 = vsel %vm638, %v1262, 0
        %v1311 = vsel %vm638, %v1263, 0
        %vm1313 = vcmask 1043456
        %v1315 = vsel %vm1313, %v1264, 0
        %1317 = vmatprep.subr.bf16.mxu0 0
        %1318 = vmatpush1.bf16.msra.mxu0 %v1315
        %1319 = vmatprep.subr.bf16.mxu0 0
        %1320 = vmatpush1.bf16.msra.mxu0 0
        %1321 = vmatprep.subr.bf16.mxu0 0
        %1322 = vmatpush1.bf16.msra.mxu0 0
        %1323 = vmatprep.subr.bf16.mxu0 0
        %1324 = vmatpush1.bf16.msra.mxu0 0
        %1325 = vmatprep.subr.bf16.mxu0 0
        %1326 = vmatpush1.bf16.msra.mxu0 0
        %1327 = vmatprep.subr.bf16.mxu0 0
        %1328 = vmatpush1.bf16.msra.mxu0 0
        %1329 = vmatprep.subr.bf16.mxu0 0
        %1330 = vmatpush1.bf16.msra.mxu0 0
        %1331 = vmatprep.subr.bf16.mxu0 0
        %1332 = vmatpush1.bf16.msra.mxu0 0
        %1333 = vmatprep.subr.bf16.mxu0 0
        %1334 = vmatpush1.bf16.msra.mxu0 0
        %1335 = vmatprep.subr.bf16.mxu0 0
        %1336 = vmatpush1.bf16.msra.mxu0 0
        %1337 = vmatprep.subr.bf16.mxu0 0
        %1338 = vmatpush1.bf16.msra.mxu0 0
        %1339 = vmatprep.subr.bf16.mxu0 0
        %1340 = vmatpush1.bf16.msra.mxu0 0
        %1341 = vmatprep.subr.bf16.mxu0 0
        %1342 = vmatpush1.bf16.msra.mxu0 0
        %1343 = vmatprep.subr.bf16.mxu0 0
        %1344 = vmatpush1.bf16.msra.mxu0 0
        %1345 = vmatprep.subr.bf16.mxu0 0
        %1346 = vmatpush1.bf16.msra.mxu0 0
        %1347 = vmatprep.subr.bf16.mxu0 0
        %1348 = vmatpush1.bf16.msra.mxu0 0
        %1349 = vmatprep.mubr.bf16.mxu0 0
        %1350 = vmatmul.mubr.bf16.gmra.mrb[0].mxu0 %v1266
        %v1351 = vpop.f32.mrb[0].mxu0
        %v1352 = vadd.f32 0.0, %v1351
        %v1353 = vpop.f32.mrb[0].mxu0
        %v1354 = vpop.f32.mrb[0].mxu0
        %v1355 = vadd.f32 0.0, %v1354
        %v1356 = vpop.f32.mrb[0].mxu0
        %1357 = vmatprep.mubr.bf16.mxu0 0
        %1358 = vmatmul.mubr.bf16.gmra.mrb[0].mxu0 %v1269
        %v1359 = vpop.f32.mrb[0].mxu0
        %v1360 = vadd.f32 0.0, %v1359
        %v1361 = vpop.f32.mrb[0].mxu0
        %v1362 = vpop.f32.mrb[0].mxu0
        %v1363 = vadd.f32 0.0, %v1362
        %v1364 = vpop.f32.mrb[0].mxu0
        %1365 = vmatprep.mubr.bf16.mxu0 0
        %1366 = vmatmul.mubr.bf16.gmra.mrb[0].mxu0 %v1272
        %v1367 = vpop.f32.mrb[0].mxu0
        %v1368 = vadd.f32 0.0, %v1367
        %v1369 = vpop.f32.mrb[0].mxu0
        %v1370 = vpop.f32.mrb[0].mxu0
        %v1371 = vadd.f32 0.0, %v1370
        %v1372 = vpop.f32.mrb[0].mxu0
        %1373 = vmatprep.mubr.bf16.mxu0 0
        %1374 = vmatmul.mubr.bf16.gmra.mrb[0].mxu0 %v1275
        %v1375 = vpop.f32.mrb[0].mxu0
        %v1376 = vadd.f32 0.0, %v1375
        %v1377 = vpop.f32.mrb[0].mxu0
        %v1378 = vpop.f32.mrb[0].mxu0
        %v1379 = vadd.f32 0.0, %v1378
        %v1380 = vpop.f32.mrb[0].mxu0
        %1381 = vmatprep.mubr.bf16.mxu0 0
        %1382 = vmatmul.mubr.bf16.gmra.mrb[0].mxu0 %v1278
        %v1383 = vpop.f32.mrb[0].mxu0
        %v1384 = vadd.f32 0.0, %v1383
        %v1385 = vpop.f32.mrb[0].mxu0
        %v1386 = vpop.f32.mrb[0].mxu0
        %v1387 = vadd.f32 0.0, %v1386
        %v1388 = vpop.f32.mrb[0].mxu0
        %1389 = vmatprep.mubr.bf16.mxu0 0
        %1390 = vmatmul.mubr.bf16.gmra.mrb[0].mxu0 %v1281
        %v1391 = vpop.f32.mrb[0].mxu0
        %v1392 = vadd.f32 0.0, %v1391
        %v1393 = vpop.f32.mrb[0].mxu0
        %v1394 = vpop.f32.mrb[0].mxu0
        %v1395 = vadd.f32 0.0, %v1394
        %v1396 = vpop.f32.mrb[0].mxu0
        %1397 = vmatprep.mubr.bf16.mxu0 0
        %1398 = vmatmul.mubr.bf16.gmra.mrb[0].mxu0 %v1284
        %v1399 = vpop.f32.mrb[0].mxu0
        %v1400 = vadd.f32 0.0, %v1399
        %v1401 = vpop.f32.mrb[0].mxu0
        %v1402 = vpop.f32.mrb[0].mxu0
        %v1403 = vadd.f32 0.0, %v1402
        %v1404 = vpop.f32.mrb[0].mxu0
        %1405 = vmatprep.mubr.bf16.mxu0 0
        %1406 = vmatmul.mubr.bf16.gmra.mrb[0].mxu0 %v1287
        %v1407 = vpop.f32.mrb[0].mxu0
        %v1408 = vadd.f32 0.0, %v1407
        %v1409 = vpop.f32.mrb[0].mxu0
        %v1410 = vpop.f32.mrb[0].mxu0
        %v1411 = vadd.f32 0.0, %v1410
        %v1412 = vpop.f32.mrb[0].mxu0
        %1413 = vmatprep.mubr.bf16.mxu0 0
        %1414 = vmatmul.mubr.bf16.gmra.mrb[0].mxu0 %v1290
        %v1415 = vpop.f32.mrb[0].mxu0
        %v1416 = vadd.f32 0.0, %v1415
        %v1417 = vpop.f32.mrb[0].mxu0
        %v1418 = vpop.f32.mrb[0].mxu0
        %v1419 = vadd.f32 0.0, %v1418
        %v1420 = vpop.f32.mrb[0].mxu0
        %1421 = vmatprep.mubr.bf16.mxu0 0
        %1422 = vmatmul.mubr.bf16.gmra.mrb[0].mxu0 %v1293
        %v1423 = vpop.f32.mrb[0].mxu0
        %v1424 = vadd.f32 0.0, %v1423
        %v1425 = vpop.f32.mrb[0].mxu0
        %v1426 = vpop.f32.mrb[0].mxu0
        %v1427 = vadd.f32 0.0, %v1426
        %v1428 = vpop.f32.mrb[0].mxu0
        %1429 = vmatprep.mubr.bf16.mxu0 0
        %1430 = vmatmul.mubr.bf16.gmra.mrb[0].mxu0 %v1296
        %v1431 = vpop.f32.mrb[0].mxu0
        %v1432 = vadd.f32 0.0, %v1431
        %v1433 = vpop.f32.mrb[0].mxu0
        %v1434 = vpop.f32.mrb[0].mxu0
        %v1435 = vadd.f32 0.0, %v1434
        %v1436 = vpop.f32.mrb[0].mxu0
        %1437 = vmatprep.mubr.bf16.mxu0 0
        %1438 = vmatmul.mubr.bf16.gmra.mrb[0].mxu0 %v1299
        %v1439 = vpop.f32.mrb[0].mxu0
        %v1440 = vadd.f32 0.0, %v1439
        %v1441 = vpop.f32.mrb[0].mxu0
        %v1442 = vpop.f32.mrb[0].mxu0
        %v1443 = vadd.f32 0.0, %v1442
        %v1444 = vpop.f32.mrb[0].mxu0
        %1445 = vmatprep.mubr.bf16.mxu0 0
        %1446 = vmatmul.mubr.bf16.gmra.mrb[0].mxu0 %v1302
        %v1447 = vpop.f32.mrb[0].mxu0
        %v1448 = vadd.f32 0.0, %v1447
        %v1449 = vpop.f32.mrb[0].mxu0
        %v1450 = vpop.f32.mrb[0].mxu0
        %v1451 = vadd.f32 0.0, %v1450
        %v1452 = vpop.f32.mrb[0].mxu0
        %1453 = vmatprep.mubr.bf16.mxu0 0
        %1454 = vmatmul.mubr.bf16.gmra.mrb[0].mxu0 %v1305
        %v1455 = vpop.f32.mrb[0].mxu0
        %v1456 = vadd.f32 0.0, %v1455
        %v1457 = vpop.f32.mrb[0].mxu0
        %v1458 = vpop.f32.mrb[0].mxu0
        %v1459 = vadd.f32 0.0, %v1458
        %v1460 = vpop.f32.mrb[0].mxu0
        %1461 = vmatprep.mubr.bf16.mxu0 0
        %1462 = vmatmul.mubr.bf16.gmra.mrb[0].mxu0 %v1308
        %v1463 = vpop.f32.mrb[0].mxu0
        %v1464 = vadd.f32 0.0, %v1463
        %v1465 = vpop.f32.mrb[0].mxu0
        %v1466 = vpop.f32.mrb[0].mxu0
        %v1467 = vadd.f32 0.0, %v1466
        %v1468 = vpop.f32.mrb[0].mxu0
        %1469 = vmatprep.mubr.bf16.mxu0 0
        %1470 = vmatmul.mubr.bf16.gmra.mrb[0].mxu0 %v1311
        %v1471 = vpop.f32.mrb[0].mxu0
        %v1472 = vadd.f32 0.0, %v1471
        %v1473 = vpop.f32.mrb[0].mxu0
        %v1474 = vpop.f32.mrb[0].mxu0
        %v1475 = vadd.f32 0.0, %v1474
        %v1476 = vpop.f32.mrb[0].mxu0
        %1477 = vdwg.mxu0
        %v1478 = vld [vmem:[%s8] sm:$0xff]
        %v1479 = vld [vmem:[%s9] sm:$0xff]
        %v1480 = vld [vmem:[%s6] sm:$0x1]
        %v1481 = vld [vmem:[%s7] sm:$0x1]
        %v1482 = vsel %vm638, %v1352, 0.0
        %v1483 = vsel %vm638, %v1355, 0.0
        %v1484 = vadd.f32 %v1482, %v1483
        %v1485 = vsel %vm638, %v1360, 0.0
        %v1486 = vadd.f32 %v1484, %v1485
        %v1487 = vsel %vm638, %v1363, 0.0
        %v1488 = vadd.f32 %v1486, %v1487
        %v1489 = vsel %vm638, %v1368, 0.0
        %v1490 = vadd.f32 %v1488, %v1489
        %v1491 = vsel %vm638, %v1371, 0.0
        %v1492 = vadd.f32 %v1490, %v1491
        %v1493 = vsel %vm638, %v1376, 0.0
        %v1494 = vadd.f32 %v1492, %v1493
        %v1495 = vsel %vm638, %v1379, 0.0
        %v1496 = vadd.f32 %v1494, %v1495
        %v1497 = vsel %vm638, %v1384, 0.0
        %v1498 = vadd.f32 %v1496, %v1497
        %v1499 = vsel %vm638, %v1387, 0.0
        %v1500 = vadd.f32 %v1498, %v1499
        %v1501 = vsel %vm638, %v1392, 0.0
        %v1502 = vadd.f32 %v1500, %v1501
        %v1503 = vsel %vm638, %v1395, 0.0
        %v1504 = vadd.f32 %v1502, %v1503
        %v1505 = vsel %vm638, %v1400, 0.0
        %v1506 = vadd.f32 %v1504, %v1505
        %v1507 = vsel %vm638, %v1403, 0.0
        %v1508 = vadd.f32 %v1506, %v1507
        %v1509 = vsel %vm638, %v1408, 0.0
        %v1510 = vadd.f32 %v1508, %v1509
        %v1511 = vsel %vm638, %v1411, 0.0
        %v1512 = vadd.f32 %v1510, %v1511
        %v1513 = vsel %vm638, %v1416, 0.0
        %v1514 = vadd.f32 %v1512, %v1513
        %v1515 = vsel %vm638, %v1419, 0.0
        %v1516 = vadd.f32 %v1514, %v1515
        %v1517 = vsel %vm638, %v1424, 0.0
        %v1518 = vadd.f32 %v1516, %v1517
        %v1519 = vsel %vm638, %v1427, 0.0
        %v1520 = vadd.f32 %v1518, %v1519
        %v1521 = vsel %vm638, %v1432, 0.0
        %v1522 = vadd.f32 %v1520, %v1521
        %v1523 = vsel %vm638, %v1435, 0.0
        %v1524 = vadd.f32 %v1522, %v1523
        %v1525 = vsel %vm638, %v1440, 0.0
        %v1526 = vadd.f32 %v1524, %v1525
        %v1527 = vsel %vm638, %v1443, 0.0
        %v1528 = vadd.f32 %v1526, %v1527
        %v1529 = vsel %vm638, %v1448, 0.0
        %v1530 = vadd.f32 %v1528, %v1529
        %v1531 = vsel %vm638, %v1451, 0.0
        %v1532 = vadd.f32 %v1530, %v1531
        %v1533 = vsel %vm638, %v1456, 0.0
        %v1534 = vadd.f32 %v1532, %v1533
        %v1535 = vsel %vm638, %v1459, 0.0
        %v1536 = vadd.f32 %v1534, %v1535
        %v1537 = vsel %vm638, %v1464, 0.0
        %v1538 = vadd.f32 %v1536, %v1537
        %v1539 = vsel %vm638, %v1467, 0.0
        %v1540 = vadd.f32 %v1538, %v1539
        %v1541 = vsel %vm638, %v1472, 0.0
        %v1542 = vadd.f32 %v1540, %v1541
        %v1543 = vsel %vm638, %v1475, 0.0
        %v1544 = vadd.f32 %v1542, %v1543
        %v1545 = vrot.slane %v1544, 4
        %v1546 = vadd.f32 %v1544, %v1545
        %v1547 = vrot.slane %v1546, 2
        %v1548 = vadd.f32 %v1546, %v1547
        %v1549 = vrot.slane %v1548, 1
        %v1550 = vadd.f32 %v1548, %v1549
        %v1552 = vsel %vm638, %v1550, 0
        %1554 = vmatprep.subr.mxu0 0.0
        %1555 = vmatpush1.msra.mxu0 %v1478
        %1556 = vmatprep.subr.mxu0 0.0
        %1557 = vmatpush1.msra.mxu0 0.0
        %1558 = vmatprep.subr.mxu0 0.0
        %1559 = vmatpush1.msra.mxu0 0.0
        %1560 = vmatprep.subr.mxu0 0.0
        %1561 = vmatpush1.msra.mxu0 0.0
        %1562 = vmatprep.subr.mxu0 0.0
        %1563 = vmatpush1.msra.mxu0 0.0
        %1564 = vmatprep.subr.mxu0 0.0
        %1565 = vmatpush1.msra.mxu0 0.0
        %1566 = vmatprep.subr.mxu0 0.0
        %1567 = vmatpush1.msra.mxu0 0.0
        %1568 = vmatprep.subr.mxu0 0.0
        %1569 = vmatpush1.msra.mxu0 0.0
        %1570 = vmatprep.subr.mxu0 0.0
        %1571 = vmatpush1.msra.mxu0 0.0
        %1572 = vmatprep.subr.mxu0 0.0
        %1573 = vmatpush1.msra.mxu0 0.0
        %1574 = vmatprep.subr.mxu0 0.0
        %1575 = vmatpush1.msra.mxu0 0.0
        %1576 = vmatprep.subr.mxu0 0.0
        %1577 = vmatpush1.msra.mxu0 0.0
        %1578 = vmatprep.subr.mxu0 0.0
        %1579 = vmatpush1.msra.mxu0 0.0
        %1580 = vmatprep.subr.mxu0 0.0
        %1581 = vmatpush1.msra.mxu0 0.0
        %1582 = vmatprep.subr.mxu0 0.0
        %1583 = vmatpush1.msra.mxu0 0.0
        %1584 = vmatprep.subr.mxu0 0.0
        %1585 = vmatpush1.msra.mxu0 0.0
        %1586 = vmatprep.subr.mxu0 0.0
        %1587 = vmatpush1.msra.mxu0 0.0
        %1588 = vmatprep.subr.mxu0 0.0
        %1589 = vmatpush1.msra.mxu0 0.0
        %1590 = vmatprep.subr.mxu0 0.0
        %1591 = vmatpush1.msra.mxu0 0.0
        %1592 = vmatprep.subr.mxu0 0.0
        %1593 = vmatpush1.msra.mxu0 0.0
        %1594 = vmatprep.subr.mxu0 0.0
        %1595 = vmatpush1.msra.mxu0 0.0
        %1596 = vmatprep.subr.mxu0 0.0
        %1597 = vmatpush1.msra.mxu0 0.0
        %1598 = vmatprep.subr.mxu0 0.0
        %1599 = vmatpush1.msra.mxu0 0.0
        %1600 = vmatprep.subr.mxu0 0.0
        %1601 = vmatpush1.msra.mxu0 0.0
        %1602 = vmatprep.subr.mxu0 0.0
        %1603 = vmatpush1.msra.mxu0 0.0
        %1604 = vmatprep.subr.mxu0 0.0
        %1605 = vmatpush1.msra.mxu0 0.0
        %1606 = vmatprep.subr.mxu0 0.0
        %1607 = vmatpush1.msra.mxu0 0.0
        %1608 = vmatprep.subr.mxu0 0.0
        %1609 = vmatpush1.msra.mxu0 0.0
        %1610 = vmatprep.subr.mxu0 0.0
        %1611 = vmatpush1.msra.mxu0 0.0
        %1612 = vmatprep.subr.mxu0 0.0
        %1613 = vmatpush1.msra.mxu0 0.0
        %1614 = vmatprep.subr.mxu0 0.0
        %1615 = vmatpush1.msra.mxu0 0.0
        %1616 = vmatprep.subr.mxu0 0.0
        %1617 = vmatpush1.msra.mxu0 0.0
        %1618 = vmatprep.mubr.f32.mxu0 0.0
        %1619 = vmatmul.mubr.f32.gmra.mrb[0].mxu0 %v1552
        %v1620 = vpop.f32.mrb[0].mxu0
        %v1621 = vadd.f32 0.0, %v1620
        %v1622 = vpop.f32.mrb[0].mxu0
        %1623 = vdwg.mxu0
        %v1625 = vsel %vm638, %v1621, 0
        %1627 = vmatprep.subr.mxu0 0.0
        %1628 = vmatpush1.msra.mxu0 %v1479
        %1629 = vmatprep.subr.mxu0 0.0
        %1630 = vmatpush1.msra.mxu0 0.0
        %1631 = vmatprep.subr.mxu0 0.0
        %1632 = vmatpush1.msra.mxu0 0.0
        %1633 = vmatprep.subr.mxu0 0.0
        %1634 = vmatpush1.msra.mxu0 0.0
        %1635 = vmatprep.subr.mxu0 0.0
        %1636 = vmatpush1.msra.mxu0 0.0
        %1637 = vmatprep.subr.mxu0 0.0
        %1638 = vmatpush1.msra.mxu0 0.0
        %1639 = vmatprep.subr.mxu0 0.0
        %1640 = vmatpush1.msra.mxu0 0.0
        %1641 = vmatprep.subr.mxu0 0.0
        %1642 = vmatpush1.msra.mxu0 0.0
        %1643 = vmatprep.subr.mxu0 0.0
        %1644 = vmatpush1.msra.mxu0 0.0
        %1645 = vmatprep.subr.mxu0 0.0
        %1646 = vmatpush1.msra.mxu0 0.0
        %1647 = vmatprep.subr.mxu0 0.0
        %1648 = vmatpush1.msra.mxu0 0.0
        %1649 = vmatprep.subr.mxu0 0.0
        %1650 = vmatpush1.msra.mxu0 0.0
        %1651 = vmatprep.subr.mxu0 0.0
        %1652 = vmatpush1.msra.mxu0 0.0
        %1653 = vmatprep.subr.mxu0 0.0
        %1654 = vmatpush1.msra.mxu0 0.0
        %1655 = vmatprep.subr.mxu0 0.0
        %1656 = vmatpush1.msra.mxu0 0.0
        %1657 = vmatprep.subr.mxu0 0.0
        %1658 = vmatpush1.msra.mxu0 0.0
        %1659 = vmatprep.subr.mxu0 0.0
        %1660 = vmatpush1.msra.mxu0 0.0
        %1661 = vmatprep.subr.mxu0 0.0
        %1662 = vmatpush1.msra.mxu0 0.0
        %1663 = vmatprep.subr.mxu0 0.0
        %1664 = vmatpush1.msra.mxu0 0.0
        %1665 = vmatprep.subr.mxu0 0.0
        %1666 = vmatpush1.msra.mxu0 0.0
        %1667 = vmatprep.subr.mxu0 0.0
        %1668 = vmatpush1.msra.mxu0 0.0
        %1669 = vmatprep.subr.mxu0 0.0
        %1670 = vmatpush1.msra.mxu0 0.0
        %1671 = vmatprep.subr.mxu0 0.0
        %1672 = vmatpush1.msra.mxu0 0.0
        %1673 = vmatprep.subr.mxu0 0.0
        %1674 = vmatpush1.msra.mxu0 0.0
        %1675 = vmatprep.subr.mxu0 0.0
        %1676 = vmatpush1.msra.mxu0 0.0
        %1677 = vmatprep.subr.mxu0 0.0
        %1678 = vmatpush1.msra.mxu0 0.0
        %1679 = vmatprep.subr.mxu0 0.0
        %1680 = vmatpush1.msra.mxu0 0.0
        %1681 = vmatprep.subr.mxu0 0.0
        %1682 = vmatpush1.msra.mxu0 0.0
        %1683 = vmatprep.subr.mxu0 0.0
        %1684 = vmatpush1.msra.mxu0 0.0
        %1685 = vmatprep.subr.mxu0 0.0
        %1686 = vmatpush1.msra.mxu0 0.0
        %1687 = vmatprep.subr.mxu0 0.0
        %1688 = vmatpush1.msra.mxu0 0.0
        %1689 = vmatprep.subr.mxu0 0.0
        %1690 = vmatpush1.msra.mxu0 0.0
        %1691 = vmatprep.mubr.f32.mxu0 0.0
        %1692 = vmatmul.mubr.f32.gmra.mrb[0].mxu0 %v1625
        %v1693 = vpop.f32.mrb[0].mxu0
        %v1694 = vadd.f32 0.0, %v1693
        %v1695 = vpop.f32.mrb[0].mxu0
        %1696 = vdwg.mxu0
        %v1697 = vmul.f32 %v1694, 0.00390625
        %v1698 = vlaneseq
        %v1699 = vshrl.u32 %v1698, 7
        %v1700 = vsub.s32 0, %v1699
        %v1701 = vrot.slane %v1697, %v1700
        %v1702 = vsub.f32 %v1352, %v1701
        %v1703 = vsub.f32 %v1355, %v1701
        %v1704 = vsub.f32 %v1360, %v1701
        %v1705 = vsub.f32 %v1363, %v1701
        %v1706 = vsub.f32 %v1368, %v1701
        %v1707 = vsub.f32 %v1371, %v1701
        %v1708 = vsub.f32 %v1376, %v1701
        %v1709 = vsub.f32 %v1379, %v1701
        %v1710 = vsub.f32 %v1384, %v1701
        %v1711 = vsub.f32 %v1387, %v1701
        %v1712 = vsub.f32 %v1392, %v1701
        %v1713 = vsub.f32 %v1395, %v1701
        %v1714 = vsub.f32 %v1400, %v1701
        %v1715 = vsub.f32 %v1403, %v1701
        %v1716 = vsub.f32 %v1408, %v1701
        %v1717 = vsub.f32 %v1411, %v1701
        %v1718 = vsub.f32 %v1416, %v1701
        %v1719 = vsub.f32 %v1419, %v1701
        %v1720 = vsub.f32 %v1424, %v1701
        %v1721 = vsub.f32 %v1427, %v1701
        %v1722 = vsub.f32 %v1432, %v1701
        %v1723 = vsub.f32 %v1435, %v1701
        %v1724 = vsub.f32 %v1440, %v1701
        %v1725 = vsub.f32 %v1443, %v1701
        %v1726 = vsub.f32 %v1448, %v1701
        %v1727 = vsub.f32 %v1451, %v1701
        %v1728 = vsub.f32 %v1456, %v1701
        %v1729 = vsub.f32 %v1459, %v1701
        %v1730 = vsub.f32 %v1464, %v1701
        %v1731 = vsub.f32 %v1467, %v1701
        %v1732 = vsub.f32 %v1472, %v1701
        %v1733 = vsub.f32 %v1475, %v1701
        %v1734 = vmul.f32 %v1702, %v1702
        %v1735 = vmul.f32 %v1703, %v1703
        %v1736 = vmul.f32 %v1704, %v1704
        %v1737 = vmul.f32 %v1705, %v1705
        %v1738 = vmul.f32 %v1706, %v1706
        %v1739 = vmul.f32 %v1707, %v1707
        %v1740 = vmul.f32 %v1708, %v1708
        %v1741 = vmul.f32 %v1709, %v1709
        %v1742 = vmul.f32 %v1710, %v1710
        %v1743 = vmul.f32 %v1711, %v1711
        %v1744 = vmul.f32 %v1712, %v1712
        %v1745 = vmul.f32 %v1713, %v1713
        %v1746 = vmul.f32 %v1714, %v1714
        %v1747 = vmul.f32 %v1715, %v1715
        %v1748 = vmul.f32 %v1716, %v1716
        %v1749 = vmul.f32 %v1717, %v1717
        %v1750 = vmul.f32 %v1718, %v1718
        %v1751 = vmul.f32 %v1719, %v1719
        %v1752 = vmul.f32 %v1720, %v1720
        %v1753 = vmul.f32 %v1721, %v1721
        %v1754 = vmul.f32 %v1722, %v1722
        %v1755 = vmul.f32 %v1723, %v1723
        %v1756 = vmul.f32 %v1724, %v1724
        %v1757 = vmul.f32 %v1725, %v1725
        %v1758 = vmul.f32 %v1726, %v1726
        %v1759 = vmul.f32 %v1727, %v1727
        %v1760 = vmul.f32 %v1728, %v1728
        %v1761 = vmul.f32 %v1729, %v1729
        %v1762 = vmul.f32 %v1730, %v1730
        %v1763 = vmul.f32 %v1731, %v1731
        %v1764 = vmul.f32 %v1732, %v1732
        %v1765 = vmul.f32 %v1733, %v1733
        %v1766 = vsel %vm638, %v1734, 0.0
        %v1767 = vsel %vm638, %v1735, 0.0
        %v1768 = vadd.f32 %v1766, %v1767
        %v1769 = vsel %vm638, %v1736, 0.0
        %v1770 = vadd.f32 %v1768, %v1769
        %v1771 = vsel %vm638, %v1737, 0.0
        %v1772 = vadd.f32 %v1770, %v1771
        %v1773 = vsel %vm638, %v1738, 0.0
        %v1774 = vadd.f32 %v1772, %v1773
        %v1775 = vsel %vm638, %v1739, 0.0
        %v1776 = vadd.f32 %v1774, %v1775
        %v1777 = vsel %vm638, %v1740, 0.0
        %v1778 = vadd.f32 %v1776, %v1777
        %v1779 = vsel %vm638, %v1741, 0.0
        %v1780 = vadd.f32 %v1778, %v1779
        %v1781 = vsel %vm638, %v1742, 0.0
        %v1782 = vadd.f32 %v1780, %v1781
        %v1783 = vsel %vm638, %v1743, 0.0
        %v1784 = vadd.f32 %v1782, %v1783
        %v1785 = vsel %vm638, %v1744, 0.0
        %v1786 = vadd.f32 %v1784, %v1785
        %v1787 = vsel %vm638, %v1745, 0.0
        %v1788 = vadd.f32 %v1786, %v1787
        %v1789 = vsel %vm638, %v1746, 0.0
        %v1790 = vadd.f32 %v1788, %v1789
        %v1791 = vsel %vm638, %v1747, 0.0
        %v1792 = vadd.f32 %v1790, %v1791
        %v1793 = vsel %vm638, %v1748, 0.0
        %v1794 = vadd.f32 %v1792, %v1793
        %v1795 = vsel %vm638, %v1749, 0.0
        %v1796 = vadd.f32 %v1794, %v1795
        %v1797 = vsel %vm638, %v1750, 0.0
        %v1798 = vadd.f32 %v1796, %v1797
        %v1799 = vsel %vm638, %v1751, 0.0
        %v1800 = vadd.f32 %v1798, %v1799
        %v1801 = vsel %vm638, %v1752, 0.0
        %v1802 = vadd.f32 %v1800, %v1801
        %v1803 = vsel %vm638, %v1753, 0.0
        %v1804 = vadd.f32 %v1802, %v1803
        %v1805 = vsel %vm638, %v1754, 0.0
        %v1806 = vadd.f32 %v1804, %v1805
        %v1807 = vsel %vm638, %v1755, 0.0
        %v1808 = vadd.f32 %v1806, %v1807
        %v1809 = vsel %vm638, %v1756, 0.0
        %v1810 = vadd.f32 %v1808, %v1809
        %v1811 = vsel %vm638, %v1757, 0.0
        %v1812 = vadd.f32 %v1810, %v1811
        %v1813 = vsel %vm638, %v1758, 0.0
        %v1814 = vadd.f32 %v1812, %v1813
        %v1815 = vsel %vm638, %v1759, 0.0
        %v1816 = vadd.f32 %v1814, %v1815
        %v1817 = vsel %vm638, %v1760, 0.0
        %v1818 = vadd.f32 %v1816, %v1817
        %v1819 = vsel %vm638, %v1761, 0.0
        %v1820 = vadd.f32 %v1818, %v1819
        %v1821 = vsel %vm638, %v1762, 0.0
        %v1822 = vadd.f32 %v1820, %v1821
        %v1823 = vsel %vm638, %v1763, 0.0
        %v1824 = vadd.f32 %v1822, %v1823
        %v1825 = vsel %vm638, %v1764, 0.0
        %v1826 = vadd.f32 %v1824, %v1825
        %v1827 = vsel %vm638, %v1765, 0.0
        %v1828 = vadd.f32 %v1826, %v1827
        %v1829 = vrot.slane %v1828, 4
        %v1830 = vadd.f32 %v1828, %v1829
        %v1831 = vrot.slane %v1830, 2
        %v1832 = vadd.f32 %v1830, %v1831
        %v1833 = vrot.slane %v1832, 1
        %v1834 = vadd.f32 %v1832, %v1833
        %v1836 = vsel %vm638, %v1834, 0
        %1838 = vmatprep.subr.mxu0 0.0
        %1839 = vmatpush1.msra.mxu0 %v1478
        %1840 = vmatprep.subr.mxu0 0.0
        %1841 = vmatpush1.msra.mxu0 0.0
        %1842 = vmatprep.subr.mxu0 0.0
        %1843 = vmatpush1.msra.mxu0 0.0
        %1844 = vmatprep.subr.mxu0 0.0
        %1845 = vmatpush1.msra.mxu0 0.0
        %1846 = vmatprep.subr.mxu0 0.0
        %1847 = vmatpush1.msra.mxu0 0.0
        %1848 = vmatprep.subr.mxu0 0.0
        %1849 = vmatpush1.msra.mxu0 0.0
        %1850 = vmatprep.subr.mxu0 0.0
        %1851 = vmatpush1.msra.mxu0 0.0
        %1852 = vmatprep.subr.mxu0 0.0
        %1853 = vmatpush1.msra.mxu0 0.0
        %1854 = vmatprep.subr.mxu0 0.0
        %1855 = vmatpush1.msra.mxu0 0.0
        %1856 = vmatprep.subr.mxu0 0.0
        %1857 = vmatpush1.msra.mxu0 0.0
        %1858 = vmatprep.subr.mxu0 0.0
        %1859 = vmatpush1.msra.mxu0 0.0
        %1860 = vmatprep.subr.mxu0 0.0
        %1861 = vmatpush1.msra.mxu0 0.0
        %1862 = vmatprep.subr.mxu0 0.0
        %1863 = vmatpush1.msra.mxu0 0.0
        %1864 = vmatprep.subr.mxu0 0.0
        %1865 = vmatpush1.msra.mxu0 0.0
        %1866 = vmatprep.subr.mxu0 0.0
        %1867 = vmatpush1.msra.mxu0 0.0
        %1868 = vmatprep.subr.mxu0 0.0
        %1869 = vmatpush1.msra.mxu0 0.0
        %1870 = vmatprep.subr.mxu0 0.0
        %1871 = vmatpush1.msra.mxu0 0.0
        %1872 = vmatprep.subr.mxu0 0.0
        %1873 = vmatpush1.msra.mxu0 0.0
        %1874 = vmatprep.subr.mxu0 0.0
        %1875 = vmatpush1.msra.mxu0 0.0
        %1876 = vmatprep.subr.mxu0 0.0
        %1877 = vmatpush1.msra.mxu0 0.0
        %1878 = vmatprep.subr.mxu0 0.0
        %1879 = vmatpush1.msra.mxu0 0.0
        %1880 = vmatprep.subr.mxu0 0.0
        %1881 = vmatpush1.msra.mxu0 0.0
        %1882 = vmatprep.subr.mxu0 0.0
        %1883 = vmatpush1.msra.mxu0 0.0
        %1884 = vmatprep.subr.mxu0 0.0
        %1885 = vmatpush1.msra.mxu0 0.0
        %1886 = vmatprep.subr.mxu0 0.0
        %1887 = vmatpush1.msra.mxu0 0.0
        %1888 = vmatprep.subr.mxu0 0.0
        %1889 = vmatpush1.msra.mxu0 0.0
        %1890 = vmatprep.subr.mxu0 0.0
        %1891 = vmatpush1.msra.mxu0 0.0
        %1892 = vmatprep.subr.mxu0 0.0
        %1893 = vmatpush1.msra.mxu0 0.0
        %1894 = vmatprep.subr.mxu0 0.0
        %1895 = vmatpush1.msra.mxu0 0.0
        %1896 = vmatprep.subr.mxu0 0.0
        %1897 = vmatpush1.msra.mxu0 0.0
        %1898 = vmatprep.subr.mxu0 0.0
        %1899 = vmatpush1.msra.mxu0 0.0
        %1900 = vmatprep.subr.mxu0 0.0
        %1901 = vmatpush1.msra.mxu0 0.0
        %1902 = vmatprep.mubr.f32.mxu0 0.0
        %1903 = vmatmul.mubr.f32.gmra.mrb[0].mxu0 %v1836
        %v1904 = vpop.f32.mrb[0].mxu0
        %v1905 = vadd.f32 0.0, %v1904
        %v1906 = vpop.f32.mrb[0].mxu0
        %1907 = vdwg.mxu0
        %v1909 = vsel %vm638, %v1905, 0
        %1911 = vmatprep.subr.mxu0 0.0
        %1912 = vmatpush1.msra.mxu0 %v1479
        %1913 = vmatprep.subr.mxu0 0.0
        %1914 = vmatpush1.msra.mxu0 0.0
        %1915 = vmatprep.subr.mxu0 0.0
        %1916 = vmatpush1.msra.mxu0 0.0
        %1917 = vmatprep.subr.mxu0 0.0
        %1918 = vmatpush1.msra.mxu0 0.0
        %1919 = vmatprep.subr.mxu0 0.0
        %1920 = vmatpush1.msra.mxu0 0.0
        %1921 = vmatprep.subr.mxu0 0.0
        %1922 = vmatpush1.msra.mxu0 0.0
        %1923 = vmatprep.subr.mxu0 0.0
        %1924 = vmatpush1.msra.mxu0 0.0
        %1925 = vmatprep.subr.mxu0 0.0
        %1926 = vmatpush1.msra.mxu0 0.0
        %1927 = vmatprep.subr.mxu0 0.0
        %1928 = vmatpush1.msra.mxu0 0.0
        %1929 = vmatprep.subr.mxu0 0.0
        %1930 = vmatpush1.msra.mxu0 0.0
        %1931 = vmatprep.subr.mxu0 0.0
        %1932 = vmatpush1.msra.mxu0 0.0
        %1933 = vmatprep.subr.mxu0 0.0
        %1934 = vmatpush1.msra.mxu0 0.0
        %1935 = vmatprep.subr.mxu0 0.0
        %1936 = vmatpush1.msra.mxu0 0.0
        %1937 = vmatprep.subr.mxu0 0.0
        %1938 = vmatpush1.msra.mxu0 0.0
        %1939 = vmatprep.subr.mxu0 0.0
        %1940 = vmatpush1.msra.mxu0 0.0
        %1941 = vmatprep.subr.mxu0 0.0
        %1942 = vmatpush1.msra.mxu0 0.0
        %1943 = vmatprep.subr.mxu0 0.0
        %1944 = vmatpush1.msra.mxu0 0.0
        %1945 = vmatprep.subr.mxu0 0.0
        %1946 = vmatpush1.msra.mxu0 0.0
        %1947 = vmatprep.subr.mxu0 0.0
        %1948 = vmatpush1.msra.mxu0 0.0
        %1949 = vmatprep.subr.mxu0 0.0
        %1950 = vmatpush1.msra.mxu0 0.0
        %1951 = vmatprep.subr.mxu0 0.0
        %1952 = vmatpush1.msra.mxu0 0.0
        %1953 = vmatprep.subr.mxu0 0.0
        %1954 = vmatpush1.msra.mxu0 0.0
        %1955 = vmatprep.subr.mxu0 0.0
        %1956 = vmatpush1.msra.mxu0 0.0
        %1957 = vmatprep.subr.mxu0 0.0
        %1958 = vmatpush1.msra.mxu0 0.0
        %1959 = vmatprep.subr.mxu0 0.0
        %1960 = vmatpush1.msra.mxu0 0.0
        %1961 = vmatprep.subr.mxu0 0.0
        %1962 = vmatpush1.msra.mxu0 0.0
        %1963 = vmatprep.subr.mxu0 0.0
        %1964 = vmatpush1.msra.mxu0 0.0
        %1965 = vmatprep.subr.mxu0 0.0
        %1966 = vmatpush1.msra.mxu0 0.0
        %1967 = vmatprep.subr.mxu0 0.0
        %1968 = vmatpush1.msra.mxu0 0.0
        %1969 = vmatprep.subr.mxu0 0.0
        %1970 = vmatpush1.msra.mxu0 0.0
        %1971 = vmatprep.subr.mxu0 0.0
        %1972 = vmatpush1.msra.mxu0 0.0
        %1973 = vmatprep.subr.mxu0 0.0
        %1974 = vmatpush1.msra.mxu0 0.0
        %1975 = vmatprep.mubr.f32.mxu0 0.0
        %1976 = vmatmul.mubr.f32.gmra.mrb[0].mxu0 %v1909
        %v1977 = vpop.f32.mrb[0].mxu0
        %v1978 = vadd.f32 0.0, %v1977
        %v1979 = vpop.f32.mrb[0].mxu0
        %1980 = vdwg.mxu0
        %v1981 = vmul.f32 %v1978, 0.00390625
        %v1982 = vadd.f32 %v1981, 1e-05
        %v1983 = vrsqrt.pop %v1982
        %v1984 = vmul.f32 %v1983, %v1480
        %v1985 = vlaneseq
        %v1986 = vshrl.u32 %v1985, 7
        %v1987 = vsub.s32 0, %v1986
        %v1988 = vrot.slane %v1984, %v1987
        %v1989 = vmul.f32 %v1702, %v1988
        %v1990 = vmul.f32 %v1703, %v1988
        %v1991 = vmul.f32 %v1704, %v1988
        %v1992 = vmul.f32 %v1705, %v1988
        %v1993 = vmul.f32 %v1706, %v1988
        %v1994 = vmul.f32 %v1707, %v1988
        %v1995 = vmul.f32 %v1708, %v1988
        %v1996 = vmul.f32 %v1709, %v1988
        %v1997 = vmul.f32 %v1710, %v1988
        %v1998 = vmul.f32 %v1711, %v1988
        %v1999 = vmul.f32 %v1712, %v1988
        %v2000 = vmul.f32 %v1713, %v1988
        %v2001 = vmul.f32 %v1714, %v1988
        %v2002 = vmul.f32 %v1715, %v1988
        %v2003 = vmul.f32 %v1716, %v1988
        %v2004 = vmul.f32 %v1717, %v1988
        %v2005 = vmul.f32 %v1718, %v1988
        %v2006 = vmul.f32 %v1719, %v1988
        %v2007 = vmul.f32 %v1720, %v1988
        %v2008 = vmul.f32 %v1721, %v1988
        %v2009 = vmul.f32 %v1722, %v1988
        %v2010 = vmul.f32 %v1723, %v1988
        %v2011 = vmul.f32 %v1724, %v1988
        %v2012 = vmul.f32 %v1725, %v1988
        %v2013 = vmul.f32 %v1726, %v1988
        %v2014 = vmul.f32 %v1727, %v1988
        %v2015 = vmul.f32 %v1728, %v1988
        %v2016 = vmul.f32 %v1729, %v1988
        %v2017 = vmul.f32 %v1730, %v1988
        %v2018 = vmul.f32 %v1731, %v1988
        %v2019 = vmul.f32 %v1732, %v1988
        %v2020 = vmul.f32 %v1733, %v1988
        %v2022 = vlaneseq
        %v2023 = vshrl.u32 %v2022, 7
        %v2024 = vsub.s32 0, %v2023
        %v2025 = vrot.slane %v1481, %v2024
        %v2027 = vadd.f32 %v1989, %v2025
        %v2028 = vadd.f32 %v1990, %v2025
        %v2029 = vadd.f32 %v1991, %v2025
        %v2030 = vadd.f32 %v1992, %v2025
        %v2031 = vadd.f32 %v1993, %v2025
        %v2032 = vadd.f32 %v1994, %v2025
        %v2033 = vadd.f32 %v1995, %v2025
        %v2034 = vadd.f32 %v1996, %v2025
        %v2035 = vadd.f32 %v1997, %v2025
        %v2036 = vadd.f32 %v1998, %v2025
        %v2037 = vadd.f32 %v1999, %v2025
        %v2038 = vadd.f32 %v2000, %v2025
        %v2039 = vadd.f32 %v2001, %v2025
        %v2040 = vadd.f32 %v2002, %v2025
        %v2041 = vadd.f32 %v2003, %v2025
        %v2042 = vadd.f32 %v2004, %v2025
        %v2043 = vadd.f32 %v2005, %v2025
        %v2044 = vadd.f32 %v2006, %v2025
        %v2045 = vadd.f32 %v2007, %v2025
        %v2046 = vadd.f32 %v2008, %v2025
        %v2047 = vadd.f32 %v2009, %v2025
        %v2048 = vadd.f32 %v2010, %v2025
        %v2049 = vadd.f32 %v2011, %v2025
        %v2050 = vadd.f32 %v2012, %v2025
        %v2051 = vadd.f32 %v2013, %v2025
        %v2052 = vadd.f32 %v2014, %v2025
        %v2053 = vadd.f32 %v2015, %v2025
        %v2054 = vadd.f32 %v2016, %v2025
        %v2055 = vadd.f32 %v2017, %v2025
        %v2056 = vadd.f32 %v2018, %v2025
        %v2057 = vadd.f32 %v2019, %v2025
        %v2058 = vadd.f32 %v2020, %v2025
        %v2059 = vmax.f32 %v2027, 0.0
        %v2060 = vmax.f32 %v2028, 0.0
        %v2061 = vmax.f32 %v2029, 0.0
        %v2062 = vmax.f32 %v2030, 0.0
        %v2063 = vmax.f32 %v2031, 0.0
        %v2064 = vmax.f32 %v2032, 0.0
        %v2065 = vmax.f32 %v2033, 0.0
        %v2066 = vmax.f32 %v2034, 0.0
        %v2067 = vmax.f32 %v2035, 0.0
        %v2068 = vmax.f32 %v2036, 0.0
        %v2069 = vmax.f32 %v2037, 0.0
        %v2070 = vmax.f32 %v2038, 0.0
        %v2071 = vmax.f32 %v2039, 0.0
        %v2072 = vmax.f32 %v2040, 0.0
        %v2073 = vmax.f32 %v2041, 0.0
        %v2074 = vmax.f32 %v2042, 0.0
        %v2075 = vmax.f32 %v2043, 0.0
        %v2076 = vmax.f32 %v2044, 0.0
        %v2077 = vmax.f32 %v2045, 0.0
        %v2078 = vmax.f32 %v2046, 0.0
        %v2079 = vmax.f32 %v2047, 0.0
        %v2080 = vmax.f32 %v2048, 0.0
        %v2081 = vmax.f32 %v2049, 0.0
        %v2082 = vmax.f32 %v2050, 0.0
        %v2083 = vmax.f32 %v2051, 0.0
        %v2084 = vmax.f32 %v2052, 0.0
        %v2085 = vmax.f32 %v2053, 0.0
        %v2086 = vmax.f32 %v2054, 0.0
        %v2087 = vmax.f32 %v2055, 0.0
        %v2088 = vmax.f32 %v2056, 0.0
        %v2089 = vmax.f32 %v2057, 0.0
        %v2090 = vmax.f32 %v2058, 0.0
        %vm2091 = vcmask 60416
        %2092 = vst.msk [vmem:[#allocation2] sm:$0xf] %vm2091, 0
        %2093 = vst.msk [vmem:[#allocation2 + $0x4] sm:$0xf] %vm2091, 0
        %vm2094 = vcmask 57344
        %2095 = vst.msk [vmem:[#allocation2 + $0x8] sm:$0x1] %vm2094, 0
        %s2096 = scalar_lea.vmem [#allocation2], 204
        %2097 = vst.msk [vmem:[%s2096] sm:$0xf] %vm2091, 0
        %2098 = vst.msk [vmem:[%s2096 + $0x4] sm:$0xf] %vm2091, 0
        %2099 = vst.msk [vmem:[%s2096 + $0x8] sm:$0x1] %vm2094, 0
        %s2100 = scalar_lea.vmem [#allocation2], 12
        %vm2101 = vcmask 57344
        %vm2102 = vsmask.f32 256
        %vm2103 = vmand %vm2101, %vm2102
        %v2104 = vld [vmem:[%s2100] sm:$0x1]
        %v2105 = vsel %vm2103, 0, %v2104
        %2106 = vst [vmem:[%s2100] sm:$0x1] %v2105
        %v2107 = vld [vmem:[%s2100 + $0xc] sm:$0x1]
        %v2108 = vsel %vm2103, 0, %v2107
        %2109 = vst [vmem:[%s2100 + $0xc] sm:$0x1] %v2108
        %v2110 = vld [vmem:[%s2100 + $0x18] sm:$0x1]
        %v2111 = vsel %vm2103, 0, %v2110
        %2112 = vst [vmem:[%s2100 + $0x18] sm:$0x1] %v2111
        %v2113 = vld [vmem:[%s2100 + $0x24] sm:$0x1]
        %v2114 = vsel %vm2103, 0, %v2113
        %2115 = vst [vmem:[%s2100 + $0x24] sm:$0x1] %v2114
        %v2116 = vld [vmem:[%s2100 + $0x30] sm:$0x1]
        %v2117 = vsel %vm2103, 0, %v2116
        %2118 = vst [vmem:[%s2100 + $0x30] sm:$0x1] %v2117
        %v2119 = vld [vmem:[%s2100 + $0x3c] sm:$0x1]
        %v2120 = vsel %vm2103, 0, %v2119
        %2121 = vst [vmem:[%s2100 + $0x3c] sm:$0x1] %v2120
        %v2122 = vld [vmem:[%s2100 + $0x48] sm:$0x1]
        %v2123 = vsel %vm2103, 0, %v2122
        %2124 = vst [vmem:[%s2100 + $0x48] sm:$0x1] %v2123
        %v2125 = vld [vmem:[%s2100 + $0x54] sm:$0x1]
        %v2126 = vsel %vm2103, 0, %v2125
        %2127 = vst [vmem:[%s2100 + $0x54] sm:$0x1] %v2126
        %v2128 = vld [vmem:[%s2100 + $0x60] sm:$0x1]
        %v2129 = vsel %vm2103, 0, %v2128
        %2130 = vst [vmem:[%s2100 + $0x60] sm:$0x1] %v2129
        %v2131 = vld [vmem:[%s2100 + $0x6c] sm:$0x1]
        %v2132 = vsel %vm2103, 0, %v2131
        %2133 = vst [vmem:[%s2100 + $0x6c] sm:$0x1] %v2132
        %v2134 = vld [vmem:[%s2100 + $0x78] sm:$0x1]
        %v2135 = vsel %vm2103, 0, %v2134
        %2136 = vst [vmem:[%s2100 + $0x78] sm:$0x1] %v2135
        %v2137 = vld [vmem:[%s2100 + $0x84] sm:$0x1]
        %v2138 = vsel %vm2103, 0, %v2137
        %2139 = vst [vmem:[%s2100 + $0x84] sm:$0x1] %v2138
        %v2140 = vld [vmem:[%s2100 + $0x90] sm:$0x1]
        %v2141 = vsel %vm2103, 0, %v2140
        %2142 = vst [vmem:[%s2100 + $0x90] sm:$0x1] %v2141
        %v2143 = vld [vmem:[%s2100 + $0x9c] sm:$0x1]
        %v2144 = vsel %vm2103, 0, %v2143
        %2145 = vst [vmem:[%s2100 + $0x9c] sm:$0x1] %v2144
        %v2146 = vld [vmem:[%s2100 + $0xa8] sm:$0x1]
        %v2147 = vsel %vm2103, 0, %v2146
        %2148 = vst [vmem:[%s2100 + $0xa8] sm:$0x1] %v2147
        %v2149 = vld [vmem:[%s2100 + $0xb4] sm:$0x1]
        %v2150 = vsel %vm2103, 0, %v2149
        %2151 = vst [vmem:[%s2100 + $0xb4] sm:$0x1] %v2150
        %vm2152 = vsmask.f32 7938
        %vm2153 = vmand %vm2101, %vm2152
        %v2154 = vld [vmem:[%s2100 + $0x8] sm:$0x1]
        %v2155 = vsel %vm2153, 0, %v2154
        %2156 = vst [vmem:[%s2100 + $0x8] sm:$0x1] %v2155
        %v2157 = vld [vmem:[%s2100 + $0x14] sm:$0x1]
        %v2158 = vsel %vm2153, 0, %v2157
        %2159 = vst [vmem:[%s2100 + $0x14] sm:$0x1] %v2158
        %v2160 = vld [vmem:[%s2100 + $0x20] sm:$0x1]
        %v2161 = vsel %vm2153, 0, %v2160
        %2162 = vst [vmem:[%s2100 + $0x20] sm:$0x1] %v2161
        %v2163 = vld [vmem:[%s2100 + $0x2c] sm:$0x1]
        %v2164 = vsel %vm2153, 0, %v2163
        %2165 = vst [vmem:[%s2100 + $0x2c] sm:$0x1] %v2164
        %v2166 = vld [vmem:[%s2100 + $0x38] sm:$0x1]
        %v2167 = vsel %vm2153, 0, %v2166
        %2168 = vst [vmem:[%s2100 + $0x38] sm:$0x1] %v2167
        %v2169 = vld [vmem:[%s2100 + $0x44] sm:$0x1]
        %v2170 = vsel %vm2153, 0, %v2169
        %2171 = vst [vmem:[%s2100 + $0x44] sm:$0x1] %v2170
        %v2172 = vld [vmem:[%s2100 + $0x50] sm:$0x1]
        %v2173 = vsel %vm2153, 0, %v2172
        %2174 = vst [vmem:[%s2100 + $0x50] sm:$0x1] %v2173
        %v2175 = vld [vmem:[%s2100 + $0x5c] sm:$0x1]
        %v2176 = vsel %vm2153, 0, %v2175
        %2177 = vst [vmem:[%s2100 + $0x5c] sm:$0x1] %v2176
        %v2178 = vld [vmem:[%s2100 + $0x68] sm:$0x1]
        %v2179 = vsel %vm2153, 0, %v2178
        %2180 = vst [vmem:[%s2100 + $0x68] sm:$0x1] %v2179
        %v2181 = vld [vmem:[%s2100 + $0x74] sm:$0x1]
        %v2182 = vsel %vm2153, 0, %v2181
        %2183 = vst [vmem:[%s2100 + $0x74] sm:$0x1] %v2182
        %v2184 = vld [vmem:[%s2100 + $0x80] sm:$0x1]
        %v2185 = vsel %vm2153, 0, %v2184
        %2186 = vst [vmem:[%s2100 + $0x80] sm:$0x1] %v2185
        %v2187 = vld [vmem:[%s2100 + $0x8c] sm:$0x1]
        %v2188 = vsel %vm2153, 0, %v2187
        %2189 = vst [vmem:[%s2100 + $0x8c] sm:$0x1] %v2188
        %v2190 = vld [vmem:[%s2100 + $0x98] sm:$0x1]
        %v2191 = vsel %vm2153, 0, %v2190
        %2192 = vst [vmem:[%s2100 + $0x98] sm:$0x1] %v2191
        %v2193 = vld [vmem:[%s2100 + $0xa4] sm:$0x1]
        %v2194 = vsel %vm2153, 0, %v2193
        %2195 = vst [vmem:[%s2100 + $0xa4] sm:$0x1] %v2194
        %v2196 = vld [vmem:[%s2100 + $0xb0] sm:$0x1]
        %v2197 = vsel %vm2153, 0, %v2196
        %2198 = vst [vmem:[%s2100 + $0xb0] sm:$0x1] %v2197
        %v2199 = vld [vmem:[%s2100 + $0xbc] sm:$0x1]
        %v2200 = vsel %vm2153, 0, %v2199
        %2201 = vst [vmem:[%s2100 + $0xbc] sm:$0x1] %v2200
        %v2202 = vpack.c.bf16 %v2060, %v2059
        %v2203 = vpack.c.bf16 %v2062, %v2061
        %v2204 = vpack.c.bf16 %v2064, %v2063
        %v2205 = vpack.c.bf16 %v2066, %v2065
        %v2206 = vpack.c.bf16 %v2068, %v2067
        %v2207 = vpack.c.bf16 %v2070, %v2069
        %v2208 = vpack.c.bf16 %v2072, %v2071
        %v2209 = vpack.c.bf16 %v2074, %v2073
        %v2210 = vpack.c.bf16 %v2076, %v2075
        %v2211 = vpack.c.bf16 %v2078, %v2077
        %v2212 = vpack.c.bf16 %v2080, %v2079
        %v2213 = vpack.c.bf16 %v2082, %v2081
        %v2214 = vpack.c.bf16 %v2084, %v2083
        %v2215 = vpack.c.bf16 %v2086, %v2085
        %v2216 = vpack.c.bf16 %v2088, %v2087
        %v2217 = vpack.c.bf16 %v2090, %v2089
        %v2234 = vunpack.c.l.b16 %v2202
        %v2235 = vunpack.c.h.b16 %v2202
        %v2236 = vunpack.c.l.b16 %v2203
        %v2237 = vunpack.c.h.b16 %v2203
        %v2238 = vunpack.c.l.b16 %v2204
        %v2239 = vunpack.c.h.b16 %v2204
        %v2240 = vunpack.c.l.b16 %v2205
        %v2241 = vunpack.c.h.b16 %v2205
        %v2242 = vunpack.c.l.b16 %v2206
        %v2243 = vunpack.c.h.b16 %v2206
        %v2244 = vunpack.c.l.b16 %v2207
        %v2245 = vunpack.c.h.b16 %v2207
        %v2246 = vunpack.c.l.b16 %v2208
        %v2247 = vunpack.c.h.b16 %v2208
        %v2248 = vunpack.c.l.b16 %v2209
        %v2249 = vunpack.c.h.b16 %v2209
        %v2250 = vunpack.c.l.b16 %v2210
        %v2251 = vunpack.c.h.b16 %v2210
        %v2252 = vunpack.c.l.b16 %v2211
        %v2253 = vunpack.c.h.b16 %v2211
        %v2254 = vunpack.c.l.b16 %v2212
        %v2255 = vunpack.c.h.b16 %v2212
        %v2256 = vunpack.c.l.b16 %v2213
        %v2257 = vunpack.c.h.b16 %v2213
        %v2258 = vunpack.c.l.b16 %v2214
        %v2259 = vunpack.c.h.b16 %v2214
        %v2260 = vunpack.c.l.b16 %v2215
        %v2261 = vunpack.c.h.b16 %v2215
        %v2262 = vunpack.c.l.b16 %v2216
        %v2263 = vunpack.c.h.b16 %v2216
        %v2264 = vunpack.c.l.b16 %v2217
        %v2265 = vunpack.c.h.b16 %v2217
        %v2266 = vpack.c.b16 %v2234, %v2234
        %v2267 = vpack.c.b16 %v2235, %v2235
        %v2268 = vpack.c.b16 %v2236, %v2236
        %v2269 = vpack.c.b16 %v2237, %v2237
        %v2270 = vpack.c.b16 %v2238, %v2238
        %v2271 = vpack.c.b16 %v2239, %v2239
        %v2272 = vpack.c.b16 %v2240, %v2240
        %v2273 = vpack.c.b16 %v2241, %v2241
        %v2274 = vpack.c.b16 %v2242, %v2242
        %v2275 = vpack.c.b16 %v2243, %v2243
        %v2276 = vpack.c.b16 %v2244, %v2244
        %v2277 = vpack.c.b16 %v2245, %v2245
        %v2278 = vpack.c.b16 %v2246, %v2246
        %v2279 = vpack.c.b16 %v2247, %v2247
        %v2280 = vpack.c.b16 %v2248, %v2248
        %v2281 = vpack.c.b16 %v2249, %v2249
        %v2282 = vpack.c.b16 %v2250, %v2250
        %v2283 = vpack.c.b16 %v2251, %v2251
        %v2284 = vpack.c.b16 %v2252, %v2252
        %v2285 = vpack.c.b16 %v2253, %v2253
        %v2286 = vpack.c.b16 %v2254, %v2254
        %v2287 = vpack.c.b16 %v2255, %v2255
        %v2288 = vpack.c.b16 %v2256, %v2256
        %v2289 = vpack.c.b16 %v2257, %v2257
        %v2290 = vpack.c.b16 %v2258, %v2258
        %v2291 = vpack.c.b16 %v2259, %v2259
        %v2292 = vpack.c.b16 %v2260, %v2260
        %v2293 = vpack.c.b16 %v2261, %v2261
        %v2294 = vpack.c.b16 %v2262, %v2262
        %v2295 = vpack.c.b16 %v2263, %v2263
        %v2296 = vpack.c.b16 %v2264, %v2264
        %v2297 = vpack.c.b16 %v2265, %v2265
        %vm2298 = vsmask.f32 4368
        %vm2299 = vmor %vm2102, %vm2298
        %v2301 = vshrl.u32 %v2266, 16
        %v2303 = vrot.slane %v2301, 7
        %v2304 = vshll.u32 %v2266, 16
        %v2306 = vor.u32 %v2303, %v2304
        %v2307 = vrot.slane %v2303, 4
        %v2309 = vshrl.u32 %v2267, 16
        %v2311 = vrot.slane %v2309, 7
        %v2312 = vshll.u32 %v2267, 16
        %v2314 = vor.u32 %v2311, %v2312
        %v2315 = vsel %vm2299, %v2307, %v2314
        %v2316 = vrot.slane %v2311, 4
        %v2318 = vshrl.u32 %v2268, 16
        %v2320 = vrot.slane %v2318, 7
        %v2321 = vshll.u32 %v2268, 16
        %v2323 = vor.u32 %v2320, %v2321
        %v2324 = vrot.slane %v2320, 4
        %v2326 = vshrl.u32 %v2269, 16
        %v2328 = vrot.slane %v2326, 7
        %v2329 = vshll.u32 %v2269, 16
        %v2331 = vor.u32 %v2328, %v2329
        %v2332 = vsel %vm2299, %v2324, %v2331
        %v2333 = vrot.slane %v2328, 4
        %v2335 = vshrl.u32 %v2270, 16
        %v2337 = vrot.slane %v2335, 7
        %v2338 = vshll.u32 %v2270, 16
        %v2340 = vor.u32 %v2337, %v2338
        %v2341 = vrot.slane %v2337, 4
        %v2343 = vshrl.u32 %v2271, 16
        %v2345 = vrot.slane %v2343, 7
        %v2346 = vshll.u32 %v2271, 16
        %v2348 = vor.u32 %v2345, %v2346
        %v2349 = vsel %vm2299, %v2341, %v2348
        %v2350 = vrot.slane %v2345, 4
        %v2352 = vshrl.u32 %v2272, 16
        %v2354 = vrot.slane %v2352, 7
        %v2355 = vshll.u32 %v2272, 16
        %v2357 = vor.u32 %v2354, %v2355
        %v2358 = vrot.slane %v2354, 4
        %v2360 = vshrl.u32 %v2273, 16
        %v2362 = vrot.slane %v2360, 7
        %v2363 = vshll.u32 %v2273, 16
        %v2365 = vor.u32 %v2362, %v2363
        %v2366 = vsel %vm2299, %v2358, %v2365
        %v2367 = vrot.slane %v2362, 4
        %v2369 = vshrl.u32 %v2274, 16
        %v2371 = vrot.slane %v2369, 7
        %v2372 = vshll.u32 %v2274, 16
        %v2374 = vor.u32 %v2371, %v2372
        %v2375 = vrot.slane %v2371, 4
        %v2377 = vshrl.u32 %v2275, 16
        %v2379 = vrot.slane %v2377, 7
        %v2380 = vshll.u32 %v2275, 16
        %v2382 = vor.u32 %v2379, %v2380
        %v2383 = vsel %vm2299, %v2375, %v2382
        %v2384 = vrot.slane %v2379, 4
        %v2386 = vshrl.u32 %v2276, 16
        %v2388 = vrot.slane %v2386, 7
        %v2389 = vshll.u32 %v2276, 16
        %v2391 = vor.u32 %v2388, %v2389
        %v2392 = vrot.slane %v2388, 4
        %v2394 = vshrl.u32 %v2277, 16
        %v2396 = vrot.slane %v2394, 7
        %v2397 = vshll.u32 %v2277, 16
        %v2399 = vor.u32 %v2396, %v2397
        %v2400 = vsel %vm2299, %v2392, %v2399
        %v2401 = vrot.slane %v2396, 4
        %v2403 = vshrl.u32 %v2278, 16
        %v2405 = vrot.slane %v2403, 7
        %v2406 = vshll.u32 %v2278, 16
        %v2408 = vor.u32 %v2405, %v2406
        %v2409 = vrot.slane %v2405, 4
        %v2411 = vshrl.u32 %v2279, 16
        %v2413 = vrot.slane %v2411, 7
        %v2414 = vshll.u32 %v2279, 16
        %v2416 = vor.u32 %v2413, %v2414
        %v2417 = vsel %vm2299, %v2409, %v2416
        %v2418 = vrot.slane %v2413, 4
        %v2420 = vshrl.u32 %v2280, 16
        %v2422 = vrot.slane %v2420, 7
        %v2423 = vshll.u32 %v2280, 16
        %v2425 = vor.u32 %v2422, %v2423
        %v2426 = vrot.slane %v2422, 4
        %v2428 = vshrl.u32 %v2281, 16
        %v2430 = vrot.slane %v2428, 7
        %v2431 = vshll.u32 %v2281, 16
        %v2433 = vor.u32 %v2430, %v2431
        %v2434 = vsel %vm2299, %v2426, %v2433
        %v2435 = vrot.slane %v2430, 4
        %v2437 = vshrl.u32 %v2282, 16
        %v2439 = vrot.slane %v2437, 7
        %v2440 = vshll.u32 %v2282, 16
        %v2442 = vor.u32 %v2439, %v2440
        %v2443 = vrot.slane %v2439, 4
        %v2445 = vshrl.u32 %v2283, 16
        %v2447 = vrot.slane %v2445, 7
        %v2448 = vshll.u32 %v2283, 16
        %v2450 = vor.u32 %v2447, %v2448
        %v2451 = vsel %vm2299, %v2443, %v2450
        %v2452 = vrot.slane %v2447, 4
        %v2454 = vshrl.u32 %v2284, 16
        %v2456 = vrot.slane %v2454, 7
        %v2457 = vshll.u32 %v2284, 16
        %v2459 = vor.u32 %v2456, %v2457
        %v2460 = vrot.slane %v2456, 4
        %v2462 = vshrl.u32 %v2285, 16
        %v2464 = vrot.slane %v2462, 7
        %v2465 = vshll.u32 %v2285, 16
        %v2467 = vor.u32 %v2464, %v2465
        %v2468 = vsel %vm2299, %v2460, %v2467
        %v2469 = vrot.slane %v2464, 4
        %v2471 = vshrl.u32 %v2286, 16
        %v2473 = vrot.slane %v2471, 7
        %v2474 = vshll.u32 %v2286, 16
        %v2476 = vor.u32 %v2473, %v2474
        %v2477 = vrot.slane %v2473, 4
        %v2479 = vshrl.u32 %v2287, 16
        %v2481 = vrot.slane %v2479, 7
        %v2482 = vshll.u32 %v2287, 16
        %v2484 = vor.u32 %v2481, %v2482
        %v2485 = vsel %vm2299, %v2477, %v2484
        %v2486 = vrot.slane %v2481, 4
        %v2488 = vshrl.u32 %v2288, 16
        %v2490 = vrot.slane %v2488, 7
        %v2491 = vshll.u32 %v2288, 16
        %v2493 = vor.u32 %v2490, %v2491
        %v2494 = vrot.slane %v2490, 4
        %v2496 = vshrl.u32 %v2289, 16
        %v2498 = vrot.slane %v2496, 7
        %v2499 = vshll.u32 %v2289, 16
        %v2501 = vor.u32 %v2498, %v2499
        %v2502 = vsel %vm2299, %v2494, %v2501
        %v2503 = vrot.slane %v2498, 4
        %v2505 = vshrl.u32 %v2290, 16
        %v2507 = vrot.slane %v2505, 7
        %v2508 = vshll.u32 %v2290, 16
        %v2510 = vor.u32 %v2507, %v2508
        %v2511 = vrot.slane %v2507, 4
        %v2513 = vshrl.u32 %v2291, 16
        %v2515 = vrot.slane %v2513, 7
        %v2516 = vshll.u32 %v2291, 16
        %v2518 = vor.u32 %v2515, %v2516
        %v2519 = vsel %vm2299, %v2511, %v2518
        %v2520 = vrot.slane %v2515, 4
        %v2522 = vshrl.u32 %v2292, 16
        %v2524 = vrot.slane %v2522, 7
        %v2525 = vshll.u32 %v2292, 16
        %v2527 = vor.u32 %v2524, %v2525
        %v2528 = vrot.slane %v2524, 4
        %v2530 = vshrl.u32 %v2293, 16
        %v2532 = vrot.slane %v2530, 7
        %v2533 = vshll.u32 %v2293, 16
        %v2535 = vor.u32 %v2532, %v2533
        %v2536 = vsel %vm2299, %v2528, %v2535
        %v2537 = vrot.slane %v2532, 4
        %v2539 = vshrl.u32 %v2294, 16
        %v2541 = vrot.slane %v2539, 7
        %v2542 = vshll.u32 %v2294, 16
        %v2544 = vor.u32 %v2541, %v2542
        %v2545 = vrot.slane %v2541, 4
        %v2547 = vshrl.u32 %v2295, 16
        %v2549 = vrot.slane %v2547, 7
        %v2550 = vshll.u32 %v2295, 16
        %v2552 = vor.u32 %v2549, %v2550
        %v2553 = vsel %vm2299, %v2545, %v2552
        %v2554 = vrot.slane %v2549, 4
        %v2556 = vshrl.u32 %v2296, 16
        %v2558 = vrot.slane %v2556, 7
        %v2559 = vshll.u32 %v2296, 16
        %v2561 = vor.u32 %v2558, %v2559
        %v2562 = vrot.slane %v2558, 4
        %v2564 = vshrl.u32 %v2297, 16
        %v2566 = vrot.slane %v2564, 7
        %v2567 = vshll.u32 %v2297, 16
        %v2569 = vor.u32 %v2566, %v2567
        %v2570 = vsel %vm2299, %v2562, %v2569
        %v2571 = vrot.slane %v2566, 4
        %vm2620 = vcmask 60416
        %vm2621 = vmand %vm2620, %vm2152
        %v2622 = vld [vmem:[%s2100] sm:$0xf]
        %v2623 = vsel %vm2621, %v2306, %v2622
        %2624 = vst [vmem:[%s2100] sm:$0xf] %v2623
        %2625 = vst.msk [vmem:[%s2100 + $0x4] sm:$0xf] %vm2091, %v2315
        %v2626 = vld [vmem:[%s2100 + $0x8] sm:$0x1]
        %v2627 = vsel %vm2103, %v2316, %v2626
        %2628 = vst [vmem:[%s2100 + $0x8] sm:$0x1] %v2627
        %v2629 = vld [vmem:[%s2100 + $0xc] sm:$0xf]
        %v2630 = vsel %vm2621, %v2323, %v2629
        %2631 = vst [vmem:[%s2100 + $0xc] sm:$0xf] %v2630
        %2632 = vst.msk [vmem:[%s2100 + $0x10] sm:$0xf] %vm2091, %v2332
        %v2633 = vld [vmem:[%s2100 + $0x14] sm:$0x1]
        %v2634 = vsel %vm2103, %v2333, %v2633
        %2635 = vst [vmem:[%s2100 + $0x14] sm:$0x1] %v2634
        %v2636 = vld [vmem:[%s2100 + $0x18] sm:$0xf]
        %v2637 = vsel %vm2621, %v2340, %v2636
        %2638 = vst [vmem:[%s2100 + $0x18] sm:$0xf] %v2637
        %2639 = vst.msk [vmem:[%s2100 + $0x1c] sm:$0xf] %vm2091, %v2349
        %v2640 = vld [vmem:[%s2100 + $0x20] sm:$0x1]
        %v2641 = vsel %vm2103, %v2350, %v2640
        %2642 = vst [vmem:[%s2100 + $0x20] sm:$0x1] %v2641
        %v2643 = vld [vmem:[%s2100 + $0x24] sm:$0xf]
        %v2644 = vsel %vm2621, %v2357, %v2643
        %2645 = vst [vmem:[%s2100 + $0x24] sm:$0xf] %v2644
        %2646 = vst.msk [vmem:[%s2100 + $0x28] sm:$0xf] %vm2091, %v2366
        %v2647 = vld [vmem:[%s2100 + $0x2c] sm:$0x1]
        %v2648 = vsel %vm2103, %v2367, %v2647
        %2649 = vst [vmem:[%s2100 + $0x2c] sm:$0x1] %v2648
        %v2650 = vld [vmem:[%s2100 + $0x30] sm:$0xf]
        %v2651 = vsel %vm2621, %v2374, %v2650
        %2652 = vst [vmem:[%s2100 + $0x30] sm:$0xf] %v2651
        %2653 = vst.msk [vmem:[%s2100 + $0x34] sm:$0xf] %vm2091, %v2383
        %v2654 = vld [vmem:[%s2100 + $0x38] sm:$0x1]
        %v2655 = vsel %vm2103, %v2384, %v2654
        %2656 = vst [vmem:[%s2100 + $0x38] sm:$0x1] %v2655
        %v2657 = vld [vmem:[%s2100 + $0x3c] sm:$0xf]
        %v2658 = vsel %vm2621, %v2391, %v2657
        %2659 = vst [vmem:[%s2100 + $0x3c] sm:$0xf] %v2658
        %2660 = vst.msk [vmem:[%s2100 + $0x40] sm:$0xf] %vm2091, %v2400
        %v2661 = vld [vmem:[%s2100 + $0x44] sm:$0x1]
        %v2662 = vsel %vm2103, %v2401, %v2661
        %2663 = vst [vmem:[%s2100 + $0x44] sm:$0x1] %v2662
        %v2664 = vld [vmem:[%s2100 + $0x48] sm:$0xf]
        %v2665 = vsel %vm2621, %v2408, %v2664
        %2666 = vst [vmem:[%s2100 + $0x48] sm:$0xf] %v2665
        %2667 = vst.msk [vmem:[%s2100 + $0x4c] sm:$0xf] %vm2091, %v2417
        %v2668 = vld [vmem:[%s2100 + $0x50] sm:$0x1]
        %v2669 = vsel %vm2103, %v2418, %v2668
        %2670 = vst [vmem:[%s2100 + $0x50] sm:$0x1] %v2669
        %v2671 = vld [vmem:[%s2100 + $0x54] sm:$0xf]
        %v2672 = vsel %vm2621, %v2425, %v2671
        %2673 = vst [vmem:[%s2100 + $0x54] sm:$0xf] %v2672
        %2674 = vst.msk [vmem:[%s2100 + $0x58] sm:$0xf] %vm2091, %v2434
        %v2675 = vld [vmem:[%s2100 + $0x5c] sm:$0x1]
        %v2676 = vsel %vm2103, %v2435, %v2675
        %2677 = vst [vmem:[%s2100 + $0x5c] sm:$0x1] %v2676
        %v2678 = vld [vmem:[%s2100 + $0x60] sm:$0xf]
        %v2679 = vsel %vm2621, %v2442, %v2678
        %2680 = vst [vmem:[%s2100 + $0x60] sm:$0xf] %v2679
        %2681 = vst.msk [vmem:[%s2100 + $0x64] sm:$0xf] %vm2091, %v2451
        %v2682 = vld [vmem:[%s2100 + $0x68] sm:$0x1]
        %v2683 = vsel %vm2103, %v2452, %v2682
        %2684 = vst [vmem:[%s2100 + $0x68] sm:$0x1] %v2683
        %v2685 = vld [vmem:[%s2100 + $0x6c] sm:$0xf]
        %v2686 = vsel %vm2621, %v2459, %v2685
        %2687 = vst [vmem:[%s2100 + $0x6c] sm:$0xf] %v2686
        %2688 = vst.msk [vmem:[%s2100 + $0x70] sm:$0xf] %vm2091, %v2468
        %v2689 = vld [vmem:[%s2100 + $0x74] sm:$0x1]
        %v2690 = vsel %vm2103, %v2469, %v2689
        %2691 = vst [vmem:[%s2100 + $0x74] sm:$0x1] %v2690
        %v2692 = vld [vmem:[%s2100 + $0x78] sm:$0xf]
        %v2693 = vsel %vm2621, %v2476, %v2692
        %2694 = vst [vmem:[%s2100 + $0x78] sm:$0xf] %v2693
        %2695 = vst.msk [vmem:[%s2100 + $0x7c] sm:$0xf] %vm2091, %v2485
        %v2696 = vld [vmem:[%s2100 + $0x80] sm:$0x1]
        %v2697 = vsel %vm2103, %v2486, %v2696
        %2698 = vst [vmem:[%s2100 + $0x80] sm:$0x1] %v2697
        %v2699 = vld [vmem:[%s2100 + $0x84] sm:$0xf]
        %v2700 = vsel %vm2621, %v2493, %v2699
        %2701 = vst [vmem:[%s2100 + $0x84] sm:$0xf] %v2700
        %2702 = vst.msk [vmem:[%s2100 + $0x88] sm:$0xf] %vm2091, %v2502
        %v2703 = vld [vmem:[%s2100 + $0x8c] sm:$0x1]
        %v2704 = vsel %vm2103, %v2503, %v2703
        %2705 = vst [vmem:[%s2100 + $0x8c] sm:$0x1] %v2704
        %v2706 = vld [vmem:[%s2100 + $0x90] sm:$0xf]
        %v2707 = vsel %vm2621, %v2510, %v2706
        %2708 = vst [vmem:[%s2100 + $0x90] sm:$0xf] %v2707
        %2709 = vst.msk [vmem:[%s2100 + $0x94] sm:$0xf] %vm2091, %v2519
        %v2710 = vld [vmem:[%s2100 + $0x98] sm:$0x1]
        %v2711 = vsel %vm2103, %v2520, %v2710
        %2712 = vst [vmem:[%s2100 + $0x98] sm:$0x1] %v2711
        %v2713 = vld [vmem:[%s2100 + $0x9c] sm:$0xf]
        %v2714 = vsel %vm2621, %v2527, %v2713
        %2715 = vst [vmem:[%s2100 + $0x9c] sm:$0xf] %v2714
        %2716 = vst.msk [vmem:[%s2100 + $0xa0] sm:$0xf] %vm2091, %v2536
        %v2717 = vld [vmem:[%s2100 + $0xa4] sm:$0x1]
        %v2718 = vsel %vm2103, %v2537, %v2717
        %2719 = vst [vmem:[%s2100 + $0xa4] sm:$0x1] %v2718
        %v2720 = vld [vmem:[%s2100 + $0xa8] sm:$0xf]
        %v2721 = vsel %vm2621, %v2544, %v2720
        %2722 = vst [vmem:[%s2100 + $0xa8] sm:$0xf] %v2721
        %2723 = vst.msk [vmem:[%s2100 + $0xac] sm:$0xf] %vm2091, %v2553
        %v2724 = vld [vmem:[%s2100 + $0xb0] sm:$0x1]
        %v2725 = vsel %vm2103, %v2554, %v2724
        %2726 = vst [vmem:[%s2100 + $0xb0] sm:$0x1] %v2725
        %v2727 = vld [vmem:[%s2100 + $0xb4] sm:$0xf]
        %v2728 = vsel %vm2621, %v2561, %v2727
        %2729 = vst [vmem:[%s2100 + $0xb4] sm:$0xf] %v2728
        %2730 = vst.msk [vmem:[%s2100 + $0xb8] sm:$0xf] %vm2091, %v2570
        %v2731 = vld [vmem:[%s2100 + $0xbc] sm:$0x1]
        %v2732 = vsel %vm2103, %v2571, %v2731
        %2733 = vst [vmem:[%s2100 + $0xbc] sm:$0x1] %v2732
        %v2734 = vld [vmem:[#allocation2] sm:$0xf]
        %v2735 = vld [vmem:[#allocation2 + $0x4] sm:$0xf]
        %v2736 = vld [vmem:[#allocation2 + $0x8] sm:$0x1]
        %v2737 = vld [vmem:[#allocation2 + $0xc] sm:$0xf]
        %v2738 = vld [vmem:[#allocation2 + $0x10] sm:$0xf]
        %v2739 = vld [vmem:[#allocation2 + $0x14] sm:$0x1]
        %v2740 = vld [vmem:[#allocation2 + $0x18] sm:$0xf]
        %v2741 = vld [vmem:[#allocation2 + $0x1c] sm:$0xf]
        %v2742 = vld [vmem:[#allocation2 + $0x20] sm:$0x1]
        %v2743 = vld [vmem:[#allocation2 + $0x24] sm:$0xf]
        %v2744 = vld [vmem:[#allocation2 + $0x28] sm:$0xf]
        %v2745 = vld [vmem:[#allocation2 + $0x2c] sm:$0x1]
        %v2746 = vld [vmem:[#allocation2 + $0x30] sm:$0xf]
        %v2747 = vld [vmem:[#allocation2 + $0x34] sm:$0xf]
        %v2748 = vld [vmem:[#allocation2 + $0x38] sm:$0x1]
        %v2749 = vld [vmem:[#allocation2 + $0x3c] sm:$0xf]
        %v2750 = vld [vmem:[#allocation2 + $0x40] sm:$0xf]
        %v2751 = vld [vmem:[#allocation2 + $0x44] sm:$0x1]
        %v2752 = vld [vmem:[#allocation2 + $0x48] sm:$0xf]
        %v2753 = vld [vmem:[#allocation2 + $0x4c] sm:$0xf]
        %v2754 = vld [vmem:[#allocation2 + $0x50] sm:$0x1]
        %v2755 = vld [vmem:[#allocation2 + $0x54] sm:$0xf]
        %v2756 = vld [vmem:[#allocation2 + $0x58] sm:$0xf]
        %v2757 = vld [vmem:[#allocation2 + $0x5c] sm:$0x1]
        %v2758 = vld [vmem:[#allocation2 + $0x60] sm:$0xf]
        %v2759 = vld [vmem:[#allocation2 + $0x64] sm:$0xf]
        %v2760 = vld [vmem:[#allocation2 + $0x68] sm:$0x1]
        %v2761 = vld [vmem:[#allocation2 + $0x6c] sm:$0xf]
        %v2762 = vld [vmem:[#allocation2 + $0x70] sm:$0xf]
        %v2763 = vld [vmem:[#allocation2 + $0x74] sm:$0x1]
        %v2764 = vld [vmem:[#allocation2 + $0x78] sm:$0xf]
        %v2765 = vld [vmem:[#allocation2 + $0x7c] sm:$0xf]
        %v2766 = vld [vmem:[#allocation2 + $0x80] sm:$0x1]
        %v2767 = vld [vmem:[#allocation2 + $0x84] sm:$0xf]
        %v2768 = vld [vmem:[#allocation2 + $0x88] sm:$0xf]
        %v2769 = vld [vmem:[#allocation2 + $0x8c] sm:$0x1]
        %v2770 = vld [vmem:[#allocation2 + $0x90] sm:$0xf]
        %v2771 = vld [vmem:[#allocation2 + $0x94] sm:$0xf]
        %v2772 = vld [vmem:[#allocation2 + $0x98] sm:$0x1]
        %v2773 = vld [vmem:[#allocation2 + $0x9c] sm:$0xf]
        %v2774 = vld [vmem:[#allocation2 + $0xa0] sm:$0xf]
        %v2775 = vld [vmem:[#allocation2 + $0xa4] sm:$0x1]
        %v2776 = vld [vmem:[#allocation2 + $0xa8] sm:$0xf]
        %v2777 = vld [vmem:[#allocation2 + $0xac] sm:$0xf]
        %v2778 = vld [vmem:[#allocation2 + $0xb0] sm:$0x1]
        %v2779 = vld [vmem:[#allocation2 + $0xb4] sm:$0xf]
        %v2780 = vld [vmem:[#allocation2 + $0xb8] sm:$0xf]
        %v2781 = vld [vmem:[#allocation2 + $0xbc] sm:$0x1]
        %v2782 = vld [vmem:[#allocation2 + $0xc0] sm:$0xf]
        %v2783 = vld [vmem:[#allocation2 + $0xc4] sm:$0xf]
        %v2784 = vld [vmem:[#allocation2 + $0xc8] sm:$0x1]
        %v2785 = vld [vmem:[#allocation2 + $0xcc] sm:$0xf]
        %v2786 = vld [vmem:[#allocation2 + $0xd0] sm:$0xf]
        %v2787 = vld [vmem:[#allocation2 + $0xd4] sm:$0x1]
        %vm2788 = vsmask.f32 3328
        %vm2789 = vsmask.f32 7440
        %vm2790 = vmor %vm2788, %vm2789
        %v2792 = vshrl.u32 %v2734, 16
        %v2794 = vrot.slane %v2792, 4
        %v2795 = vshll.u32 %v2734, 16
        %v2797 = vrot.slane %v2795, 5
        %v2798 = vor.u32 %v2794, %v2797
        %v2799 = vrot.slane %v2798, 4
        %v2801 = vshll.u32 %v2735, 16
        %v2803 = vrot.slane %v2801, 5
        %v2804 = vsel %vm2790, %v2799, %v2803
        %v2805 = vshrl.u32 %v2735, 16
        %v2807 = vrot.slane %v2805, 4
        %v2808 = vor.u32 %v2807, %v2803
        %v2809 = vrot.slane %v2808, 4
        %v2811 = vshll.u32 %v2736, 16
        %v2813 = vrot.slane %v2811, 5
        %v2814 = vsel %vm2790, %v2809, %v2813
        %v2816 = vshrl.u32 %v2737, 16
        %v2818 = vrot.slane %v2816, 4
        %v2819 = vshll.u32 %v2737, 16
        %v2821 = vrot.slane %v2819, 5
        %v2822 = vor.u32 %v2818, %v2821
        %v2823 = vrot.slane %v2822, 4
        %v2825 = vshll.u32 %v2738, 16
        %v2827 = vrot.slane %v2825, 5
        %v2828 = vsel %vm2790, %v2823, %v2827
        %v2829 = vshrl.u32 %v2738, 16
        %v2831 = vrot.slane %v2829, 4
        %v2832 = vor.u32 %v2831, %v2827
        %v2833 = vrot.slane %v2832, 4
        %v2835 = vshll.u32 %v2739, 16
        %v2837 = vrot.slane %v2835, 5
        %v2838 = vsel %vm2790, %v2833, %v2837
        %v2840 = vshrl.u32 %v2740, 16
        %v2842 = vrot.slane %v2840, 4
        %v2843 = vshll.u32 %v2740, 16
        %v2845 = vrot.slane %v2843, 5
        %v2846 = vor.u32 %v2842, %v2845
        %v2847 = vrot.slane %v2846, 4
        %v2849 = vshll.u32 %v2741, 16
        %v2851 = vrot.slane %v2849, 5
        %v2852 = vsel %vm2790, %v2847, %v2851
        %v2853 = vshrl.u32 %v2741, 16
        %v2855 = vrot.slane %v2853, 4
        %v2856 = vor.u32 %v2855, %v2851
        %v2857 = vrot.slane %v2856, 4
        %v2859 = vshll.u32 %v2742, 16
        %v2861 = vrot.slane %v2859, 5
        %v2862 = vsel %vm2790, %v2857, %v2861
        %v2864 = vshrl.u32 %v2743, 16
        %v2866 = vrot.slane %v2864, 4
        %v2867 = vshll.u32 %v2743, 16
        %v2869 = vrot.slane %v2867, 5
        %v2870 = vor.u32 %v2866, %v2869
        %v2871 = vrot.slane %v2870, 4
        %v2873 = vshll.u32 %v2744, 16
        %v2875 = vrot.slane %v2873, 5
        %v2876 = vsel %vm2790, %v2871, %v2875
        %v2877 = vshrl.u32 %v2744, 16
        %v2879 = vrot.slane %v2877, 4
        %v2880 = vor.u32 %v2879, %v2875
        %v2881 = vrot.slane %v2880, 4
        %v2883 = vshll.u32 %v2745, 16
        %v2885 = vrot.slane %v2883, 5
        %v2886 = vsel %vm2790, %v2881, %v2885
        %v2888 = vshrl.u32 %v2746, 16
        %v2890 = vrot.slane %v2888, 4
        %v2891 = vshll.u32 %v2746, 16
        %v2893 = vrot.slane %v2891, 5
        %v2894 = vor.u32 %v2890, %v2893
        %v2895 = vrot.slane %v2894, 4
        %v2897 = vshll.u32 %v2747, 16
        %v2899 = vrot.slane %v2897, 5
        %v2900 = vsel %vm2790, %v2895, %v2899
        %v2901 = vshrl.u32 %v2747, 16
        %v2903 = vrot.slane %v2901, 4
        %v2904 = vor.u32 %v2903, %v2899
        %v2905 = vrot.slane %v2904, 4
        %v2907 = vshll.u32 %v2748, 16
        %v2909 = vrot.slane %v2907, 5
        %v2910 = vsel %vm2790, %v2905, %v2909
        %v2912 = vshrl.u32 %v2749, 16
        %v2914 = vrot.slane %v2912, 4
        %v2915 = vshll.u32 %v2749, 16
        %v2917 = vrot.slane %v2915, 5
        %v2918 = vor.u32 %v2914, %v2917
        %v2919 = vrot.slane %v2918, 4
        %v2921 = vshll.u32 %v2750, 16
        %v2923 = vrot.slane %v2921, 5
        %v2924 = vsel %vm2790, %v2919, %v2923
        %v2925 = vshrl.u32 %v2750, 16
        %v2927 = vrot.slane %v2925, 4
        %v2928 = vor.u32 %v2927, %v2923
        %v2929 = vrot.slane %v2928, 4
        %v2931 = vshll.u32 %v2751, 16
        %v2933 = vrot.slane %v2931, 5
        %v2934 = vsel %vm2790, %v2929, %v2933
        %v2936 = vshrl.u32 %v2752, 16
        %v2938 = vrot.slane %v2936, 4
        %v2939 = vshll.u32 %v2752, 16
        %v2941 = vrot.slane %v2939, 5
        %v2942 = vor.u32 %v2938, %v2941
        %v2943 = vrot.slane %v2942, 4
        %v2945 = vshll.u32 %v2753, 16
        %v2947 = vrot.slane %v2945, 5
        %v2948 = vsel %vm2790, %v2943, %v2947
        %v2949 = vshrl.u32 %v2753, 16
        %v2951 = vrot.slane %v2949, 4
        %v2952 = vor.u32 %v2951, %v2947
        %v2953 = vrot.slane %v2952, 4
        %v2955 = vshll.u32 %v2754, 16
        %v2957 = vrot.slane %v2955, 5
        %v2958 = vsel %vm2790, %v2953, %v2957
        %v2960 = vshrl.u32 %v2755, 16
        %v2962 = vrot.slane %v2960, 4
        %v2963 = vshll.u32 %v2755, 16
        %v2965 = vrot.slane %v2963, 5
        %v2966 = vor.u32 %v2962, %v2965
        %v2967 = vrot.slane %v2966, 4
        %v2969 = vshll.u32 %v2756, 16
        %v2971 = vrot.slane %v2969, 5
        %v2972 = vsel %vm2790, %v2967, %v2971
        %v2973 = vshrl.u32 %v2756, 16
        %v2975 = vrot.slane %v2973, 4
        %v2976 = vor.u32 %v2975, %v2971
        %v2977 = vrot.slane %v2976, 4
        %v2979 = vshll.u32 %v2757, 16
        %v2981 = vrot.slane %v2979, 5
        %v2982 = vsel %vm2790, %v2977, %v2981
        %v2984 = vshrl.u32 %v2758, 16
        %v2986 = vrot.slane %v2984, 4
        %v2987 = vshll.u32 %v2758, 16
        %v2989 = vrot.slane %v2987, 5
        %v2990 = vor.u32 %v2986, %v2989
        %v2991 = vrot.slane %v2990, 4
        %v2993 = vshll.u32 %v2759, 16
        %v2995 = vrot.slane %v2993, 5
        %v2996 = vsel %vm2790, %v2991, %v2995
        %v2997 = vshrl.u32 %v2759, 16
        %v2999 = vrot.slane %v2997, 4
        %v3000 = vor.u32 %v2999, %v2995
        %v3001 = vrot.slane %v3000, 4
        %v3003 = vshll.u32 %v2760, 16
        %v3005 = vrot.slane %v3003, 5
        %v3006 = vsel %vm2790, %v3001, %v3005
        %v3008 = vshrl.u32 %v2761, 16
        %v3010 = vrot.slane %v3008, 4
        %v3011 = vshll.u32 %v2761, 16
        %v3013 = vrot.slane %v3011, 5
        %v3014 = vor.u32 %v3010, %v3013
        %v3015 = vrot.slane %v3014, 4
        %v3017 = vshll.u32 %v2762, 16
        %v3019 = vrot.slane %v3017, 5
        %v3020 = vsel %vm2790, %v3015, %v3019
        %v3021 = vshrl.u32 %v2762, 16
        %v3023 = vrot.slane %v3021, 4
        %v3024 = vor.u32 %v3023, %v3019
        %v3025 = vrot.slane %v3024, 4
        %v3027 = vshll.u32 %v2763, 16
        %v3029 = vrot.slane %v3027, 5
        %v3030 = vsel %vm2790, %v3025, %v3029
        %v3032 = vshrl.u32 %v2764, 16
        %v3034 = vrot.slane %v3032, 4
        %v3035 = vshll.u32 %v2764, 16
        %v3037 = vrot.slane %v3035, 5
        %v3038 = vor.u32 %v3034, %v3037
        %v3039 = vrot.slane %v3038, 4
        %v3041 = vshll.u32 %v2765, 16
        %v3043 = vrot.slane %v3041, 5
        %v3044 = vsel %vm2790, %v3039, %v3043
        %v3045 = vshrl.u32 %v2765, 16
        %v3047 = vrot.slane %v3045, 4
        %v3048 = vor.u32 %v3047, %v3043
        %v3049 = vrot.slane %v3048, 4
        %v3051 = vshll.u32 %v2766, 16
        %v3053 = vrot.slane %v3051, 5
        %v3054 = vsel %vm2790, %v3049, %v3053
        %v3056 = vshrl.u32 %v2767, 16
        %v3058 = vrot.slane %v3056, 4
        %v3059 = vshll.u32 %v2767, 16
        %v3061 = vrot.slane %v3059, 5
        %v3062 = vor.u32 %v3058, %v3061
        %v3063 = vrot.slane %v3062, 4
        %v3065 = vshll.u32 %v2768, 16
        %v3067 = vrot.slane %v3065, 5
        %v3068 = vsel %vm2790, %v3063, %v3067
        %v3069 = vshrl.u32 %v2768, 16
        %v3071 = vrot.slane %v3069, 4
        %v3072 = vor.u32 %v3071, %v3067
        %v3073 = vrot.slane %v3072, 4
        %v3075 = vshll.u32 %v2769, 16
        %v3077 = vrot.slane %v3075, 5
        %v3078 = vsel %vm2790, %v3073, %v3077
        %v3080 = vshrl.u32 %v2770, 16
        %v3082 = vrot.slane %v3080, 4
        %v3083 = vshll.u32 %v2770, 16
        %v3085 = vrot.slane %v3083, 5
        %v3086 = vor.u32 %v3082, %v3085
        %v3087 = vrot.slane %v3086, 4
        %v3089 = vshll.u32 %v2771, 16
        %v3091 = vrot.slane %v3089, 5
        %v3092 = vsel %vm2790, %v3087, %v3091
        %v3093 = vshrl.u32 %v2771, 16
        %v3095 = vrot.slane %v3093, 4
        %v3096 = vor.u32 %v3095, %v3091
        %v3097 = vrot.slane %v3096, 4
        %v3099 = vshll.u32 %v2772, 16
        %v3101 = vrot.slane %v3099, 5
        %v3102 = vsel %vm2790, %v3097, %v3101
        %v3104 = vshrl.u32 %v2773, 16
        %v3106 = vrot.slane %v3104, 4
        %v3107 = vshll.u32 %v2773, 16
        %v3109 = vrot.slane %v3107, 5
        %v3110 = vor.u32 %v3106, %v3109
        %v3111 = vrot.slane %v3110, 4
        %v3113 = vshll.u32 %v2774, 16
        %v3115 = vrot.slane %v3113, 5
        %v3116 = vsel %vm2790, %v3111, %v3115
        %v3117 = vshrl.u32 %v2774, 16
        %v3119 = vrot.slane %v3117, 4
        %v3120 = vor.u32 %v3119, %v3115
        %v3121 = vrot.slane %v3120, 4
        %v3123 = vshll.u32 %v2775, 16
        %v3125 = vrot.slane %v3123, 5
        %v3126 = vsel %vm2790, %v3121, %v3125
        %v3128 = vshrl.u32 %v2776, 16
        %v3130 = vrot.slane %v3128, 4
        %v3131 = vshll.u32 %v2776, 16
        %v3133 = vrot.slane %v3131, 5
        %v3134 = vor.u32 %v3130, %v3133
        %v3135 = vrot.slane %v3134, 4
        %v3137 = vshll.u32 %v2777, 16
        %v3139 = vrot.slane %v3137, 5
        %v3140 = vsel %vm2790, %v3135, %v3139
        %v3141 = vshrl.u32 %v2777, 16
        %v3143 = vrot.slane %v3141, 4
        %v3144 = vor.u32 %v3143, %v3139
        %v3145 = vrot.slane %v3144, 4
        %v3147 = vshll.u32 %v2778, 16
        %v3149 = vrot.slane %v3147, 5
        %v3150 = vsel %vm2790, %v3145, %v3149
        %v3152 = vshrl.u32 %v2779, 16
        %v3154 = vrot.slane %v3152, 4
        %v3155 = vshll.u32 %v2779, 16
        %v3157 = vrot.slane %v3155, 5
        %v3158 = vor.u32 %v3154, %v3157
        %v3159 = vrot.slane %v3158, 4
        %v3161 = vshll.u32 %v2780, 16
        %v3163 = vrot.slane %v3161, 5
        %v3164 = vsel %vm2790, %v3159, %v3163
        %v3165 = vshrl.u32 %v2780, 16
        %v3167 = vrot.slane %v3165, 4
        %v3168 = vor.u32 %v3167, %v3163
        %v3169 = vrot.slane %v3168, 4
        %v3171 = vshll.u32 %v2781, 16
        %v3173 = vrot.slane %v3171, 5
        %v3174 = vsel %vm2790, %v3169, %v3173
        %vm3223 = vcmask 1042432
        %vm3224 = vcmask 1046532
        %vm3225 = vmor %vm3223, %vm3224
        %v3226 = vrot.slane %v2734, 5
        %v3227 = vrot.slane %v3226, 4
        %v3228 = vrot.slane %v2735, 5
        %v3229 = vsel %vm3225, %v3227, %v3228
        %v3230 = vrot.slane %v3228, 4
        %v3231 = vrot.slane %v2736, 5
        %v3232 = vsel %vm3225, %v3230, %v3231
        %v3233 = vrot.slane %v2737, 5
        %v3234 = vrot.slane %v3233, 4
        %v3235 = vrot.slane %v2738, 5
        %v3236 = vsel %vm3225, %v3234, %v3235
        %v3237 = vrot.slane %v3235, 4
        %v3238 = vrot.slane %v2739, 5
        %v3239 = vsel %vm3225, %v3237, %v3238
        %v3240 = vrot.slane %v2740, 5
        %v3241 = vrot.slane %v3240, 4
        %v3242 = vrot.slane %v2741, 5
        %v3243 = vsel %vm3225, %v3241, %v3242
        %v3244 = vrot.slane %v3242, 4
        %v3245 = vrot.slane %v2742, 5
        %v3246 = vsel %vm3225, %v3244, %v3245
        %v3247 = vrot.slane %v2743, 5
        %v3248 = vrot.slane %v3247, 4
        %v3249 = vrot.slane %v2744, 5
        %v3250 = vsel %vm3225, %v3248, %v3249
        %v3251 = vrot.slane %v3249, 4
        %v3252 = vrot.slane %v2745, 5
        %v3253 = vsel %vm3225, %v3251, %v3252
        %v3254 = vrot.slane %v2746, 5
        %v3255 = vrot.slane %v3254, 4
        %v3256 = vrot.slane %v2747, 5
        %v3257 = vsel %vm3225, %v3255, %v3256
        %v3258 = vrot.slane %v3256, 4
        %v3259 = vrot.slane %v2748, 5
        %v3260 = vsel %vm3225, %v3258, %v3259
        %v3261 = vrot.slane %v2749, 5
        %v3262 = vrot.slane %v3261, 4
        %v3263 = vrot.slane %v2750, 5
        %v3264 = vsel %vm3225, %v3262, %v3263
        %v3265 = vrot.slane %v3263, 4
        %v3266 = vrot.slane %v2751, 5
        %v3267 = vsel %vm3225, %v3265, %v3266
        %v3268 = vrot.slane %v2752, 5
        %v3269 = vrot.slane %v3268, 4
        %v3270 = vrot.slane %v2753, 5
        %v3271 = vsel %vm3225, %v3269, %v3270
        %v3272 = vrot.slane %v3270, 4
        %v3273 = vrot.slane %v2754, 5
        %v3274 = vsel %vm3225, %v3272, %v3273
        %v3275 = vrot.slane %v2755, 5
        %v3276 = vrot.slane %v3275, 4
        %v3277 = vrot.slane %v2756, 5
        %v3278 = vsel %vm3225, %v3276, %v3277
        %v3279 = vrot.slane %v3277, 4
        %v3280 = vrot.slane %v2757, 5
        %v3281 = vsel %vm3225, %v3279, %v3280
        %v3282 = vrot.slane %v2758, 5
        %v3283 = vrot.slane %v3282, 4
        %v3284 = vrot.slane %v2759, 5
        %v3285 = vsel %vm3225, %v3283, %v3284
        %v3286 = vrot.slane %v3284, 4
        %v3287 = vrot.slane %v2760, 5
        %v3288 = vsel %vm3225, %v3286, %v3287
        %v3289 = vrot.slane %v2761, 5
        %v3290 = vrot.slane %v3289, 4
        %v3291 = vrot.slane %v2762, 5
        %v3292 = vsel %vm3225, %v3290, %v3291
        %v3293 = vrot.slane %v3291, 4
        %v3294 = vrot.slane %v2763, 5
        %v3295 = vsel %vm3225, %v3293, %v3294
        %v3296 = vrot.slane %v2764, 5
        %v3297 = vrot.slane %v3296, 4
        %v3298 = vrot.slane %v2765, 5
        %v3299 = vsel %vm3225, %v3297, %v3298
        %v3300 = vrot.slane %v3298, 4
        %v3301 = vrot.slane %v2766, 5
        %v3302 = vsel %vm3225, %v3300, %v3301
        %v3303 = vrot.slane %v2767, 5
        %v3304 = vrot.slane %v3303, 4
        %v3305 = vrot.slane %v2768, 5
        %v3306 = vsel %vm3225, %v3304, %v3305
        %v3307 = vrot.slane %v3305, 4
        %v3308 = vrot.slane %v2769, 5
        %v3309 = vsel %vm3225, %v3307, %v3308
        %v3310 = vrot.slane %v2770, 5
        %v3311 = vrot.slane %v3310, 4
        %v3312 = vrot.slane %v2771, 5
        %v3313 = vsel %vm3225, %v3311, %v3312
        %v3314 = vrot.slane %v3312, 4
        %v3315 = vrot.slane %v2772, 5
        %v3316 = vsel %vm3225, %v3314, %v3315
        %v3317 = vrot.slane %v2773, 5
        %v3318 = vrot.slane %v3317, 4
        %v3319 = vrot.slane %v2774, 5
        %v3320 = vsel %vm3225, %v3318, %v3319
        %v3321 = vrot.slane %v3319, 4
        %v3322 = vrot.slane %v2775, 5
        %v3323 = vsel %vm3225, %v3321, %v3322
        %v3324 = vrot.slane %v2776, 5
        %v3325 = vrot.slane %v3324, 4
        %v3326 = vrot.slane %v2777, 5
        %v3327 = vsel %vm3225, %v3325, %v3326
        %v3328 = vrot.slane %v3326, 4
        %v3329 = vrot.slane %v2778, 5
        %v3330 = vsel %vm3225, %v3328, %v3329
        %v3331 = vrot.slane %v2779, 5
        %v3332 = vrot.slane %v3331, 4
        %v3333 = vrot.slane %v2780, 5
        %v3334 = vsel %vm3225, %v3332, %v3333
        %v3335 = vrot.slane %v3333, 4
        %v3336 = vrot.slane %v2781, 5
        %v3337 = vsel %vm3225, %v3335, %v3336
        %v3339 = vshrl.u32 %v2782, 16
        %v3341 = vrot.slane %v3339, 4
        %v3342 = vshll.u32 %v2782, 16
        %v3344 = vrot.slane %v3342, 5
        %v3345 = vor.u32 %v3341, %v3344
        %v3346 = vrot.slane %v3345, 4
        %v3348 = vshll.u32 %v2783, 16
        %v3350 = vrot.slane %v3348, 5
        %v3351 = vsel %vm2790, %v3346, %v3350
        %v3352 = vshrl.u32 %v2783, 16
        %v3354 = vrot.slane %v3352, 4
        %v3355 = vor.u32 %v3354, %v3350
        %v3356 = vrot.slane %v3355, 4
        %v3358 = vshll.u32 %v2784, 16
        %v3360 = vrot.slane %v3358, 5
        %v3361 = vsel %vm2790, %v3356, %v3360
        %v3365 = vrot.slane %v2782, 5
        %v3366 = vrot.slane %v3365, 4
        %v3367 = vrot.slane %v2783, 5
        %v3368 = vsel %vm3225, %v3366, %v3367
        %v3369 = vrot.slane %v3367, 4
        %v3370 = vrot.slane %v2784, 5
        %v3371 = vsel %vm3225, %v3369, %v3370
        %v3373 = vshrl.u32 %v2785, 16
        %v3375 = vrot.slane %v3373, 4
        %v3376 = vshll.u32 %v2785, 16
        %v3378 = vrot.slane %v3376, 5
        %v3379 = vor.u32 %v3375, %v3378
        %v3380 = vrot.slane %v3379, 4
        %v3382 = vshll.u32 %v2786, 16
        %v3384 = vrot.slane %v3382, 5
        %v3385 = vsel %vm2790, %v3380, %v3384
        %v3386 = vshrl.u32 %v2786, 16
        %v3388 = vrot.slane %v3386, 4
        %v3389 = vor.u32 %v3388, %v3384
        %v3390 = vrot.slane %v3389, 4
        %v3392 = vshll.u32 %v2787, 16
        %v3394 = vrot.slane %v3392, 5
        %v3395 = vsel %vm2790, %v3390, %v3394
        %v3399 = vrot.slane %v2785, 5
        %v3400 = vrot.slane %v3399, 4
        %v3401 = vrot.slane %v2786, 5
        %v3402 = vsel %vm3225, %v3400, %v3401
        %v3403 = vrot.slane %v3401, 4
        %v3404 = vrot.slane %v2787, 5
        %v3405 = vsel %vm3225, %v3403, %v3404
        %v3406 = vunpack.c.l.b16 %v2734
        %v3407 = vunpack.c.l.b16 %v2735
        %v3408 = vunpack.c.l.b16 %v2737
        %v3409 = vunpack.c.l.b16 %v2738
        %v3410 = vunpack.c.l.b16 %v2740
        %v3411 = vunpack.c.l.b16 %v2741
        %v3412 = vunpack.c.l.b16 %v2743
        %v3413 = vunpack.c.l.b16 %v2744
        %v3414 = vunpack.c.l.b16 %v2746
        %v3415 = vunpack.c.l.b16 %v2747
        %v3416 = vunpack.c.l.b16 %v2749
        %v3417 = vunpack.c.l.b16 %v2750
        %v3418 = vunpack.c.l.b16 %v2752
        %v3419 = vunpack.c.l.b16 %v2753
        %v3420 = vunpack.c.l.b16 %v2755
        %v3421 = vunpack.c.l.b16 %v2756
        %v3422 = vunpack.c.l.b16 %v2758
        %v3423 = vunpack.c.l.b16 %v2759
        %v3424 = vunpack.c.l.b16 %v2761
        %v3425 = vunpack.c.l.b16 %v2762
        %v3426 = vunpack.c.l.b16 %v2764
        %v3427 = vunpack.c.l.b16 %v2765
        %v3428 = vunpack.c.l.b16 %v2767
        %v3429 = vunpack.c.l.b16 %v2768
        %v3430 = vunpack.c.l.b16 %v2770
        %v3431 = vunpack.c.l.b16 %v2771
        %v3432 = vunpack.c.l.b16 %v2773
        %v3433 = vunpack.c.l.b16 %v2774
        %v3434 = vunpack.c.l.b16 %v2776
        %v3435 = vunpack.c.l.b16 %v2777
        %v3436 = vunpack.c.l.b16 %v2779
        %v3437 = vunpack.c.l.b16 %v2780
        %v3438 = vpack.c.b16 %v3407, %v3406
        %v3439 = vpack.c.b16 %v3409, %v3408
        %v3440 = vpack.c.b16 %v3411, %v3410
        %v3441 = vpack.c.b16 %v3413, %v3412
        %v3442 = vpack.c.b16 %v3415, %v3414
        %v3443 = vpack.c.b16 %v3417, %v3416
        %v3444 = vpack.c.b16 %v3419, %v3418
        %v3445 = vpack.c.b16 %v3421, %v3420
        %v3446 = vpack.c.b16 %v3423, %v3422
        %v3447 = vpack.c.b16 %v3425, %v3424
        %v3448 = vpack.c.b16 %v3427, %v3426
        %v3449 = vpack.c.b16 %v3429, %v3428
        %v3450 = vpack.c.b16 %v3431, %v3430
        %v3451 = vpack.c.b16 %v3433, %v3432
        %v3452 = vpack.c.b16 %v3435, %v3434
        %v3453 = vpack.c.b16 %v3437, %v3436
        %v3454 = vunpack.c.l.b16 %v2804
        %v3455 = vunpack.c.l.b16 %v2814
        %v3456 = vunpack.c.l.b16 %v2828
        %v3457 = vunpack.c.l.b16 %v2838
        %v3458 = vunpack.c.l.b16 %v2852
        %v3459 = vunpack.c.l.b16 %v2862
        %v3460 = vunpack.c.l.b16 %v2876
        %v3461 = vunpack.c.l.b16 %v2886
        %v3462 = vunpack.c.l.b16 %v2900
        %v3463 = vunpack.c.l.b16 %v2910
        %v3464 = vunpack.c.l.b16 %v2924
        %v3465 = vunpack.c.l.b16 %v2934
        %v3466 = vunpack.c.l.b16 %v2948
        %v3467 = vunpack.c.l.b16 %v2958
        %v3468 = vunpack.c.l.b16 %v2972
        %v3469 = vunpack.c.l.b16 %v2982
        %v3470 = vunpack.c.l.b16 %v2996
        %v3471 = vunpack.c.l.b16 %v3006
        %v3472 = vunpack.c.l.b16 %v3020
        %v3473 = vunpack.c.l.b16 %v3030
        %v3474 = vunpack.c.l.b16 %v3044
        %v3475 = vunpack.c.l.b16 %v3054
        %v3476 = vunpack.c.l.b16 %v3068
        %v3477 = vunpack.c.l.b16 %v3078
        %v3478 = vunpack.c.l.b16 %v3092
        %v3479 = vunpack.c.l.b16 %v3102
        %v3480 = vunpack.c.l.b16 %v3116
        %v3481 = vunpack.c.l.b16 %v3126
        %v3482 = vunpack.c.l.b16 %v3140
        %v3483 = vunpack.c.l.b16 %v3150
        %v3484 = vunpack.c.l.b16 %v3164
        %v3485 = vunpack.c.l.b16 %v3174
        %v3486 = vpack.c.b16 %v3455, %v3454
        %v3487 = vpack.c.b16 %v3457, %v3456
        %v3488 = vpack.c.b16 %v3459, %v3458
        %v3489 = vpack.c.b16 %v3461, %v3460
        %v3490 = vpack.c.b16 %v3463, %v3462
        %v3491 = vpack.c.b16 %v3465, %v3464
        %v3492 = vpack.c.b16 %v3467, %v3466
        %v3493 = vpack.c.b16 %v3469, %v3468
        %v3494 = vpack.c.b16 %v3471, %v3470
        %v3495 = vpack.c.b16 %v3473, %v3472
        %v3496 = vpack.c.b16 %v3475, %v3474
        %v3497 = vpack.c.b16 %v3477, %v3476
        %v3498 = vpack.c.b16 %v3479, %v3478
        %v3499 = vpack.c.b16 %v3481, %v3480
        %v3500 = vpack.c.b16 %v3483, %v3482
        %v3501 = vpack.c.b16 %v3485, %v3484
        %3502 = vrot.lane.b32.xlu0 %v3486, 8
        %v3503 = vpop.permute.xlu0 %3502
        %3504 = vrot.lane.b32.xlu0 %v3487, 8
        %v3505 = vpop.permute.xlu0 %3504
        %3506 = vrot.lane.b32.xlu0 %v3488, 8
        %v3507 = vpop.permute.xlu0 %3506
        %3508 = vrot.lane.b32.xlu0 %v3489, 8
        %v3509 = vpop.permute.xlu0 %3508
        %3510 = vrot.lane.b32.xlu0 %v3490, 8
        %v3511 = vpop.permute.xlu0 %3510
        %3512 = vrot.lane.b32.xlu0 %v3491, 8
        %v3513 = vpop.permute.xlu0 %3512
        %3514 = vrot.lane.b32.xlu0 %v3492, 8
        %v3515 = vpop.permute.xlu0 %3514
        %3516 = vrot.lane.b32.xlu0 %v3493, 8
        %v3517 = vpop.permute.xlu0 %3516
        %3518 = vrot.lane.b32.xlu0 %v3494, 8
        %v3519 = vpop.permute.xlu0 %3518
        %3520 = vrot.lane.b32.xlu0 %v3495, 8
        %v3521 = vpop.permute.xlu0 %3520
        %3522 = vrot.lane.b32.xlu0 %v3496, 8
        %v3523 = vpop.permute.xlu0 %3522
        %3524 = vrot.lane.b32.xlu0 %v3497, 8
        %v3525 = vpop.permute.xlu0 %3524
        %3526 = vrot.lane.b32.xlu0 %v3498, 8
        %v3527 = vpop.permute.xlu0 %3526
        %3528 = vrot.lane.b32.xlu0 %v3499, 8
        %v3529 = vpop.permute.xlu0 %3528
        %3530 = vrot.lane.b32.xlu0 %v3500, 8
        %v3531 = vpop.permute.xlu0 %3530
        %3532 = vrot.lane.b32.xlu0 %v3501, 8
        %v3533 = vpop.permute.xlu0 %3532
        %v3534 = vunpack.c.l.b16 %v3229
        %v3535 = vunpack.c.l.b16 %v3232
        %v3536 = vunpack.c.l.b16 %v3236
        %v3537 = vunpack.c.l.b16 %v3239
        %v3538 = vunpack.c.l.b16 %v3243
        %v3539 = vunpack.c.l.b16 %v3246
        %v3540 = vunpack.c.l.b16 %v3250
        %v3541 = vunpack.c.l.b16 %v3253
        %v3542 = vunpack.c.l.b16 %v3257
        %v3543 = vunpack.c.l.b16 %v3260
        %v3544 = vunpack.c.l.b16 %v3264
        %v3545 = vunpack.c.l.b16 %v3267
        %v3546 = vunpack.c.l.b16 %v3271
        %v3547 = vunpack.c.l.b16 %v3274
        %v3548 = vunpack.c.l.b16 %v3278
        %v3549 = vunpack.c.l.b16 %v3281
        %v3550 = vunpack.c.l.b16 %v3285
        %v3551 = vunpack.c.l.b16 %v3288
        %v3552 = vunpack.c.l.b16 %v3292
        %v3553 = vunpack.c.l.b16 %v3295
        %v3554 = vunpack.c.l.b16 %v3299
        %v3555 = vunpack.c.l.b16 %v3302
        %v3556 = vunpack.c.l.b16 %v3306
        %v3557 = vunpack.c.l.b16 %v3309
        %v3558 = vunpack.c.l.b16 %v3313
        %v3559 = vunpack.c.l.b16 %v3316
        %v3560 = vunpack.c.l.b16 %v3320
        %v3561 = vunpack.c.l.b16 %v3323
        %v3562 = vunpack.c.l.b16 %v3327
        %v3563 = vunpack.c.l.b16 %v3330
        %v3564 = vunpack.c.l.b16 %v3334
        %v3565 = vunpack.c.l.b16 %v3337
        %v3566 = vpack.c.b16 %v3535, %v3534
        %v3567 = vpack.c.b16 %v3537, %v3536
        %v3568 = vpack.c.b16 %v3539, %v3538
        %v3569 = vpack.c.b16 %v3541, %v3540
        %v3570 = vpack.c.b16 %v3543, %v3542
        %v3571 = vpack.c.b16 %v3545, %v3544
        %v3572 = vpack.c.b16 %v3547, %v3546
        %v3573 = vpack.c.b16 %v3549, %v3548
        %v3574 = vpack.c.b16 %v3551, %v3550
        %v3575 = vpack.c.b16 %v3553, %v3552
        %v3576 = vpack.c.b16 %v3555, %v3554
        %v3577 = vpack.c.b16 %v3557, %v3556
        %v3578 = vpack.c.b16 %v3559, %v3558
        %v3579 = vpack.c.b16 %v3561, %v3560
        %v3580 = vpack.c.b16 %v3563, %v3562
        %v3581 = vpack.c.b16 %v3565, %v3564
        %3582 = vrot.lane.b32.xlu0 %v3566, 16
        %v3583 = vpop.permute.xlu0 %3582
        %3584 = vrot.lane.b32.xlu0 %v3567, 16
        %v3585 = vpop.permute.xlu0 %3584
        %3586 = vrot.lane.b32.xlu0 %v3568, 16
        %v3587 = vpop.permute.xlu0 %3586
        %3588 = vrot.lane.b32.xlu0 %v3569, 16
        %v3589 = vpop.permute.xlu0 %3588
        %3590 = vrot.lane.b32.xlu0 %v3570, 16
        %v3591 = vpop.permute.xlu0 %3590
        %3592 = vrot.lane.b32.xlu0 %v3571, 16
        %v3593 = vpop.permute.xlu0 %3592
        %3594 = vrot.lane.b32.xlu0 %v3572, 16
        %v3595 = vpop.permute.xlu0 %3594
        %3596 = vrot.lane.b32.xlu0 %v3573, 16
        %v3597 = vpop.permute.xlu0 %3596
        %3598 = vrot.lane.b32.xlu0 %v3574, 16
        %v3599 = vpop.permute.xlu0 %3598
        %3600 = vrot.lane.b32.xlu0 %v3575, 16
        %v3601 = vpop.permute.xlu0 %3600
        %3602 = vrot.lane.b32.xlu0 %v3576, 16
        %v3603 = vpop.permute.xlu0 %3602
        %3604 = vrot.lane.b32.xlu0 %v3577, 16
        %v3605 = vpop.permute.xlu0 %3604
        %3606 = vrot.lane.b32.xlu0 %v3578, 16
        %v3607 = vpop.permute.xlu0 %3606
        %3608 = vrot.lane.b32.xlu0 %v3579, 16
        %v3609 = vpop.permute.xlu0 %3608
        %3610 = vrot.lane.b32.xlu0 %v3580, 16
        %v3611 = vpop.permute.xlu0 %3610
        %3612 = vrot.lane.b32.xlu0 %v3581, 16
        %v3613 = vpop.permute.xlu0 %3612
        %v3614 = vunpack.c.l.b16 %v2782
        %v3615 = vunpack.c.l.b16 %v2783
        %v3616 = vpack.c.b16 %v3615, %v3614
        %3617 = vrot.lane.b32.xlu0 %v3439, 24
        %v3618 = vpop.permute.xlu0 %3617
        %3619 = vrot.lane.b32.xlu0 %v3440, 24
        %v3620 = vpop.permute.xlu0 %3619
        %3621 = vrot.lane.b32.xlu0 %v3441, 24
        %v3622 = vpop.permute.xlu0 %3621
        %3623 = vrot.lane.b32.xlu0 %v3442, 24
        %v3624 = vpop.permute.xlu0 %3623
        %3625 = vrot.lane.b32.xlu0 %v3443, 24
        %v3626 = vpop.permute.xlu0 %3625
        %3627 = vrot.lane.b32.xlu0 %v3444, 24
        %v3628 = vpop.permute.xlu0 %3627
        %3629 = vrot.lane.b32.xlu0 %v3445, 24
        %v3630 = vpop.permute.xlu0 %3629
        %3631 = vrot.lane.b32.xlu0 %v3446, 24
        %v3632 = vpop.permute.xlu0 %3631
        %3633 = vrot.lane.b32.xlu0 %v3447, 24
        %v3634 = vpop.permute.xlu0 %3633
        %3635 = vrot.lane.b32.xlu0 %v3448, 24
        %v3636 = vpop.permute.xlu0 %3635
        %3637 = vrot.lane.b32.xlu0 %v3449, 24
        %v3638 = vpop.permute.xlu0 %3637
        %3639 = vrot.lane.b32.xlu0 %v3450, 24
        %v3640 = vpop.permute.xlu0 %3639
        %3641 = vrot.lane.b32.xlu0 %v3451, 24
        %v3642 = vpop.permute.xlu0 %3641
        %3643 = vrot.lane.b32.xlu0 %v3452, 24
        %v3644 = vpop.permute.xlu0 %3643
        %3645 = vrot.lane.b32.xlu0 %v3453, 24
        %v3646 = vpop.permute.xlu0 %3645
        %3647 = vrot.lane.b32.xlu0 %v3616, 24
        %v3648 = vpop.permute.xlu0 %3647
        %v3649 = vunpack.c.l.b16 %v3351
        %v3650 = vunpack.c.l.b16 %v3361
        %v3651 = vpack.c.b16 %v3650, %v3649
        %3652 = vrot.lane.b32.xlu0 %v3487, 32
        %v3653 = vpop.permute.xlu0 %3652
        %3654 = vrot.lane.b32.xlu0 %v3488, 32
        %v3655 = vpop.permute.xlu0 %3654
        %3656 = vrot.lane.b32.xlu0 %v3489, 32
        %v3657 = vpop.permute.xlu0 %3656
        %3658 = vrot.lane.b32.xlu0 %v3490, 32
        %v3659 = vpop.permute.xlu0 %3658
        %3660 = vrot.lane.b32.xlu0 %v3491, 32
        %v3661 = vpop.permute.xlu0 %3660
        %3662 = vrot.lane.b32.xlu0 %v3492, 32
        %v3663 = vpop.permute.xlu0 %3662
        %3664 = vrot.lane.b32.xlu0 %v3493, 32
        %v3665 = vpop.permute.xlu0 %3664
        %3666 = vrot.lane.b32.xlu0 %v3494, 32
        %v3667 = vpop.permute.xlu0 %3666
        %3668 = vrot.lane.b32.xlu0 %v3495, 32
        %v3669 = vpop.permute.xlu0 %3668
        %3670 = vrot.lane.b32.xlu0 %v3496, 32
        %v3671 = vpop.permute.xlu0 %3670
        %3672 = vrot.lane.b32.xlu0 %v3497, 32
        %v3673 = vpop.permute.xlu0 %3672
        %3674 = vrot.lane.b32.xlu0 %v3498, 32
        %v3675 = vpop.permute.xlu0 %3674
        %3676 = vrot.lane.b32.xlu0 %v3499, 32
        %v3677 = vpop.permute.xlu0 %3676
        %3678 = vrot.lane.b32.xlu0 %v3500, 32
        %v3679 = vpop.permute.xlu0 %3678
        %3680 = vrot.lane.b32.xlu0 %v3501, 32
        %v3681 = vpop.permute.xlu0 %3680
        %3682 = vrot.lane.b32.xlu0 %v3651, 32
        %v3683 = vpop.permute.xlu0 %3682
        %v3684 = vunpack.c.l.b16 %v3368
        %v3685 = vunpack.c.l.b16 %v3371
        %v3686 = vpack.c.b16 %v3685, %v3684
        %3687 = vrot.lane.b32.xlu0 %v3567, 40
        %v3688 = vpop.permute.xlu0 %3687
        %3689 = vrot.lane.b32.xlu0 %v3568, 40
        %v3690 = vpop.permute.xlu0 %3689
        %3691 = vrot.lane.b32.xlu0 %v3569, 40
        %v3692 = vpop.permute.xlu0 %3691
        %3693 = vrot.lane.b32.xlu0 %v3570, 40
        %v3694 = vpop.permute.xlu0 %3693
        %3695 = vrot.lane.b32.xlu0 %v3571, 40
        %v3696 = vpop.permute.xlu0 %3695
        %3697 = vrot.lane.b32.xlu0 %v3572, 40
        %v3698 = vpop.permute.xlu0 %3697
        %3699 = vrot.lane.b32.xlu0 %v3573, 40
        %v3700 = vpop.permute.xlu0 %3699
        %3701 = vrot.lane.b32.xlu0 %v3574, 40
        %v3702 = vpop.permute.xlu0 %3701
        %3703 = vrot.lane.b32.xlu0 %v3575, 40
        %v3704 = vpop.permute.xlu0 %3703
        %3705 = vrot.lane.b32.xlu0 %v3576, 40
        %v3706 = vpop.permute.xlu0 %3705
        %3707 = vrot.lane.b32.xlu0 %v3577, 40
        %v3708 = vpop.permute.xlu0 %3707
        %3709 = vrot.lane.b32.xlu0 %v3578, 40
        %v3710 = vpop.permute.xlu0 %3709
        %3711 = vrot.lane.b32.xlu0 %v3579, 40
        %v3712 = vpop.permute.xlu0 %3711
        %3713 = vrot.lane.b32.xlu0 %v3580, 40
        %v3714 = vpop.permute.xlu0 %3713
        %3715 = vrot.lane.b32.xlu0 %v3581, 40
        %v3716 = vpop.permute.xlu0 %3715
        %3717 = vrot.lane.b32.xlu0 %v3686, 40
        %v3718 = vpop.permute.xlu0 %3717
        %v3719 = vunpack.c.l.b16 %v2785
        %v3720 = vunpack.c.l.b16 %v2786
        %v3721 = vpack.c.b16 %v3720, %v3719
        %3722 = vrot.lane.b32.xlu0 %v3440, 48
        %v3723 = vpop.permute.xlu0 %3722
        %3724 = vrot.lane.b32.xlu0 %v3441, 48
        %v3725 = vpop.permute.xlu0 %3724
        %3726 = vrot.lane.b32.xlu0 %v3442, 48
        %v3727 = vpop.permute.xlu0 %3726
        %3728 = vrot.lane.b32.xlu0 %v3443, 48
        %v3729 = vpop.permute.xlu0 %3728
        %3730 = vrot.lane.b32.xlu0 %v3444, 48
        %v3731 = vpop.permute.xlu0 %3730
        %3732 = vrot.lane.b32.xlu0 %v3445, 48
        %v3733 = vpop.permute.xlu0 %3732
        %3734 = vrot.lane.b32.xlu0 %v3446, 48
        %v3735 = vpop.permute.xlu0 %3734
        %3736 = vrot.lane.b32.xlu0 %v3447, 48
        %v3737 = vpop.permute.xlu0 %3736
        %3738 = vrot.lane.b32.xlu0 %v3448, 48
        %v3739 = vpop.permute.xlu0 %3738
        %3740 = vrot.lane.b32.xlu0 %v3449, 48
        %v3741 = vpop.permute.xlu0 %3740
        %3742 = vrot.lane.b32.xlu0 %v3450, 48
        %v3743 = vpop.permute.xlu0 %3742
        %3744 = vrot.lane.b32.xlu0 %v3451, 48
        %v3745 = vpop.permute.xlu0 %3744
        %3746 = vrot.lane.b32.xlu0 %v3452, 48
        %v3747 = vpop.permute.xlu0 %3746
        %3748 = vrot.lane.b32.xlu0 %v3453, 48
        %v3749 = vpop.permute.xlu0 %3748
        %3750 = vrot.lane.b32.xlu0 %v3616, 48
        %v3751 = vpop.permute.xlu0 %3750
        %3752 = vrot.lane.b32.xlu0 %v3721, 48
        %v3753 = vpop.permute.xlu0 %3752
        %v3754 = vunpack.c.l.b16 %v3385
        %v3755 = vunpack.c.l.b16 %v3395
        %v3756 = vpack.c.b16 %v3755, %v3754
        %3757 = vrot.lane.b32.xlu0 %v3488, 56
        %v3758 = vpop.permute.xlu0 %3757
        %3759 = vrot.lane.b32.xlu0 %v3489, 56
        %v3760 = vpop.permute.xlu0 %3759
        %3761 = vrot.lane.b32.xlu0 %v3490, 56
        %v3762 = vpop.permute.xlu0 %3761
        %3763 = vrot.lane.b32.xlu0 %v3491, 56
        %v3764 = vpop.permute.xlu0 %3763
        %3765 = vrot.lane.b32.xlu0 %v3492, 56
        %v3766 = vpop.permute.xlu0 %3765
        %3767 = vrot.lane.b32.xlu0 %v3493, 56
        %v3768 = vpop.permute.xlu0 %3767
        %3769 = vrot.lane.b32.xlu0 %v3494, 56
        %v3770 = vpop.permute.xlu0 %3769
        %3771 = vrot.lane.b32.xlu0 %v3495, 56
        %v3772 = vpop.permute.xlu0 %3771
        %3773 = vrot.lane.b32.xlu0 %v3496, 56
        %v3774 = vpop.permute.xlu0 %3773
        %3775 = vrot.lane.b32.xlu0 %v3497, 56
        %v3776 = vpop.permute.xlu0 %3775
        %3777 = vrot.lane.b32.xlu0 %v3498, 56
        %v3778 = vpop.permute.xlu0 %3777
        %3779 = vrot.lane.b32.xlu0 %v3499, 56
        %v3780 = vpop.permute.xlu0 %3779
        %3781 = vrot.lane.b32.xlu0 %v3500, 56
        %v3782 = vpop.permute.xlu0 %3781
        %3783 = vrot.lane.b32.xlu0 %v3501, 56
        %v3784 = vpop.permute.xlu0 %3783
        %3785 = vrot.lane.b32.xlu0 %v3651, 56
        %v3786 = vpop.permute.xlu0 %3785
        %3787 = vrot.lane.b32.xlu0 %v3756, 56
        %v3788 = vpop.permute.xlu0 %3787
        %v3789 = vunpack.c.l.b16 %v3402
        %v3790 = vunpack.c.l.b16 %v3405
        %v3791 = vpack.c.b16 %v3790, %v3789
        %3792 = vrot.lane.b32.xlu0 %v3568, 64
        %v3793 = vpop.permute.xlu0 %3792
        %3794 = vrot.lane.b32.xlu0 %v3569, 64
        %v3795 = vpop.permute.xlu0 %3794
        %3796 = vrot.lane.b32.xlu0 %v3570, 64
        %v3797 = vpop.permute.xlu0 %3796
        %3798 = vrot.lane.b32.xlu0 %v3571, 64
        %v3799 = vpop.permute.xlu0 %3798
        %3800 = vrot.lane.b32.xlu0 %v3572, 64
        %v3801 = vpop.permute.xlu0 %3800
        %3802 = vrot.lane.b32.xlu0 %v3573, 64
        %v3803 = vpop.permute.xlu0 %3802
        %3804 = vrot.lane.b32.xlu0 %v3574, 64
        %v3805 = vpop.permute.xlu0 %3804
        %3806 = vrot.lane.b32.xlu0 %v3575, 64
        %v3807 = vpop.permute.xlu0 %3806
        %3808 = vrot.lane.b32.xlu0 %v3576, 64
        %v3809 = vpop.permute.xlu0 %3808
        %3810 = vrot.lane.b32.xlu0 %v3577, 64
        %v3811 = vpop.permute.xlu0 %3810
        %3812 = vrot.lane.b32.xlu0 %v3578, 64
        %v3813 = vpop.permute.xlu0 %3812
        %3814 = vrot.lane.b32.xlu0 %v3579, 64
        %v3815 = vpop.permute.xlu0 %3814
        %3816 = vrot.lane.b32.xlu0 %v3580, 64
        %v3817 = vpop.permute.xlu0 %3816
        %3818 = vrot.lane.b32.xlu0 %v3581, 64
        %v3819 = vpop.permute.xlu0 %3818
        %3820 = vrot.lane.b32.xlu0 %v3686, 64
        %v3821 = vpop.permute.xlu0 %3820
        %3822 = vrot.lane.b32.xlu0 %v3791, 64
        %v3823 = vpop.permute.xlu0 %3822
        %v3826 = vsel %vm638, %v3438, %v3503
        %v3829 = vsel %vm638, %v3439, %v3505
        %v3832 = vsel %vm638, %v3440, %v3507
        %v3835 = vsel %vm638, %v3441, %v3509
        %v3838 = vsel %vm638, %v3442, %v3511
        %v3841 = vsel %vm638, %v3443, %v3513
        %v3844 = vsel %vm638, %v3444, %v3515
        %v3847 = vsel %vm638, %v3445, %v3517
        %v3850 = vsel %vm638, %v3446, %v3519
        %v3853 = vsel %vm638, %v3447, %v3521
        %v3856 = vsel %vm638, %v3448, %v3523
        %v3859 = vsel %vm638, %v3449, %v3525
        %v3862 = vsel %vm638, %v3450, %v3527
        %v3865 = vsel %vm638, %v3451, %v3529
        %v3868 = vsel %vm638, %v3452, %v3531
        %v3871 = vsel %vm638, %v3453, %v3533
        %vm3872 = vcmask 130048
        %v3874 = vsel %vm3872, %v3826, %v3583
        %v3876 = vsel %vm3872, %v3829, %v3585
        %v3878 = vsel %vm3872, %v3832, %v3587
        %v3880 = vsel %vm3872, %v3835, %v3589
        %v3882 = vsel %vm3872, %v3838, %v3591
        %v3884 = vsel %vm3872, %v3841, %v3593
        %v3886 = vsel %vm3872, %v3844, %v3595
        %v3888 = vsel %vm3872, %v3847, %v3597
        %v3890 = vsel %vm3872, %v3850, %v3599
        %v3892 = vsel %vm3872, %v3853, %v3601
        %v3894 = vsel %vm3872, %v3856, %v3603
        %v3896 = vsel %vm3872, %v3859, %v3605
        %v3898 = vsel %vm3872, %v3862, %v3607
        %v3900 = vsel %vm3872, %v3865, %v3609
        %v3902 = vsel %vm3872, %v3868, %v3611
        %v3904 = vsel %vm3872, %v3871, %v3613
        %vm3905 = vcmask 195584
        %v3907 = vsel %vm3905, %v3874, %v3618
        %v3909 = vsel %vm3905, %v3876, %v3620
        %v3911 = vsel %vm3905, %v3878, %v3622
        %v3913 = vsel %vm3905, %v3880, %v3624
        %v3915 = vsel %vm3905, %v3882, %v3626
        %v3917 = vsel %vm3905, %v3884, %v3628
        %v3919 = vsel %vm3905, %v3886, %v3630
        %v3921 = vsel %vm3905, %v3888, %v3632
        %v3923 = vsel %vm3905, %v3890, %v3634
        %v3925 = vsel %vm3905, %v3892, %v3636
        %v3927 = vsel %vm3905, %v3894, %v3638
        %v3929 = vsel %vm3905, %v3896, %v3640
        %v3931 = vsel %vm3905, %v3898, %v3642
        %v3933 = vsel %vm3905, %v3900, %v3644
        %v3935 = vsel %vm3905, %v3902, %v3646
        %v3937 = vsel %vm3905, %v3904, %v3648
        %vm3938 = vcmask 261120
        %v3940 = vsel %vm3938, %v3907, %v3653
        %v3942 = vsel %vm3938, %v3909, %v3655
        %v3944 = vsel %vm3938, %v3911, %v3657
        %v3946 = vsel %vm3938, %v3913, %v3659
        %v3948 = vsel %vm3938, %v3915, %v3661
        %v3950 = vsel %vm3938, %v3917, %v3663
        %v3952 = vsel %vm3938, %v3919, %v3665
        %v3954 = vsel %vm3938, %v3921, %v3667
        %v3956 = vsel %vm3938, %v3923, %v3669
        %v3958 = vsel %vm3938, %v3925, %v3671
        %v3960 = vsel %vm3938, %v3927, %v3673
        %v3962 = vsel %vm3938, %v3929, %v3675
        %v3964 = vsel %vm3938, %v3931, %v3677
        %v3966 = vsel %vm3938, %v3933, %v3679
        %v3968 = vsel %vm3938, %v3935, %v3681
        %v3970 = vsel %vm3938, %v3937, %v3683
        %vm3971 = vcmask 326656
        %v3973 = vsel %vm3971, %v3940, %v3688
        %v3975 = vsel %vm3971, %v3942, %v3690
        %v3977 = vsel %vm3971, %v3944, %v3692
        %v3979 = vsel %vm3971, %v3946, %v3694
        %v3981 = vsel %vm3971, %v3948, %v3696
        %v3983 = vsel %vm3971, %v3950, %v3698
        %v3985 = vsel %vm3971, %v3952, %v3700
        %v3987 = vsel %vm3971, %v3954, %v3702
        %v3989 = vsel %vm3971, %v3956, %v3704
        %v3991 = vsel %vm3971, %v3958, %v3706
        %v3993 = vsel %vm3971, %v3960, %v3708
        %v3995 = vsel %vm3971, %v3962, %v3710
        %v3997 = vsel %vm3971, %v3964, %v3712
        %v3999 = vsel %vm3971, %v3966, %v3714
        %v4001 = vsel %vm3971, %v3968, %v3716
        %v4003 = vsel %vm3971, %v3970, %v3718
        %vm4004 = vcmask 392192
        %v4006 = vsel %vm4004, %v3973, %v3723
        %v4008 = vsel %vm4004, %v3975, %v3725
        %v4010 = vsel %vm4004, %v3977, %v3727
        %v4012 = vsel %vm4004, %v3979, %v3729
        %v4014 = vsel %vm4004, %v3981, %v3731
        %v4016 = vsel %vm4004, %v3983, %v3733
        %v4018 = vsel %vm4004, %v3985, %v3735
        %v4020 = vsel %vm4004, %v3987, %v3737
        %v4022 = vsel %vm4004, %v3989, %v3739
        %v4024 = vsel %vm4004, %v3991, %v3741
        %v4026 = vsel %vm4004, %v3993, %v3743
        %v4028 = vsel %vm4004, %v3995, %v3745
        %v4030 = vsel %vm4004, %v3997, %v3747
        %v4032 = vsel %vm4004, %v3999, %v3749
        %v4034 = vsel %vm4004, %v4001, %v3751
        %v4036 = vsel %vm4004, %v4003, %v3753
        %vm4037 = vcmask 457728
        %v4039 = vsel %vm4037, %v4006, %v3758
        %v4041 = vsel %vm4037, %v4008, %v3760
        %v4043 = vsel %vm4037, %v4010, %v3762
        %v4045 = vsel %vm4037, %v4012, %v3764
        %v4047 = vsel %vm4037, %v4014, %v3766
        %v4049 = vsel %vm4037, %v4016, %v3768
        %v4051 = vsel %vm4037, %v4018, %v3770
        %v4053 = vsel %vm4037, %v4020, %v3772
        %v4055 = vsel %vm4037, %v4022, %v3774
        %v4057 = vsel %vm4037, %v4024, %v3776
        %v4059 = vsel %vm4037, %v4026, %v3778
        %v4061 = vsel %vm4037, %v4028, %v3780
        %v4063 = vsel %vm4037, %v4030, %v3782
        %v4065 = vsel %vm4037, %v4032, %v3784
        %v4067 = vsel %vm4037, %v4034, %v3786
        %v4069 = vsel %vm4037, %v4036, %v3788
        %vm4070 = vcmask 523264
        %v4072 = vsel %vm4070, %v4039, %v3793
        %v4074 = vsel %vm4070, %v4041, %v3795
        %v4076 = vsel %vm4070, %v4043, %v3797
        %v4078 = vsel %vm4070, %v4045, %v3799
        %v4080 = vsel %vm4070, %v4047, %v3801
        %v4082 = vsel %vm4070, %v4049, %v3803
        %v4084 = vsel %vm4070, %v4051, %v3805
        %v4086 = vsel %vm4070, %v4053, %v3807
        %v4088 = vsel %vm4070, %v4055, %v3809
        %v4090 = vsel %vm4070, %v4057, %v3811
        %v4092 = vsel %vm4070, %v4059, %v3813
        %v4094 = vsel %vm4070, %v4061, %v3815
        %v4096 = vsel %vm4070, %v4063, %v3817
        %v4098 = vsel %vm4070, %v4065, %v3819
        %v4100 = vsel %vm4070, %v4067, %v3821
        %v4102 = vsel %vm4070, %v4069, %v3823
        %v4103 = vld [vmem:[%s10] sm:$0xf]
        %v4104 = vld [vmem:[%s10 + $0x4] sm:$0xf]
        %v4105 = vld [vmem:[%s10 + $0x8] sm:$0xf]
        %v4106 = vld [vmem:[%s10 + $0xc] sm:$0xf]
        %v4107 = vld [vmem:[%s10 + $0x10] sm:$0xf]
        %v4108 = vld [vmem:[%s10 + $0x14] sm:$0xf]
        %v4109 = vld [vmem:[%s10 + $0x18] sm:$0xf]
        %v4110 = vld [vmem:[%s10 + $0x1c] sm:$0xf]
        %v4111 = vld [vmem:[%s10 + $0x20] sm:$0xf]
        %v4121 = vunpack.c.l.b16 %v4103
        %v4122 = vunpack.c.l.b16 %v4104
        %v4123 = vunpack.c.l.b16 %v4105
        %v4124 = vunpack.c.l.b16 %v4106
        %v4125 = vunpack.c.l.b16 %v4107
        %v4126 = vunpack.c.l.b16 %v4108
        %v4127 = vunpack.c.l.b16 %v4109
        %v4128 = vunpack.c.l.b16 %v4110
        %v4129 = vunpack.c.l.b16 %v4111
        %v4130 = vpack.c.b16 %v4122, %v4121
        %v4131 = vpack.c.b16 %v4124, %v4123
        %v4132 = vpack.c.b16 %v4126, %v4125
        %v4133 = vpack.c.b16 %v4128, %v4127
        %v4134 = vpack.c.b16 %v4129, %v4129
        %vm4139 = vcmask 588800
        %v4140 = vsel %vm4139, %v4072, 0
        %v4142 = vsel %vm4139, %v4074, 0
        %v4144 = vsel %vm4139, %v4076, 0
        %v4146 = vsel %vm4139, %v4078, 0
        %v4148 = vsel %vm4139, %v4080, 0
        %v4150 = vsel %vm4139, %v4082, 0
        %v4152 = vsel %vm4139, %v4084, 0
        %v4154 = vsel %vm4139, %v4086, 0
        %v4156 = vsel %vm4139, %v4088, 0
        %v4158 = vsel %vm4139, %v4090, 0
        %v4160 = vsel %vm4139, %v4092, 0
        %v4162 = vsel %vm4139, %v4094, 0
        %v4164 = vsel %vm4139, %v4096, 0
        %v4166 = vsel %vm4139, %v4098, 0
        %v4168 = vsel %vm4139, %v4100, 0
        %v4170 = vsel %vm4139, %v4102, 0
        %v4173 = vsel %vm1313, %v4134, 0
        %4175 = vmatprep.subr.bf16.mxu0 0
        %4176 = vmatpush1.bf16.msra.mxu0 %v4130
        %4177 = vmatprep.subr.bf16.mxu0 0
        %4178 = vmatpush1.bf16.msra.mxu0 %v4131
        %4179 = vmatprep.subr.bf16.mxu0 0
        %4180 = vmatpush1.bf16.msra.mxu0 %v4132
        %4181 = vmatprep.subr.bf16.mxu0 0
        %4182 = vmatpush1.bf16.msra.mxu0 %v4133
        %4183 = vmatprep.subr.bf16.mxu0 0
        %4184 = vmatpush1.bf16.msra.mxu0 %v4173
        %4185 = vmatprep.subr.bf16.mxu0 0
        %4186 = vmatpush1.bf16.msra.mxu0 0
        %4187 = vmatprep.subr.bf16.mxu0 0
        %4188 = vmatpush1.bf16.msra.mxu0 0
        %4189 = vmatprep.subr.bf16.mxu0 0
        %4190 = vmatpush1.bf16.msra.mxu0 0
        %4191 = vmatprep.subr.bf16.mxu0 0
        %4192 = vmatpush1.bf16.msra.mxu0 0
        %4193 = vmatprep.subr.bf16.mxu0 0
        %4194 = vmatpush1.bf16.msra.mxu0 0
        %4195 = vmatprep.subr.bf16.mxu0 0
        %4196 = vmatpush1.bf16.msra.mxu0 0
        %4197 = vmatprep.subr.bf16.mxu0 0
        %4198 = vmatpush1.bf16.msra.mxu0 0
        %4199 = vmatprep.subr.bf16.mxu0 0
        %4200 = vmatpush1.bf16.msra.mxu0 0
        %4201 = vmatprep.subr.bf16.mxu0 0
        %4202 = vmatpush1.bf16.msra.mxu0 0
        %4203 = vmatprep.subr.bf16.mxu0 0
        %4204 = vmatpush1.bf16.msra.mxu0 0
        %4205 = vmatprep.subr.bf16.mxu0 0
        %4206 = vmatpush1.bf16.msra.mxu0 0
        %4207 = vmatprep.mubr.bf16.mxu0 0
        %4208 = vmatmul.mubr.bf16.gmra.mrb[0].mxu0 %v4140
        %v4209 = vpop.f32.mrb[0].mxu0
        %v4210 = vadd.f32 0.0, %v4209
        %v4211 = vpop.f32.mrb[0].mxu0
        %v4212 = vpop.f32.mrb[0].mxu0
        %v4213 = vadd.f32 0.0, %v4212
        %v4214 = vpop.f32.mrb[0].mxu0
        %4215 = vmatprep.mubr.bf16.mxu0 0
        %4216 = vmatmul.mubr.bf16.gmra.mrb[0].mxu0 %v4142
        %v4217 = vpop.f32.mrb[0].mxu0
        %v4218 = vadd.f32 0.0, %v4217
        %v4219 = vpop.f32.mrb[0].mxu0
        %v4220 = vpop.f32.mrb[0].mxu0
        %v4221 = vadd.f32 0.0, %v4220
        %v4222 = vpop.f32.mrb[0].mxu0
        %4223 = vmatprep.mubr.bf16.mxu0 0
        %4224 = vmatmul.mubr.bf16.gmra.mrb[0].mxu0 %v4144
        %v4225 = vpop.f32.mrb[0].mxu0
        %v4226 = vadd.f32 0.0, %v4225
        %v4227 = vpop.f32.mrb[0].mxu0
        %v4228 = vpop.f32.mrb[0].mxu0
        %v4229 = vadd.f32 0.0, %v4228
        %v4230 = vpop.f32.mrb[0].mxu0
        %4231 = vmatprep.mubr.bf16.mxu0 0
        %4232 = vmatmul.mubr.bf16.gmra.mrb[0].mxu0 %v4146
        %v4233 = vpop.f32.mrb[0].mxu0
        %v4234 = vadd.f32 0.0, %v4233
        %v4235 = vpop.f32.mrb[0].mxu0
        %v4236 = vpop.f32.mrb[0].mxu0
        %v4237 = vadd.f32 0.0, %v4236
        %v4238 = vpop.f32.mrb[0].mxu0
        %4239 = vmatprep.mubr.bf16.mxu0 0
        %4240 = vmatmul.mubr.bf16.gmra.mrb[0].mxu0 %v4148
        %v4241 = vpop.f32.mrb[0].mxu0
        %v4242 = vadd.f32 0.0, %v4241
        %v4243 = vpop.f32.mrb[0].mxu0
        %v4244 = vpop.f32.mrb[0].mxu0
        %v4245 = vadd.f32 0.0, %v4244
        %v4246 = vpop.f32.mrb[0].mxu0
        %4247 = vmatprep.mubr.bf16.mxu0 0
        %4248 = vmatmul.mubr.bf16.gmra.mrb[0].mxu0 %v4150
        %v4249 = vpop.f32.mrb[0].mxu0
        %v4250 = vadd.f32 0.0, %v4249
        %v4251 = vpop.f32.mrb[0].mxu0
        %v4252 = vpop.f32.mrb[0].mxu0
        %v4253 = vadd.f32 0.0, %v4252
        %v4254 = vpop.f32.mrb[0].mxu0
        %4255 = vmatprep.mubr.bf16.mxu0 0
        %4256 = vmatmul.mubr.bf16.gmra.mrb[0].mxu0 %v4152
        %v4257 = vpop.f32.mrb[0].mxu0
        %v4258 = vadd.f32 0.0, %v4257
        %v4259 = vpop.f32.mrb[0].mxu0
        %v4260 = vpop.f32.mrb[0].mxu0
        %v4261 = vadd.f32 0.0, %v4260
        %v4262 = vpop.f32.mrb[0].mxu0
        %4263 = vmatprep.mubr.bf16.mxu0 0
        %4264 = vmatmul.mubr.bf16.gmra.mrb[0].mxu0 %v4154
        %v4265 = vpop.f32.mrb[0].mxu0
        %v4266 = vadd.f32 0.0, %v4265
        %v4267 = vpop.f32.mrb[0].mxu0
        %v4268 = vpop.f32.mrb[0].mxu0
        %v4269 = vadd.f32 0.0, %v4268
        %v4270 = vpop.f32.mrb[0].mxu0
        %4271 = vmatprep.mubr.bf16.mxu0 0
        %4272 = vmatmul.mubr.bf16.gmra.mrb[0].mxu0 %v4156
        %v4273 = vpop.f32.mrb[0].mxu0
        %v4274 = vadd.f32 0.0, %v4273
        %v4275 = vpop.f32.mrb[0].mxu0
        %v4276 = vpop.f32.mrb[0].mxu0
        %v4277 = vadd.f32 0.0, %v4276
        %v4278 = vpop.f32.mrb[0].mxu0
        %4279 = vmatprep.mubr.bf16.mxu0 0
        %4280 = vmatmul.mubr.bf16.gmra.mrb[0].mxu0 %v4158
        %v4281 = vpop.f32.mrb[0].mxu0
        %v4282 = vadd.f32 0.0, %v4281
        %v4283 = vpop.f32.mrb[0].mxu0
        %v4284 = vpop.f32.mrb[0].mxu0
        %v4285 = vadd.f32 0.0, %v4284
        %v4286 = vpop.f32.mrb[0].mxu0
        %4287 = vmatprep.mubr.bf16.mxu0 0
        %4288 = vmatmul.mubr.bf16.gmra.mrb[0].mxu0 %v4160
        %v4289 = vpop.f32.mrb[0].mxu0
        %v4290 = vadd.f32 0.0, %v4289
        %v4291 = vpop.f32.mrb[0].mxu0
        %v4292 = vpop.f32.mrb[0].mxu0
        %v4293 = vadd.f32 0.0, %v4292
        %v4294 = vpop.f32.mrb[0].mxu0
        %4295 = vmatprep.mubr.bf16.mxu0 0
        %4296 = vmatmul.mubr.bf16.gmra.mrb[0].mxu0 %v4162
        %v4297 = vpop.f32.mrb[0].mxu0
        %v4298 = vadd.f32 0.0, %v4297
        %v4299 = vpop.f32.mrb[0].mxu0
        %v4300 = vpop.f32.mrb[0].mxu0
        %v4301 = vadd.f32 0.0, %v4300
        %v4302 = vpop.f32.mrb[0].mxu0
        %4303 = vmatprep.mubr.bf16.mxu0 0
        %4304 = vmatmul.mubr.bf16.gmra.mrb[0].mxu0 %v4164
        %v4305 = vpop.f32.mrb[0].mxu0
        %v4306 = vadd.f32 0.0, %v4305
        %v4307 = vpop.f32.mrb[0].mxu0
        %v4308 = vpop.f32.mrb[0].mxu0
        %v4309 = vadd.f32 0.0, %v4308
        %v4310 = vpop.f32.mrb[0].mxu0
        %4311 = vmatprep.mubr.bf16.mxu0 0
        %4312 = vmatmul.mubr.bf16.gmra.mrb[0].mxu0 %v4166
        %v4313 = vpop.f32.mrb[0].mxu0
        %v4314 = vadd.f32 0.0, %v4313
        %v4315 = vpop.f32.mrb[0].mxu0
        %v4316 = vpop.f32.mrb[0].mxu0
        %v4317 = vadd.f32 0.0, %v4316
        %v4318 = vpop.f32.mrb[0].mxu0
        %4319 = vmatprep.mubr.bf16.mxu0 0
        %4320 = vmatmul.mubr.bf16.gmra.mrb[0].mxu0 %v4168
        %v4321 = vpop.f32.mrb[0].mxu0
        %v4322 = vadd.f32 0.0, %v4321
        %v4323 = vpop.f32.mrb[0].mxu0
        %v4324 = vpop.f32.mrb[0].mxu0
        %v4325 = vadd.f32 0.0, %v4324
        %v4326 = vpop.f32.mrb[0].mxu0
        %4327 = vmatprep.mubr.bf16.mxu0 0
        %4328 = vmatmul.mubr.bf16.gmra.mrb[0].mxu0 %v4170
        %v4329 = vpop.f32.mrb[0].mxu0
        %v4330 = vadd.f32 0.0, %v4329
        %v4331 = vpop.f32.mrb[0].mxu0
        %v4332 = vpop.f32.mrb[0].mxu0
        %v4333 = vadd.f32 0.0, %v4332
        %v4334 = vpop.f32.mrb[0].mxu0
        %4335 = vdwg.mxu0
        %v4336 = vld [vmem:[%s8] sm:$0xff]
        %v4337 = vld [vmem:[%s9] sm:$0xff]
        %v4338 = vld [vmem:[%s11] sm:$0x1]
        %v4339 = vld [vmem:[%s12] sm:$0x1]
        %v4340 = vsel %vm638, %v4210, 0.0
        %v4341 = vsel %vm638, %v4213, 0.0
        %v4342 = vadd.f32 %v4340, %v4341
        %v4343 = vsel %vm638, %v4218, 0.0
        %v4344 = vadd.f32 %v4342, %v4343
        %v4345 = vsel %vm638, %v4221, 0.0
        %v4346 = vadd.f32 %v4344, %v4345
        %v4347 = vsel %vm638, %v4226, 0.0
        %v4348 = vadd.f32 %v4346, %v4347
        %v4349 = vsel %vm638, %v4229, 0.0
        %v4350 = vadd.f32 %v4348, %v4349
        %v4351 = vsel %vm638, %v4234, 0.0
        %v4352 = vadd.f32 %v4350, %v4351
        %v4353 = vsel %vm638, %v4237, 0.0
        %v4354 = vadd.f32 %v4352, %v4353
        %v4355 = vsel %vm638, %v4242, 0.0
        %v4356 = vadd.f32 %v4354, %v4355
        %v4357 = vsel %vm638, %v4245, 0.0
        %v4358 = vadd.f32 %v4356, %v4357
        %v4359 = vsel %vm638, %v4250, 0.0
        %v4360 = vadd.f32 %v4358, %v4359
        %v4361 = vsel %vm638, %v4253, 0.0
        %v4362 = vadd.f32 %v4360, %v4361
        %v4363 = vsel %vm638, %v4258, 0.0
        %v4364 = vadd.f32 %v4362, %v4363
        %v4365 = vsel %vm638, %v4261, 0.0
        %v4366 = vadd.f32 %v4364, %v4365
        %v4367 = vsel %vm638, %v4266, 0.0
        %v4368 = vadd.f32 %v4366, %v4367
        %v4369 = vsel %vm638, %v4269, 0.0
        %v4370 = vadd.f32 %v4368, %v4369
        %v4371 = vsel %vm638, %v4274, 0.0
        %v4372 = vadd.f32 %v4370, %v4371
        %v4373 = vsel %vm638, %v4277, 0.0
        %v4374 = vadd.f32 %v4372, %v4373
        %v4375 = vsel %vm638, %v4282, 0.0
        %v4376 = vadd.f32 %v4374, %v4375
        %v4377 = vsel %vm638, %v4285, 0.0
        %v4378 = vadd.f32 %v4376, %v4377
        %v4379 = vsel %vm638, %v4290, 0.0
        %v4380 = vadd.f32 %v4378, %v4379
        %v4381 = vsel %vm638, %v4293, 0.0
        %v4382 = vadd.f32 %v4380, %v4381
        %v4383 = vsel %vm638, %v4298, 0.0
        %v4384 = vadd.f32 %v4382, %v4383
        %v4385 = vsel %vm638, %v4301, 0.0
        %v4386 = vadd.f32 %v4384, %v4385
        %v4387 = vsel %vm638, %v4306, 0.0
        %v4388 = vadd.f32 %v4386, %v4387
        %v4389 = vsel %vm638, %v4309, 0.0
        %v4390 = vadd.f32 %v4388, %v4389
        %v4391 = vsel %vm638, %v4314, 0.0
        %v4392 = vadd.f32 %v4390, %v4391
        %v4393 = vsel %vm638, %v4317, 0.0
        %v4394 = vadd.f32 %v4392, %v4393
        %v4395 = vsel %vm638, %v4322, 0.0
        %v4396 = vadd.f32 %v4394, %v4395
        %v4397 = vsel %vm638, %v4325, 0.0
        %v4398 = vadd.f32 %v4396, %v4397
        %v4399 = vsel %vm638, %v4330, 0.0
        %v4400 = vadd.f32 %v4398, %v4399
        %v4401 = vsel %vm638, %v4333, 0.0
        %v4402 = vadd.f32 %v4400, %v4401
        %v4403 = vrot.slane %v4402, 4
        %v4404 = vadd.f32 %v4402, %v4403
        %v4405 = vrot.slane %v4404, 2
        %v4406 = vadd.f32 %v4404, %v4405
        %v4407 = vrot.slane %v4406, 1
        %v4408 = vadd.f32 %v4406, %v4407
        %v4410 = vsel %vm638, %v4408, 0
        %4412 = vmatprep.subr.mxu0 0.0
        %4413 = vmatpush1.msra.mxu0 %v4336
        %4414 = vmatprep.subr.mxu0 0.0
        %4415 = vmatpush1.msra.mxu0 0.0
        %4416 = vmatprep.subr.mxu0 0.0
        %4417 = vmatpush1.msra.mxu0 0.0
        %4418 = vmatprep.subr.mxu0 0.0
        %4419 = vmatpush1.msra.mxu0 0.0
        %4420 = vmatprep.subr.mxu0 0.0
        %4421 = vmatpush1.msra.mxu0 0.0
        %4422 = vmatprep.subr.mxu0 0.0
        %4423 = vmatpush1.msra.mxu0 0.0
        %4424 = vmatprep.subr.mxu0 0.0
        %4425 = vmatpush1.msra.mxu0 0.0
        %4426 = vmatprep.subr.mxu0 0.0
        %4427 = vmatpush1.msra.mxu0 0.0
        %4428 = vmatprep.subr.mxu0 0.0
        %4429 = vmatpush1.msra.mxu0 0.0
        %4430 = vmatprep.subr.mxu0 0.0
        %4431 = vmatpush1.msra.mxu0 0.0
        %4432 = vmatprep.subr.mxu0 0.0
        %4433 = vmatpush1.msra.mxu0 0.0
        %4434 = vmatprep.subr.mxu0 0.0
        %4435 = vmatpush1.msra.mxu0 0.0
        %4436 = vmatprep.subr.mxu0 0.0
        %4437 = vmatpush1.msra.mxu0 0.0
        %4438 = vmatprep.subr.mxu0 0.0
        %4439 = vmatpush1.msra.mxu0 0.0
        %4440 = vmatprep.subr.mxu0 0.0
        %4441 = vmatpush1.msra.mxu0 0.0
        %4442 = vmatprep.subr.mxu0 0.0
        %4443 = vmatpush1.msra.mxu0 0.0
        %4444 = vmatprep.subr.mxu0 0.0
        %4445 = vmatpush1.msra.mxu0 0.0
        %4446 = vmatprep.subr.mxu0 0.0
        %4447 = vmatpush1.msra.mxu0 0.0
        %4448 = vmatprep.subr.mxu0 0.0
        %4449 = vmatpush1.msra.mxu0 0.0
        %4450 = vmatprep.subr.mxu0 0.0
        %4451 = vmatpush1.msra.mxu0 0.0
        %4452 = vmatprep.subr.mxu0 0.0
        %4453 = vmatpush1.msra.mxu0 0.0
        %4454 = vmatprep.subr.mxu0 0.0
        %4455 = vmatpush1.msra.mxu0 0.0
        %4456 = vmatprep.subr.mxu0 0.0
        %4457 = vmatpush1.msra.mxu0 0.0
        %4458 = vmatprep.subr.mxu0 0.0
        %4459 = vmatpush1.msra.mxu0 0.0
        %4460 = vmatprep.subr.mxu0 0.0
        %4461 = vmatpush1.msra.mxu0 0.0
        %4462 = vmatprep.subr.mxu0 0.0
        %4463 = vmatpush1.msra.mxu0 0.0
        %4464 = vmatprep.subr.mxu0 0.0
        %4465 = vmatpush1.msra.mxu0 0.0
        %4466 = vmatprep.subr.mxu0 0.0
        %4467 = vmatpush1.msra.mxu0 0.0
        %4468 = vmatprep.subr.mxu0 0.0
        %4469 = vmatpush1.msra.mxu0 0.0
        %4470 = vmatprep.subr.mxu0 0.0
        %4471 = vmatpush1.msra.mxu0 0.0
        %4472 = vmatprep.subr.mxu0 0.0
        %4473 = vmatpush1.msra.mxu0 0.0
        %4474 = vmatprep.subr.mxu0 0.0
        %4475 = vmatpush1.msra.mxu0 0.0
        %4476 = vmatprep.mubr.f32.mxu0 0.0
        %4477 = vmatmul.mubr.f32.gmra.mrb[0].mxu0 %v4410
        %v4478 = vpop.f32.mrb[0].mxu0
        %v4479 = vadd.f32 0.0, %v4478
        %v4480 = vpop.f32.mrb[0].mxu0
        %4481 = vdwg.mxu0
        %v4483 = vsel %vm638, %v4479, 0
        %4485 = vmatprep.subr.mxu0 0.0
        %4486 = vmatpush1.msra.mxu0 %v4337
        %4487 = vmatprep.subr.mxu0 0.0
        %4488 = vmatpush1.msra.mxu0 0.0
        %4489 = vmatprep.subr.mxu0 0.0
        %4490 = vmatpush1.msra.mxu0 0.0
        %4491 = vmatprep.subr.mxu0 0.0
        %4492 = vmatpush1.msra.mxu0 0.0
        %4493 = vmatprep.subr.mxu0 0.0
        %4494 = vmatpush1.msra.mxu0 0.0
        %4495 = vmatprep.subr.mxu0 0.0
        %4496 = vmatpush1.msra.mxu0 0.0
        %4497 = vmatprep.subr.mxu0 0.0
        %4498 = vmatpush1.msra.mxu0 0.0
        %4499 = vmatprep.subr.mxu0 0.0
        %4500 = vmatpush1.msra.mxu0 0.0
        %4501 = vmatprep.subr.mxu0 0.0
        %4502 = vmatpush1.msra.mxu0 0.0
        %4503 = vmatprep.subr.mxu0 0.0
        %4504 = vmatpush1.msra.mxu0 0.0
        %4505 = vmatprep.subr.mxu0 0.0
        %4506 = vmatpush1.msra.mxu0 0.0
        %4507 = vmatprep.subr.mxu0 0.0
        %4508 = vmatpush1.msra.mxu0 0.0
        %4509 = vmatprep.subr.mxu0 0.0
        %4510 = vmatpush1.msra.mxu0 0.0
        %4511 = vmatprep.subr.mxu0 0.0
        %4512 = vmatpush1.msra.mxu0 0.0
        %4513 = vmatprep.subr.mxu0 0.0
        %4514 = vmatpush1.msra.mxu0 0.0
        %4515 = vmatprep.subr.mxu0 0.0
        %4516 = vmatpush1.msra.mxu0 0.0
        %4517 = vmatprep.subr.mxu0 0.0
        %4518 = vmatpush1.msra.mxu0 0.0
        %4519 = vmatprep.subr.mxu0 0.0
        %4520 = vmatpush1.msra.mxu0 0.0
        %4521 = vmatprep.subr.mxu0 0.0
        %4522 = vmatpush1.msra.mxu0 0.0
        %4523 = vmatprep.subr.mxu0 0.0
        %4524 = vmatpush1.msra.mxu0 0.0
        %4525 = vmatprep.subr.mxu0 0.0
        %4526 = vmatpush1.msra.mxu0 0.0
        %4527 = vmatprep.subr.mxu0 0.0
        %4528 = vmatpush1.msra.mxu0 0.0
        %4529 = vmatprep.subr.mxu0 0.0
        %4530 = vmatpush1.msra.mxu0 0.0
        %4531 = vmatprep.subr.mxu0 0.0
        %4532 = vmatpush1.msra.mxu0 0.0
        %4533 = vmatprep.subr.mxu0 0.0
        %4534 = vmatpush1.msra.mxu0 0.0
        %4535 = vmatprep.subr.mxu0 0.0
        %4536 = vmatpush1.msra.mxu0 0.0
        %4537 = vmatprep.subr.mxu0 0.0
        %4538 = vmatpush1.msra.mxu0 0.0
        %4539 = vmatprep.subr.mxu0 0.0
        %4540 = vmatpush1.msra.mxu0 0.0
        %4541 = vmatprep.subr.mxu0 0.0
        %4542 = vmatpush1.msra.mxu0 0.0
        %4543 = vmatprep.subr.mxu0 0.0
        %4544 = vmatpush1.msra.mxu0 0.0
        %4545 = vmatprep.subr.mxu0 0.0
        %4546 = vmatpush1.msra.mxu0 0.0
        %4547 = vmatprep.subr.mxu0 0.0
        %4548 = vmatpush1.msra.mxu0 0.0
        %4549 = vmatprep.mubr.f32.mxu0 0.0
        %4550 = vmatmul.mubr.f32.gmra.mrb[0].mxu0 %v4483
        %v4551 = vpop.f32.mrb[0].mxu0
        %v4552 = vadd.f32 0.0, %v4551
        %v4553 = vpop.f32.mrb[0].mxu0
        %4554 = vdwg.mxu0
        %v4555 = vmul.f32 %v4552, 0.00390625
        %v4556 = vlaneseq
        %v4557 = vshrl.u32 %v4556, 7
        %v4558 = vsub.s32 0, %v4557
        %v4559 = vrot.slane %v4555, %v4558
        %v4560 = vsub.f32 %v4210, %v4559
        %v4561 = vsub.f32 %v4213, %v4559
        %v4562 = vsub.f32 %v4218, %v4559
        %v4563 = vsub.f32 %v4221, %v4559
        %v4564 = vsub.f32 %v4226, %v4559
        %v4565 = vsub.f32 %v4229, %v4559
        %v4566 = vsub.f32 %v4234, %v4559
        %v4567 = vsub.f32 %v4237, %v4559
        %v4568 = vsub.f32 %v4242, %v4559
        %v4569 = vsub.f32 %v4245, %v4559
        %v4570 = vsub.f32 %v4250, %v4559
        %v4571 = vsub.f32 %v4253, %v4559
        %v4572 = vsub.f32 %v4258, %v4559
        %v4573 = vsub.f32 %v4261, %v4559
        %v4574 = vsub.f32 %v4266, %v4559
        %v4575 = vsub.f32 %v4269, %v4559
        %v4576 = vsub.f32 %v4274, %v4559
        %v4577 = vsub.f32 %v4277, %v4559
        %v4578 = vsub.f32 %v4282, %v4559
        %v4579 = vsub.f32 %v4285, %v4559
        %v4580 = vsub.f32 %v4290, %v4559
        %v4581 = vsub.f32 %v4293, %v4559
        %v4582 = vsub.f32 %v4298, %v4559
        %v4583 = vsub.f32 %v4301, %v4559
        %v4584 = vsub.f32 %v4306, %v4559
        %v4585 = vsub.f32 %v4309, %v4559
        %v4586 = vsub.f32 %v4314, %v4559
        %v4587 = vsub.f32 %v4317, %v4559
        %v4588 = vsub.f32 %v4322, %v4559
        %v4589 = vsub.f32 %v4325, %v4559
        %v4590 = vsub.f32 %v4330, %v4559
        %v4591 = vsub.f32 %v4333, %v4559
        %v4592 = vmul.f32 %v4560, %v4560
        %v4593 = vmul.f32 %v4561, %v4561
        %v4594 = vmul.f32 %v4562, %v4562
        %v4595 = vmul.f32 %v4563, %v4563
        %v4596 = vmul.f32 %v4564, %v4564
        %v4597 = vmul.f32 %v4565, %v4565
        %v4598 = vmul.f32 %v4566, %v4566
        %v4599 = vmul.f32 %v4567, %v4567
        %v4600 = vmul.f32 %v4568, %v4568
        %v4601 = vmul.f32 %v4569, %v4569
        %v4602 = vmul.f32 %v4570, %v4570
        %v4603 = vmul.f32 %v4571, %v4571
        %v4604 = vmul.f32 %v4572, %v4572
        %v4605 = vmul.f32 %v4573, %v4573
        %v4606 = vmul.f32 %v4574, %v4574
        %v4607 = vmul.f32 %v4575, %v4575
        %v4608 = vmul.f32 %v4576, %v4576
        %v4609 = vmul.f32 %v4577, %v4577
        %v4610 = vmul.f32 %v4578, %v4578
        %v4611 = vmul.f32 %v4579, %v4579
        %v4612 = vmul.f32 %v4580, %v4580
        %v4613 = vmul.f32 %v4581, %v4581
        %v4614 = vmul.f32 %v4582, %v4582
        %v4615 = vmul.f32 %v4583, %v4583
        %v4616 = vmul.f32 %v4584, %v4584
        %v4617 = vmul.f32 %v4585, %v4585
        %v4618 = vmul.f32 %v4586, %v4586
        %v4619 = vmul.f32 %v4587, %v4587
        %v4620 = vmul.f32 %v4588, %v4588
        %v4621 = vmul.f32 %v4589, %v4589
        %v4622 = vmul.f32 %v4590, %v4590
        %v4623 = vmul.f32 %v4591, %v4591
        %v4624 = vsel %vm638, %v4592, 0.0
        %v4625 = vsel %vm638, %v4593, 0.0
        %v4626 = vadd.f32 %v4624, %v4625
        %v4627 = vsel %vm638, %v4594, 0.0
        %v4628 = vadd.f32 %v4626, %v4627
        %v4629 = vsel %vm638, %v4595, 0.0
        %v4630 = vadd.f32 %v4628, %v4629
        %v4631 = vsel %vm638, %v4596, 0.0
        %v4632 = vadd.f32 %v4630, %v4631
        %v4633 = vsel %vm638, %v4597, 0.0
        %v4634 = vadd.f32 %v4632, %v4633
        %v4635 = vsel %vm638, %v4598, 0.0
        %v4636 = vadd.f32 %v4634, %v4635
        %v4637 = vsel %vm638, %v4599, 0.0
        %v4638 = vadd.f32 %v4636, %v4637
        %v4639 = vsel %vm638, %v4600, 0.0
        %v4640 = vadd.f32 %v4638, %v4639
        %v4641 = vsel %vm638, %v4601, 0.0
        %v4642 = vadd.f32 %v4640, %v4641
        %v4643 = vsel %vm638, %v4602, 0.0
        %v4644 = vadd.f32 %v4642, %v4643
        %v4645 = vsel %vm638, %v4603, 0.0
        %v4646 = vadd.f32 %v4644, %v4645
        %v4647 = vsel %vm638, %v4604, 0.0
        %v4648 = vadd.f32 %v4646, %v4647
        %v4649 = vsel %vm638, %v4605, 0.0
        %v4650 = vadd.f32 %v4648, %v4649
        %v4651 = vsel %vm638, %v4606, 0.0
        %v4652 = vadd.f32 %v4650, %v4651
        %v4653 = vsel %vm638, %v4607, 0.0
        %v4654 = vadd.f32 %v4652, %v4653
        %v4655 = vsel %vm638, %v4608, 0.0
        %v4656 = vadd.f32 %v4654, %v4655
        %v4657 = vsel %vm638, %v4609, 0.0
        %v4658 = vadd.f32 %v4656, %v4657
        %v4659 = vsel %vm638, %v4610, 0.0
        %v4660 = vadd.f32 %v4658, %v4659
        %v4661 = vsel %vm638, %v4611, 0.0
        %v4662 = vadd.f32 %v4660, %v4661
        %v4663 = vsel %vm638, %v4612, 0.0
        %v4664 = vadd.f32 %v4662, %v4663
        %v4665 = vsel %vm638, %v4613, 0.0
        %v4666 = vadd.f32 %v4664, %v4665
        %v4667 = vsel %vm638, %v4614, 0.0
        %v4668 = vadd.f32 %v4666, %v4667
        %v4669 = vsel %vm638, %v4615, 0.0
        %v4670 = vadd.f32 %v4668, %v4669
        %v4671 = vsel %vm638, %v4616, 0.0
        %v4672 = vadd.f32 %v4670, %v4671
        %v4673 = vsel %vm638, %v4617, 0.0
        %v4674 = vadd.f32 %v4672, %v4673
        %v4675 = vsel %vm638, %v4618, 0.0
        %v4676 = vadd.f32 %v4674, %v4675
        %v4677 = vsel %vm638, %v4619, 0.0
        %v4678 = vadd.f32 %v4676, %v4677
        %v4679 = vsel %vm638, %v4620, 0.0
        %v4680 = vadd.f32 %v4678, %v4679
        %v4681 = vsel %vm638, %v4621, 0.0
        %v4682 = vadd.f32 %v4680, %v4681
        %v4683 = vsel %vm638, %v4622, 0.0
        %v4684 = vadd.f32 %v4682, %v4683
        %v4685 = vsel %vm638, %v4623, 0.0
        %v4686 = vadd.f32 %v4684, %v4685
        %v4687 = vrot.slane %v4686, 4
        %v4688 = vadd.f32 %v4686, %v4687
        %v4689 = vrot.slane %v4688, 2
        %v4690 = vadd.f32 %v4688, %v4689
        %v4691 = vrot.slane %v4690, 1
        %v4692 = vadd.f32 %v4690, %v4691
        %v4694 = vsel %vm638, %v4692, 0
        %4696 = vmatprep.subr.mxu0 0.0
        %4697 = vmatpush1.msra.mxu0 %v4336
        %4698 = vmatprep.subr.mxu0 0.0
        %4699 = vmatpush1.msra.mxu0 0.0
        %4700 = vmatprep.subr.mxu0 0.0
        %4701 = vmatpush1.msra.mxu0 0.0
        %4702 = vmatprep.subr.mxu0 0.0
        %4703 = vmatpush1.msra.mxu0 0.0
        %4704 = vmatprep.subr.mxu0 0.0
        %4705 = vmatpush1.msra.mxu0 0.0
        %4706 = vmatprep.subr.mxu0 0.0
        %4707 = vmatpush1.msra.mxu0 0.0
        %4708 = vmatprep.subr.mxu0 0.0
        %4709 = vmatpush1.msra.mxu0 0.0
        %4710 = vmatprep.subr.mxu0 0.0
        %4711 = vmatpush1.msra.mxu0 0.0
        %4712 = vmatprep.subr.mxu0 0.0
        %4713 = vmatpush1.msra.mxu0 0.0
        %4714 = vmatprep.subr.mxu0 0.0
        %4715 = vmatpush1.msra.mxu0 0.0
        %4716 = vmatprep.subr.mxu0 0.0
        %4717 = vmatpush1.msra.mxu0 0.0
        %4718 = vmatprep.subr.mxu0 0.0
        %4719 = vmatpush1.msra.mxu0 0.0
        %4720 = vmatprep.subr.mxu0 0.0
        %4721 = vmatpush1.msra.mxu0 0.0
        %4722 = vmatprep.subr.mxu0 0.0
        %4723 = vmatpush1.msra.mxu0 0.0
        %4724 = vmatprep.subr.mxu0 0.0
        %4725 = vmatpush1.msra.mxu0 0.0
        %4726 = vmatprep.subr.mxu0 0.0
        %4727 = vmatpush1.msra.mxu0 0.0
        %4728 = vmatprep.subr.mxu0 0.0
        %4729 = vmatpush1.msra.mxu0 0.0
        %4730 = vmatprep.subr.mxu0 0.0
        %4731 = vmatpush1.msra.mxu0 0.0
        %4732 = vmatprep.subr.mxu0 0.0
        %4733 = vmatpush1.msra.mxu0 0.0
        %4734 = vmatprep.subr.mxu0 0.0
        %4735 = vmatpush1.msra.mxu0 0.0
        %4736 = vmatprep.subr.mxu0 0.0
        %4737 = vmatpush1.msra.mxu0 0.0
        %4738 = vmatprep.subr.mxu0 0.0
        %4739 = vmatpush1.msra.mxu0 0.0
        %4740 = vmatprep.subr.mxu0 0.0
        %4741 = vmatpush1.msra.mxu0 0.0
        %4742 = vmatprep.subr.mxu0 0.0
        %4743 = vmatpush1.msra.mxu0 0.0
        %4744 = vmatprep.subr.mxu0 0.0
        %4745 = vmatpush1.msra.mxu0 0.0
        %4746 = vmatprep.subr.mxu0 0.0
        %4747 = vmatpush1.msra.mxu0 0.0
        %4748 = vmatprep.subr.mxu0 0.0
        %4749 = vmatpush1.msra.mxu0 0.0
        %4750 = vmatprep.subr.mxu0 0.0
        %4751 = vmatpush1.msra.mxu0 0.0
        %4752 = vmatprep.subr.mxu0 0.0
        %4753 = vmatpush1.msra.mxu0 0.0
        %4754 = vmatprep.subr.mxu0 0.0
        %4755 = vmatpush1.msra.mxu0 0.0
        %4756 = vmatprep.subr.mxu0 0.0
        %4757 = vmatpush1.msra.mxu0 0.0
        %4758 = vmatprep.subr.mxu0 0.0
        %4759 = vmatpush1.msra.mxu0 0.0
        %4760 = vmatprep.mubr.f32.mxu0 0.0
        %4761 = vmatmul.mubr.f32.gmra.mrb[0].mxu0 %v4694
        %v4762 = vpop.f32.mrb[0].mxu0
        %v4763 = vadd.f32 0.0, %v4762
        %v4764 = vpop.f32.mrb[0].mxu0
        %4765 = vdwg.mxu0
        %v4767 = vsel %vm638, %v4763, 0
        %4769 = vmatprep.subr.mxu0 0.0
        %4770 = vmatpush1.msra.mxu0 %v4337
        %4771 = vmatprep.subr.mxu0 0.0
        %4772 = vmatpush1.msra.mxu0 0.0
        %4773 = vmatprep.subr.mxu0 0.0
        %4774 = vmatpush1.msra.mxu0 0.0
        %4775 = vmatprep.subr.mxu0 0.0
        %4776 = vmatpush1.msra.mxu0 0.0
        %4777 = vmatprep.subr.mxu0 0.0
        %4778 = vmatpush1.msra.mxu0 0.0
        %4779 = vmatprep.subr.mxu0 0.0
        %4780 = vmatpush1.msra.mxu0 0.0
        %4781 = vmatprep.subr.mxu0 0.0
        %4782 = vmatpush1.msra.mxu0 0.0
        %4783 = vmatprep.subr.mxu0 0.0
        %4784 = vmatpush1.msra.mxu0 0.0
        %4785 = vmatprep.subr.mxu0 0.0
        %4786 = vmatpush1.msra.mxu0 0.0
        %4787 = vmatprep.subr.mxu0 0.0
        %4788 = vmatpush1.msra.mxu0 0.0
        %4789 = vmatprep.subr.mxu0 0.0
        %4790 = vmatpush1.msra.mxu0 0.0
        %4791 = vmatprep.subr.mxu0 0.0
        %4792 = vmatpush1.msra.mxu0 0.0
        %4793 = vmatprep.subr.mxu0 0.0
        %4794 = vmatpush1.msra.mxu0 0.0
        %4795 = vmatprep.subr.mxu0 0.0
        %4796 = vmatpush1.msra.mxu0 0.0
        %4797 = vmatprep.subr.mxu0 0.0
        %4798 = vmatpush1.msra.mxu0 0.0
        %4799 = vmatprep.subr.mxu0 0.0
        %4800 = vmatpush1.msra.mxu0 0.0
        %4801 = vmatprep.subr.mxu0 0.0
        %4802 = vmatpush1.msra.mxu0 0.0
        %4803 = vmatprep.subr.mxu0 0.0
        %4804 = vmatpush1.msra.mxu0 0.0
        %4805 = vmatprep.subr.mxu0 0.0
        %4806 = vmatpush1.msra.mxu0 0.0
        %4807 = vmatprep.subr.mxu0 0.0
        %4808 = vmatpush1.msra.mxu0 0.0
        %4809 = vmatprep.subr.mxu0 0.0
        %4810 = vmatpush1.msra.mxu0 0.0
        %4811 = vmatprep.subr.mxu0 0.0
        %4812 = vmatpush1.msra.mxu0 0.0
        %4813 = vmatprep.subr.mxu0 0.0
        %4814 = vmatpush1.msra.mxu0 0.0
        %4815 = vmatprep.subr.mxu0 0.0
        %4816 = vmatpush1.msra.mxu0 0.0
        %4817 = vmatprep.subr.mxu0 0.0
        %4818 = vmatpush1.msra.mxu0 0.0
        %4819 = vmatprep.subr.mxu0 0.0
        %4820 = vmatpush1.msra.mxu0 0.0
        %4821 = vmatprep.subr.mxu0 0.0
        %4822 = vmatpush1.msra.mxu0 0.0
        %4823 = vmatprep.subr.mxu0 0.0
        %4824 = vmatpush1.msra.mxu0 0.0
        %4825 = vmatprep.subr.mxu0 0.0
        %4826 = vmatpush1.msra.mxu0 0.0
        %4827 = vmatprep.subr.mxu0 0.0
        %4828 = vmatpush1.msra.mxu0 0.0
        %4829 = vmatprep.subr.mxu0 0.0
        %4830 = vmatpush1.msra.mxu0 0.0
        %4831 = vmatprep.subr.mxu0 0.0
        %4832 = vmatpush1.msra.mxu0 0.0
        %4833 = vmatprep.mubr.f32.mxu0 0.0
        %4834 = vmatmul.mubr.f32.gmra.mrb[0].mxu0 %v4767
        %v4835 = vpop.f32.mrb[0].mxu0
        %v4836 = vadd.f32 0.0, %v4835
        %v4837 = vpop.f32.mrb[0].mxu0
        %4838 = vdwg.mxu0
        %v4839 = vmul.f32 %v4836, 0.00390625
        %v4840 = vadd.f32 %v4839, 1e-05
        %v4841 = vrsqrt.pop %v4840
        %v4842 = vmul.f32 %v4841, %v4338
        %v4843 = vlaneseq
        %v4844 = vshrl.u32 %v4843, 7
        %v4845 = vsub.s32 0, %v4844
        %v4846 = vrot.slane %v4842, %v4845
        %v4847 = vmul.f32 %v4560, %v4846
        %v4848 = vmul.f32 %v4561, %v4846
        %v4849 = vmul.f32 %v4562, %v4846
        %v4850 = vmul.f32 %v4563, %v4846
        %v4851 = vmul.f32 %v4564, %v4846
        %v4852 = vmul.f32 %v4565, %v4846
        %v4853 = vmul.f32 %v4566, %v4846
        %v4854 = vmul.f32 %v4567, %v4846
        %v4855 = vmul.f32 %v4568, %v4846
        %v4856 = vmul.f32 %v4569, %v4846
        %v4857 = vmul.f32 %v4570, %v4846
        %v4858 = vmul.f32 %v4571, %v4846
        %v4859 = vmul.f32 %v4572, %v4846
        %v4860 = vmul.f32 %v4573, %v4846
        %v4861 = vmul.f32 %v4574, %v4846
        %v4862 = vmul.f32 %v4575, %v4846
        %v4863 = vmul.f32 %v4576, %v4846
        %v4864 = vmul.f32 %v4577, %v4846
        %v4865 = vmul.f32 %v4578, %v4846
        %v4866 = vmul.f32 %v4579, %v4846
        %v4867 = vmul.f32 %v4580, %v4846
        %v4868 = vmul.f32 %v4581, %v4846
        %v4869 = vmul.f32 %v4582, %v4846
        %v4870 = vmul.f32 %v4583, %v4846
        %v4871 = vmul.f32 %v4584, %v4846
        %v4872 = vmul.f32 %v4585, %v4846
        %v4873 = vmul.f32 %v4586, %v4846
        %v4874 = vmul.f32 %v4587, %v4846
        %v4875 = vmul.f32 %v4588, %v4846
        %v4876 = vmul.f32 %v4589, %v4846
        %v4877 = vmul.f32 %v4590, %v4846
        %v4878 = vmul.f32 %v4591, %v4846
        %v4880 = vlaneseq
        %v4881 = vshrl.u32 %v4880, 7
        %v4882 = vsub.s32 0, %v4881
        %v4883 = vrot.slane %v4339, %v4882
        %v4885 = vadd.f32 %v4847, %v4883
        %v4886 = vadd.f32 %v4848, %v4883
        %v4887 = vadd.f32 %v4849, %v4883
        %v4888 = vadd.f32 %v4850, %v4883
        %v4889 = vadd.f32 %v4851, %v4883
        %v4890 = vadd.f32 %v4852, %v4883
        %v4891 = vadd.f32 %v4853, %v4883
        %v4892 = vadd.f32 %v4854, %v4883
        %v4893 = vadd.f32 %v4855, %v4883
        %v4894 = vadd.f32 %v4856, %v4883
        %v4895 = vadd.f32 %v4857, %v4883
        %v4896 = vadd.f32 %v4858, %v4883
        %v4897 = vadd.f32 %v4859, %v4883
        %v4898 = vadd.f32 %v4860, %v4883
        %v4899 = vadd.f32 %v4861, %v4883
        %v4900 = vadd.f32 %v4862, %v4883
        %v4901 = vadd.f32 %v4863, %v4883
        %v4902 = vadd.f32 %v4864, %v4883
        %v4903 = vadd.f32 %v4865, %v4883
        %v4904 = vadd.f32 %v4866, %v4883
        %v4905 = vadd.f32 %v4867, %v4883
        %v4906 = vadd.f32 %v4868, %v4883
        %v4907 = vadd.f32 %v4869, %v4883
        %v4908 = vadd.f32 %v4870, %v4883
        %v4909 = vadd.f32 %v4871, %v4883
        %v4910 = vadd.f32 %v4872, %v4883
        %v4911 = vadd.f32 %v4873, %v4883
        %v4912 = vadd.f32 %v4874, %v4883
        %v4913 = vadd.f32 %v4875, %v4883
        %v4914 = vadd.f32 %v4876, %v4883
        %v4915 = vadd.f32 %v4877, %v4883
        %v4916 = vadd.f32 %v4878, %v4883
        %v4917 = vmax.f32 %v4885, 0.0
        %v4918 = vmax.f32 %v4886, 0.0
        %v4919 = vmax.f32 %v4887, 0.0
        %v4920 = vmax.f32 %v4888, 0.0
        %v4921 = vmax.f32 %v4889, 0.0
        %v4922 = vmax.f32 %v4890, 0.0
        %v4923 = vmax.f32 %v4891, 0.0
        %v4924 = vmax.f32 %v4892, 0.0
        %v4925 = vmax.f32 %v4893, 0.0
        %v4926 = vmax.f32 %v4894, 0.0
        %v4927 = vmax.f32 %v4895, 0.0
        %v4928 = vmax.f32 %v4896, 0.0
        %v4929 = vmax.f32 %v4897, 0.0
        %v4930 = vmax.f32 %v4898, 0.0
        %v4931 = vmax.f32 %v4899, 0.0
        %v4932 = vmax.f32 %v4900, 0.0
        %v4933 = vmax.f32 %v4901, 0.0
        %v4934 = vmax.f32 %v4902, 0.0
        %v4935 = vmax.f32 %v4903, 0.0
        %v4936 = vmax.f32 %v4904, 0.0
        %v4937 = vmax.f32 %v4905, 0.0
        %v4938 = vmax.f32 %v4906, 0.0
        %v4939 = vmax.f32 %v4907, 0.0
        %v4940 = vmax.f32 %v4908, 0.0
        %v4941 = vmax.f32 %v4909, 0.0
        %v4942 = vmax.f32 %v4910, 0.0
        %v4943 = vmax.f32 %v4911, 0.0
        %v4944 = vmax.f32 %v4912, 0.0
        %v4945 = vmax.f32 %v4913, 0.0
        %v4946 = vmax.f32 %v4914, 0.0
        %v4947 = vmax.f32 %v4915, 0.0
        %v4948 = vmax.f32 %v4916, 0.0
        %v4949 = vpack.c.bf16 %v4918, %v4917
        %v4950 = vpack.c.bf16 %v4920, %v4919
        %v4951 = vpack.c.bf16 %v4922, %v4921
        %v4952 = vpack.c.bf16 %v4924, %v4923
        %v4953 = vpack.c.bf16 %v4926, %v4925
        %v4954 = vpack.c.bf16 %v4928, %v4927
        %v4955 = vpack.c.bf16 %v4930, %v4929
        %v4956 = vpack.c.bf16 %v4932, %v4931
        %v4957 = vpack.c.bf16 %v4934, %v4933
        %v4958 = vpack.c.bf16 %v4936, %v4935
        %v4959 = vpack.c.bf16 %v4938, %v4937
        %v4960 = vpack.c.bf16 %v4940, %v4939
        %v4961 = vpack.c.bf16 %v4942, %v4941
        %v4962 = vpack.c.bf16 %v4944, %v4943
        %v4963 = vpack.c.bf16 %v4946, %v4945
        %v4964 = vpack.c.bf16 %v4948, %v4947
        %v4965 = vld [vmem:[%s13] sm:$0xf]
        %v4966 = vpack.c.bf16 %v603, %v602
        %v4967 = vpack.c.bf16 %v605, %v604
        %v4968 = vpack.c.bf16 %v607, %v606
        %v4969 = vpack.c.bf16 %v609, %v608
        %v4970 = vpack.c.bf16 %v611, %v610
        %v4971 = vpack.c.bf16 %v613, %v612
        %v4972 = vpack.c.bf16 %v615, %v614
        %v4973 = vpack.c.bf16 %v617, %v616
        %v4974 = vpack.c.bf16 %v619, %v618
        %v4975 = vpack.c.bf16 %v621, %v620
        %v4976 = vpack.c.bf16 %v623, %v622
        %v4977 = vpack.c.bf16 %v625, %v624
        %v4978 = vpack.c.bf16 %v627, %v626
        %v4979 = vpack.c.bf16 %v629, %v628
        %v4980 = vpack.c.bf16 %v631, %v630
        %v4981 = vpack.c.bf16 %v633, %v632
        %v4982 = vld [vmem:[%s14] sm:$0xf]
        %v4984 = vsel %vm638, %v4966, 0
        %v4987 = vsel %vm638, %v4967, 0
        %v4990 = vsel %vm638, %v4968, 0
        %v4993 = vsel %vm638, %v4969, 0
        %v4996 = vsel %vm638, %v4970, 0
        %v4999 = vsel %vm638, %v4971, 0
        %v5002 = vsel %vm638, %v4972, 0
        %v5005 = vsel %vm638, %v4973, 0
        %v5008 = vsel %vm638, %v4974, 0
        %v5011 = vsel %vm638, %v4975, 0
        %v5014 = vsel %vm638, %v4976, 0
        %v5017 = vsel %vm638, %v4977, 0
        %v5020 = vsel %vm638, %v4978, 0
        %v5023 = vsel %vm638, %v4979, 0
        %v5026 = vsel %vm638, %v4980, 0
        %v5029 = vsel %vm638, %v4981, 0
        %v5032 = vsel %vm1313, %v4982, 0
        %5034 = vmatprep.subr.bf16.mxu0 0
        %5035 = vmatpush1.bf16.msra.mxu0 %v5032
        %5036 = vmatprep.subr.bf16.mxu0 0
        %5037 = vmatpush1.bf16.msra.mxu0 0
        %5038 = vmatprep.subr.bf16.mxu0 0
        %5039 = vmatpush1.bf16.msra.mxu0 0
        %5040 = vmatprep.subr.bf16.mxu0 0
        %5041 = vmatpush1.bf16.msra.mxu0 0
        %5042 = vmatprep.subr.bf16.mxu0 0
        %5043 = vmatpush1.bf16.msra.mxu0 0
        %5044 = vmatprep.subr.bf16.mxu0 0
        %5045 = vmatpush1.bf16.msra.mxu0 0
        %5046 = vmatprep.subr.bf16.mxu0 0
        %5047 = vmatpush1.bf16.msra.mxu0 0
        %5048 = vmatprep.subr.bf16.mxu0 0
        %5049 = vmatpush1.bf16.msra.mxu0 0
        %5050 = vmatprep.subr.bf16.mxu0 0
        %5051 = vmatpush1.bf16.msra.mxu0 0
        %5052 = vmatprep.subr.bf16.mxu0 0
        %5053 = vmatpush1.bf16.msra.mxu0 0
        %5054 = vmatprep.subr.bf16.mxu0 0
        %5055 = vmatpush1.bf16.msra.mxu0 0
        %5056 = vmatprep.subr.bf16.mxu0 0
        %5057 = vmatpush1.bf16.msra.mxu0 0
        %5058 = vmatprep.subr.bf16.mxu0 0
        %5059 = vmatpush1.bf16.msra.mxu0 0
        %5060 = vmatprep.subr.bf16.mxu0 0
        %5061 = vmatpush1.bf16.msra.mxu0 0
        %5062 = vmatprep.subr.bf16.mxu0 0
        %5063 = vmatpush1.bf16.msra.mxu0 0
        %5064 = vmatprep.subr.bf16.mxu0 0
        %5065 = vmatpush1.bf16.msra.mxu0 0
        %5066 = vmatprep.mubr.bf16.mxu0 0
        %5067 = vmatmul.mubr.bf16.gmra.mrb[0].mxu0 %v4984
        %v5068 = vpop.f32.mrb[0].mxu0
        %v5069 = vadd.f32 0.0, %v5068
        %v5070 = vpop.f32.mrb[0].mxu0
        %v5071 = vpop.f32.mrb[0].mxu0
        %v5072 = vadd.f32 0.0, %v5071
        %v5073 = vpop.f32.mrb[0].mxu0
        %5074 = vmatprep.mubr.bf16.mxu0 0
        %5075 = vmatmul.mubr.bf16.gmra.mrb[0].mxu0 %v4987
        %v5076 = vpop.f32.mrb[0].mxu0
        %v5077 = vadd.f32 0.0, %v5076
        %v5078 = vpop.f32.mrb[0].mxu0
        %v5079 = vpop.f32.mrb[0].mxu0
        %v5080 = vadd.f32 0.0, %v5079
        %v5081 = vpop.f32.mrb[0].mxu0
        %5082 = vmatprep.mubr.bf16.mxu0 0
        %5083 = vmatmul.mubr.bf16.gmra.mrb[0].mxu0 %v4990
        %v5084 = vpop.f32.mrb[0].mxu0
        %v5085 = vadd.f32 0.0, %v5084
        %v5086 = vpop.f32.mrb[0].mxu0
        %v5087 = vpop.f32.mrb[0].mxu0
        %v5088 = vadd.f32 0.0, %v5087
        %v5089 = vpop.f32.mrb[0].mxu0
        %5090 = vmatprep.mubr.bf16.mxu0 0
        %5091 = vmatmul.mubr.bf16.gmra.mrb[0].mxu0 %v4993
        %v5092 = vpop.f32.mrb[0].mxu0
        %v5093 = vadd.f32 0.0, %v5092
        %v5094 = vpop.f32.mrb[0].mxu0
        %v5095 = vpop.f32.mrb[0].mxu0
        %v5096 = vadd.f32 0.0, %v5095
        %v5097 = vpop.f32.mrb[0].mxu0
        %5098 = vmatprep.mubr.bf16.mxu0 0
        %5099 = vmatmul.mubr.bf16.gmra.mrb[0].mxu0 %v4996
        %v5100 = vpop.f32.mrb[0].mxu0
        %v5101 = vadd.f32 0.0, %v5100
        %v5102 = vpop.f32.mrb[0].mxu0
        %v5103 = vpop.f32.mrb[0].mxu0
        %v5104 = vadd.f32 0.0, %v5103
        %v5105 = vpop.f32.mrb[0].mxu0
        %5106 = vmatprep.mubr.bf16.mxu0 0
        %5107 = vmatmul.mubr.bf16.gmra.mrb[0].mxu0 %v4999
        %v5108 = vpop.f32.mrb[0].mxu0
        %v5109 = vadd.f32 0.0, %v5108
        %v5110 = vpop.f32.mrb[0].mxu0
        %v5111 = vpop.f32.mrb[0].mxu0
        %v5112 = vadd.f32 0.0, %v5111
        %v5113 = vpop.f32.mrb[0].mxu0
        %5114 = vmatprep.mubr.bf16.mxu0 0
        %5115 = vmatmul.mubr.bf16.gmra.mrb[0].mxu0 %v5002
        %v5116 = vpop.f32.mrb[0].mxu0
        %v5117 = vadd.f32 0.0, %v5116
        %v5118 = vpop.f32.mrb[0].mxu0
        %v5119 = vpop.f32.mrb[0].mxu0
        %v5120 = vadd.f32 0.0, %v5119
        %v5121 = vpop.f32.mrb[0].mxu0
        %5122 = vmatprep.mubr.bf16.mxu0 0
        %5123 = vmatmul.mubr.bf16.gmra.mrb[0].mxu0 %v5005
        %v5124 = vpop.f32.mrb[0].mxu0
        %v5125 = vadd.f32 0.0, %v5124
        %v5126 = vpop.f32.mrb[0].mxu0
        %v5127 = vpop.f32.mrb[0].mxu0
        %v5128 = vadd.f32 0.0, %v5127
        %v5129 = vpop.f32.mrb[0].mxu0
        %5130 = vmatprep.mubr.bf16.mxu0 0
        %5131 = vmatmul.mubr.bf16.gmra.mrb[0].mxu0 %v5008
        %v5132 = vpop.f32.mrb[0].mxu0
        %v5133 = vadd.f32 0.0, %v5132
        %v5134 = vpop.f32.mrb[0].mxu0
        %v5135 = vpop.f32.mrb[0].mxu0
        %v5136 = vadd.f32 0.0, %v5135
        %v5137 = vpop.f32.mrb[0].mxu0
        %5138 = vmatprep.mubr.bf16.mxu0 0
        %5139 = vmatmul.mubr.bf16.gmra.mrb[0].mxu0 %v5011
        %v5140 = vpop.f32.mrb[0].mxu0
        %v5141 = vadd.f32 0.0, %v5140
        %v5142 = vpop.f32.mrb[0].mxu0
        %v5143 = vpop.f32.mrb[0].mxu0
        %v5144 = vadd.f32 0.0, %v5143
        %v5145 = vpop.f32.mrb[0].mxu0
        %5146 = vmatprep.mubr.bf16.mxu0 0
        %5147 = vmatmul.mubr.bf16.gmra.mrb[0].mxu0 %v5014
        %v5148 = vpop.f32.mrb[0].mxu0
        %v5149 = vadd.f32 0.0, %v5148
        %v5150 = vpop.f32.mrb[0].mxu0
        %v5151 = vpop.f32.mrb[0].mxu0
        %v5152 = vadd.f32 0.0, %v5151
        %v5153 = vpop.f32.mrb[0].mxu0
        %5154 = vmatprep.mubr.bf16.mxu0 0
        %5155 = vmatmul.mubr.bf16.gmra.mrb[0].mxu0 %v5017
        %v5156 = vpop.f32.mrb[0].mxu0
        %v5157 = vadd.f32 0.0, %v5156
        %v5158 = vpop.f32.mrb[0].mxu0
        %v5159 = vpop.f32.mrb[0].mxu0
        %v5160 = vadd.f32 0.0, %v5159
        %v5161 = vpop.f32.mrb[0].mxu0
        %5162 = vmatprep.mubr.bf16.mxu0 0
        %5163 = vmatmul.mubr.bf16.gmra.mrb[0].mxu0 %v5020
        %v5164 = vpop.f32.mrb[0].mxu0
        %v5165 = vadd.f32 0.0, %v5164
        %v5166 = vpop.f32.mrb[0].mxu0
        %v5167 = vpop.f32.mrb[0].mxu0
        %v5168 = vadd.f32 0.0, %v5167
        %v5169 = vpop.f32.mrb[0].mxu0
        %5170 = vmatprep.mubr.bf16.mxu0 0
        %5171 = vmatmul.mubr.bf16.gmra.mrb[0].mxu0 %v5023
        %v5172 = vpop.f32.mrb[0].mxu0
        %v5173 = vadd.f32 0.0, %v5172
        %v5174 = vpop.f32.mrb[0].mxu0
        %v5175 = vpop.f32.mrb[0].mxu0
        %v5176 = vadd.f32 0.0, %v5175
        %v5177 = vpop.f32.mrb[0].mxu0
        %5178 = vmatprep.mubr.bf16.mxu0 0
        %5179 = vmatmul.mubr.bf16.gmra.mrb[0].mxu0 %v5026
        %v5180 = vpop.f32.mrb[0].mxu0
        %v5181 = vadd.f32 0.0, %v5180
        %v5182 = vpop.f32.mrb[0].mxu0
        %v5183 = vpop.f32.mrb[0].mxu0
        %v5184 = vadd.f32 0.0, %v5183
        %v5185 = vpop.f32.mrb[0].mxu0
        %5186 = vmatprep.mubr.bf16.mxu0 0
        %5187 = vmatmul.mubr.bf16.gmra.mrb[0].mxu0 %v5029
        %v5188 = vpop.f32.mrb[0].mxu0
        %v5189 = vadd.f32 0.0, %v5188
        %v5190 = vpop.f32.mrb[0].mxu0
        %v5191 = vpop.f32.mrb[0].mxu0
        %v5192 = vadd.f32 0.0, %v5191
        %v5193 = vpop.f32.mrb[0].mxu0
        %5194 = vdwg.mxu0
        %v5195 = vld [vmem:[%s17] sm:$0xff]
        %v5196 = vld [vmem:[%s17 + $0x8] sm:$0xff]
        %v5197 = vld [vmem:[%s17 + $0x10] sm:$0xff]
        %v5198 = vld [vmem:[%s17 + $0x18] sm:$0xff]
        %v5199 = vld [vmem:[%s18] sm:$0xff]
        %v5200 = vld [vmem:[%s18 + $0x8] sm:$0xff]
        %v5201 = vld [vmem:[%s18 + $0x10] sm:$0xff]
        %v5202 = vld [vmem:[%s18 + $0x18] sm:$0xff]
        %v5203 = vld [vmem:[%s15] sm:$0x1]
        %v5204 = vld [vmem:[%s16] sm:$0x1]
        %v5205 = vsel %vm3938, %v5069, 0.0
        %v5206 = vsel %vm3938, %v5072, 0.0
        %v5207 = vadd.f32 %v5205, %v5206
        %v5208 = vsel %vm3938, %v5077, 0.0
        %v5209 = vadd.f32 %v5207, %v5208
        %v5210 = vsel %vm3938, %v5080, 0.0
        %v5211 = vadd.f32 %v5209, %v5210
        %v5212 = vsel %vm3938, %v5085, 0.0
        %v5213 = vadd.f32 %v5211, %v5212
        %v5214 = vsel %vm3938, %v5088, 0.0
        %v5215 = vadd.f32 %v5213, %v5214
        %v5216 = vsel %vm3938, %v5093, 0.0
        %v5217 = vadd.f32 %v5215, %v5216
        %v5218 = vsel %vm3938, %v5096, 0.0
        %v5219 = vadd.f32 %v5217, %v5218
        %v5220 = vsel %vm3938, %v5101, 0.0
        %v5221 = vadd.f32 %v5219, %v5220
        %v5222 = vsel %vm3938, %v5104, 0.0
        %v5223 = vadd.f32 %v5221, %v5222
        %v5224 = vsel %vm3938, %v5109, 0.0
        %v5225 = vadd.f32 %v5223, %v5224
        %v5226 = vsel %vm3938, %v5112, 0.0
        %v5227 = vadd.f32 %v5225, %v5226
        %v5228 = vsel %vm3938, %v5117, 0.0
        %v5229 = vadd.f32 %v5227, %v5228
        %v5230 = vsel %vm3938, %v5120, 0.0
        %v5231 = vadd.f32 %v5229, %v5230
        %v5232 = vsel %vm3938, %v5125, 0.0
        %v5233 = vadd.f32 %v5231, %v5232
        %v5234 = vsel %vm3938, %v5128, 0.0
        %v5235 = vadd.f32 %v5233, %v5234
        %v5236 = vsel %vm3938, %v5133, 0.0
        %v5237 = vadd.f32 %v5235, %v5236
        %v5238 = vsel %vm3938, %v5136, 0.0
        %v5239 = vadd.f32 %v5237, %v5238
        %v5240 = vsel %vm3938, %v5141, 0.0
        %v5241 = vadd.f32 %v5239, %v5240
        %v5242 = vsel %vm3938, %v5144, 0.0
        %v5243 = vadd.f32 %v5241, %v5242
        %v5244 = vsel %vm3938, %v5149, 0.0
        %v5245 = vadd.f32 %v5243, %v5244
        %v5246 = vsel %vm3938, %v5152, 0.0
        %v5247 = vadd.f32 %v5245, %v5246
        %v5248 = vsel %vm3938, %v5157, 0.0
        %v5249 = vadd.f32 %v5247, %v5248
        %v5250 = vsel %vm3938, %v5160, 0.0
        %v5251 = vadd.f32 %v5249, %v5250
        %v5252 = vsel %vm3938, %v5165, 0.0
        %v5253 = vadd.f32 %v5251, %v5252
        %v5254 = vsel %vm3938, %v5168, 0.0
        %v5255 = vadd.f32 %v5253, %v5254
        %v5256 = vsel %vm3938, %v5173, 0.0
        %v5257 = vadd.f32 %v5255, %v5256
        %v5258 = vsel %vm3938, %v5176, 0.0
        %v5259 = vadd.f32 %v5257, %v5258
        %v5260 = vsel %vm3938, %v5181, 0.0
        %v5261 = vadd.f32 %v5259, %v5260
        %v5262 = vsel %vm3938, %v5184, 0.0
        %v5263 = vadd.f32 %v5261, %v5262
        %v5264 = vsel %vm3938, %v5189, 0.0
        %v5265 = vadd.f32 %v5263, %v5264
        %v5266 = vsel %vm3938, %v5192, 0.0
        %v5267 = vadd.f32 %v5265, %v5266
        %v5268 = vrot.slane %v5267, 4
        %v5269 = vadd.f32 %v5267, %v5268
        %v5270 = vrot.slane %v5269, 2
        %v5271 = vadd.f32 %v5269, %v5270
        %v5272 = vrot.slane %v5271, 1
        %v5273 = vadd.f32 %v5271, %v5272
        %v5275 = vsel %vm3938, %v5273, 0
        %5277 = vmatprep.subr.mxu0 0.0
        %5278 = vmatpush1.msra.mxu0 %v5195
        %5279 = vmatprep.subr.mxu0 0.0
        %5280 = vmatpush1.msra.mxu0 %v5196
        %5281 = vmatprep.subr.mxu0 0.0
        %5282 = vmatpush1.msra.mxu0 %v5197
        %5283 = vmatprep.subr.mxu0 0.0
        %5284 = vmatpush1.msra.mxu0 %v5198
        %5285 = vmatprep.subr.mxu0 0.0
        %5286 = vmatpush1.msra.mxu0 0.0
        %5287 = vmatprep.subr.mxu0 0.0
        %5288 = vmatpush1.msra.mxu0 0.0
        %5289 = vmatprep.subr.mxu0 0.0
        %5290 = vmatpush1.msra.mxu0 0.0
        %5291 = vmatprep.subr.mxu0 0.0
        %5292 = vmatpush1.msra.mxu0 0.0
        %5293 = vmatprep.subr.mxu0 0.0
        %5294 = vmatpush1.msra.mxu0 0.0
        %5295 = vmatprep.subr.mxu0 0.0
        %5296 = vmatpush1.msra.mxu0 0.0
        %5297 = vmatprep.subr.mxu0 0.0
        %5298 = vmatpush1.msra.mxu0 0.0
        %5299 = vmatprep.subr.mxu0 0.0
        %5300 = vmatpush1.msra.mxu0 0.0
        %5301 = vmatprep.subr.mxu0 0.0
        %5302 = vmatpush1.msra.mxu0 0.0
        %5303 = vmatprep.subr.mxu0 0.0
        %5304 = vmatpush1.msra.mxu0 0.0
        %5305 = vmatprep.subr.mxu0 0.0
        %5306 = vmatpush1.msra.mxu0 0.0
        %5307 = vmatprep.subr.mxu0 0.0
        %5308 = vmatpush1.msra.mxu0 0.0
        %5309 = vmatprep.subr.mxu0 0.0
        %5310 = vmatpush1.msra.mxu0 0.0
        %5311 = vmatprep.subr.mxu0 0.0
        %5312 = vmatpush1.msra.mxu0 0.0
        %5313 = vmatprep.subr.mxu0 0.0
        %5314 = vmatpush1.msra.mxu0 0.0
        %5315 = vmatprep.subr.mxu0 0.0
        %5316 = vmatpush1.msra.mxu0 0.0
        %5317 = vmatprep.subr.mxu0 0.0
        %5318 = vmatpush1.msra.mxu0 0.0
        %5319 = vmatprep.subr.mxu0 0.0
        %5320 = vmatpush1.msra.mxu0 0.0
        %5321 = vmatprep.subr.mxu0 0.0
        %5322 = vmatpush1.msra.mxu0 0.0
        %5323 = vmatprep.subr.mxu0 0.0
        %5324 = vmatpush1.msra.mxu0 0.0
        %5325 = vmatprep.subr.mxu0 0.0
        %5326 = vmatpush1.msra.mxu0 0.0
        %5327 = vmatprep.subr.mxu0 0.0
        %5328 = vmatpush1.msra.mxu0 0.0
        %5329 = vmatprep.subr.mxu0 0.0
        %5330 = vmatpush1.msra.mxu0 0.0
        %5331 = vmatprep.subr.mxu0 0.0
        %5332 = vmatpush1.msra.mxu0 0.0
        %5333 = vmatprep.subr.mxu0 0.0
        %5334 = vmatpush1.msra.mxu0 0.0
        %5335 = vmatprep.subr.mxu0 0.0
        %5336 = vmatpush1.msra.mxu0 0.0
        %5337 = vmatprep.subr.mxu0 0.0
        %5338 = vmatpush1.msra.mxu0 0.0
        %5339 = vmatprep.subr.mxu0 0.0
        %5340 = vmatpush1.msra.mxu0 0.0
        %5341 = vmatprep.mubr.f32.mxu0 0.0
        %5342 = vmatmul.mubr.f32.gmra.mrb[0].mxu0 %v5275
        %v5343 = vpop.f32.mrb[0].mxu0
        %v5344 = vadd.f32 0.0, %v5343
        %v5345 = vpop.f32.mrb[0].mxu0
        %5346 = vdwg.mxu0
        %v5348 = vsel %vm3938, %v5344, 0
        %5350 = vmatprep.subr.mxu0 0.0
        %5351 = vmatpush1.msra.mxu0 %v5199
        %5352 = vmatprep.subr.mxu0 0.0
        %5353 = vmatpush1.msra.mxu0 %v5200
        %5354 = vmatprep.subr.mxu0 0.0
        %5355 = vmatpush1.msra.mxu0 %v5201
        %5356 = vmatprep.subr.mxu0 0.0
        %5357 = vmatpush1.msra.mxu0 %v5202
        %5358 = vmatprep.subr.mxu0 0.0
        %5359 = vmatpush1.msra.mxu0 0.0
        %5360 = vmatprep.subr.mxu0 0.0
        %5361 = vmatpush1.msra.mxu0 0.0
        %5362 = vmatprep.subr.mxu0 0.0
        %5363 = vmatpush1.msra.mxu0 0.0
        %5364 = vmatprep.subr.mxu0 0.0
        %5365 = vmatpush1.msra.mxu0 0.0
        %5366 = vmatprep.subr.mxu0 0.0
        %5367 = vmatpush1.msra.mxu0 0.0
        %5368 = vmatprep.subr.mxu0 0.0
        %5369 = vmatpush1.msra.mxu0 0.0
        %5370 = vmatprep.subr.mxu0 0.0
        %5371 = vmatpush1.msra.mxu0 0.0
        %5372 = vmatprep.subr.mxu0 0.0
        %5373 = vmatpush1.msra.mxu0 0.0
        %5374 = vmatprep.subr.mxu0 0.0
        %5375 = vmatpush1.msra.mxu0 0.0
        %5376 = vmatprep.subr.mxu0 0.0
        %5377 = vmatpush1.msra.mxu0 0.0
        %5378 = vmatprep.subr.mxu0 0.0
        %5379 = vmatpush1.msra.mxu0 0.0
        %5380 = vmatprep.subr.mxu0 0.0
        %5381 = vmatpush1.msra.mxu0 0.0
        %5382 = vmatprep.subr.mxu0 0.0
        %5383 = vmatpush1.msra.mxu0 0.0
        %5384 = vmatprep.subr.mxu0 0.0
        %5385 = vmatpush1.msra.mxu0 0.0
        %5386 = vmatprep.subr.mxu0 0.0
        %5387 = vmatpush1.msra.mxu0 0.0
        %5388 = vmatprep.subr.mxu0 0.0
        %5389 = vmatpush1.msra.mxu0 0.0
        %5390 = vmatprep.subr.mxu0 0.0
        %5391 = vmatpush1.msra.mxu0 0.0
        %5392 = vmatprep.subr.mxu0 0.0
        %5393 = vmatpush1.msra.mxu0 0.0
        %5394 = vmatprep.subr.mxu0 0.0
        %5395 = vmatpush1.msra.mxu0 0.0
        %5396 = vmatprep.subr.mxu0 0.0
        %5397 = vmatpush1.msra.mxu0 0.0
        %5398 = vmatprep.subr.mxu0 0.0
        %5399 = vmatpush1.msra.mxu0 0.0
        %5400 = vmatprep.subr.mxu0 0.0
        %5401 = vmatpush1.msra.mxu0 0.0
        %5402 = vmatprep.subr.mxu0 0.0
        %5403 = vmatpush1.msra.mxu0 0.0
        %5404 = vmatprep.subr.mxu0 0.0
        %5405 = vmatpush1.msra.mxu0 0.0
        %5406 = vmatprep.subr.mxu0 0.0
        %5407 = vmatpush1.msra.mxu0 0.0
        %5408 = vmatprep.subr.mxu0 0.0
        %5409 = vmatpush1.msra.mxu0 0.0
        %5410 = vmatprep.subr.mxu0 0.0
        %5411 = vmatpush1.msra.mxu0 0.0
        %5412 = vmatprep.subr.mxu0 0.0
        %5413 = vmatpush1.msra.mxu0 0.0
        %5414 = vmatprep.mubr.f32.mxu0 0.0
        %5415 = vmatmul.mubr.f32.gmra.mrb[0].mxu0 %v5348
        %v5416 = vpop.f32.mrb[0].mxu0
        %v5417 = vadd.f32 0.0, %v5416
        %v5418 = vpop.f32.mrb[0].mxu0
        %5419 = vdwg.mxu0
        %v5420 = vmul.f32 %v5417, 0.00390625
        %v5421 = vlaneseq
        %v5422 = vshrl.u32 %v5421, 7
        %v5423 = vsub.s32 0, %v5422
        %v5424 = vrot.slane %v5420, %v5423
        %v5425 = vsub.f32 %v5069, %v5424
        %v5426 = vsub.f32 %v5072, %v5424
        %v5427 = vsub.f32 %v5077, %v5424
        %v5428 = vsub.f32 %v5080, %v5424
        %v5429 = vsub.f32 %v5085, %v5424
        %v5430 = vsub.f32 %v5088, %v5424
        %v5431 = vsub.f32 %v5093, %v5424
        %v5432 = vsub.f32 %v5096, %v5424
        %v5433 = vsub.f32 %v5101, %v5424
        %v5434 = vsub.f32 %v5104, %v5424
        %v5435 = vsub.f32 %v5109, %v5424
        %v5436 = vsub.f32 %v5112, %v5424
        %v5437 = vsub.f32 %v5117, %v5424
        %v5438 = vsub.f32 %v5120, %v5424
        %v5439 = vsub.f32 %v5125, %v5424
        %v5440 = vsub.f32 %v5128, %v5424
        %v5441 = vsub.f32 %v5133, %v5424
        %v5442 = vsub.f32 %v5136, %v5424
        %v5443 = vsub.f32 %v5141, %v5424
        %v5444 = vsub.f32 %v5144, %v5424
        %v5445 = vsub.f32 %v5149, %v5424
        %v5446 = vsub.f32 %v5152, %v5424
        %v5447 = vsub.f32 %v5157, %v5424
        %v5448 = vsub.f32 %v5160, %v5424
        %v5449 = vsub.f32 %v5165, %v5424
        %v5450 = vsub.f32 %v5168, %v5424
        %v5451 = vsub.f32 %v5173, %v5424
        %v5452 = vsub.f32 %v5176, %v5424
        %v5453 = vsub.f32 %v5181, %v5424
        %v5454 = vsub.f32 %v5184, %v5424
        %v5455 = vsub.f32 %v5189, %v5424
        %v5456 = vsub.f32 %v5192, %v5424
        %v5457 = vmul.f32 %v5425, %v5425
        %v5458 = vmul.f32 %v5426, %v5426
        %v5459 = vmul.f32 %v5427, %v5427
        %v5460 = vmul.f32 %v5428, %v5428
        %v5461 = vmul.f32 %v5429, %v5429
        %v5462 = vmul.f32 %v5430, %v5430
        %v5463 = vmul.f32 %v5431, %v5431
        %v5464 = vmul.f32 %v5432, %v5432
        %v5465 = vmul.f32 %v5433, %v5433
        %v5466 = vmul.f32 %v5434, %v5434
        %v5467 = vmul.f32 %v5435, %v5435
        %v5468 = vmul.f32 %v5436, %v5436
        %v5469 = vmul.f32 %v5437, %v5437
        %v5470 = vmul.f32 %v5438, %v5438
        %v5471 = vmul.f32 %v5439, %v5439
        %v5472 = vmul.f32 %v5440, %v5440
        %v5473 = vmul.f32 %v5441, %v5441
        %v5474 = vmul.f32 %v5442, %v5442
        %v5475 = vmul.f32 %v5443, %v5443
        %v5476 = vmul.f32 %v5444, %v5444
        %v5477 = vmul.f32 %v5445, %v5445
        %v5478 = vmul.f32 %v5446, %v5446
        %v5479 = vmul.f32 %v5447, %v5447
        %v5480 = vmul.f32 %v5448, %v5448
        %v5481 = vmul.f32 %v5449, %v5449
        %v5482 = vmul.f32 %v5450, %v5450
        %v5483 = vmul.f32 %v5451, %v5451
        %v5484 = vmul.f32 %v5452, %v5452
        %v5485 = vmul.f32 %v5453, %v5453
        %v5486 = vmul.f32 %v5454, %v5454
        %v5487 = vmul.f32 %v5455, %v5455
        %v5488 = vmul.f32 %v5456, %v5456
        %v5489 = vsel %vm3938, %v5457, 0.0
        %v5490 = vsel %vm3938, %v5458, 0.0
        %v5491 = vadd.f32 %v5489, %v5490
        %v5492 = vsel %vm3938, %v5459, 0.0
        %v5493 = vadd.f32 %v5491, %v5492
        %v5494 = vsel %vm3938, %v5460, 0.0
        %v5495 = vadd.f32 %v5493, %v5494
        %v5496 = vsel %vm3938, %v5461, 0.0
        %v5497 = vadd.f32 %v5495, %v5496
        %v5498 = vsel %vm3938, %v5462, 0.0
        %v5499 = vadd.f32 %v5497, %v5498
        %v5500 = vsel %vm3938, %v5463, 0.0
        %v5501 = vadd.f32 %v5499, %v5500
        %v5502 = vsel %vm3938, %v5464, 0.0
        %v5503 = vadd.f32 %v5501, %v5502
        %v5504 = vsel %vm3938, %v5465, 0.0
        %v5505 = vadd.f32 %v5503, %v5504
        %v5506 = vsel %vm3938, %v5466, 0.0
        %v5507 = vadd.f32 %v5505, %v5506
        %v5508 = vsel %vm3938, %v5467, 0.0
        %v5509 = vadd.f32 %v5507, %v5508
        %v5510 = vsel %vm3938, %v5468, 0.0
        %v5511 = vadd.f32 %v5509, %v5510
        %v5512 = vsel %vm3938, %v5469, 0.0
        %v5513 = vadd.f32 %v5511, %v5512
        %v5514 = vsel %vm3938, %v5470, 0.0
        %v5515 = vadd.f32 %v5513, %v5514
        %v5516 = vsel %vm3938, %v5471, 0.0
        %v5517 = vadd.f32 %v5515, %v5516
        %v5518 = vsel %vm3938, %v5472, 0.0
        %v5519 = vadd.f32 %v5517, %v5518
        %v5520 = vsel %vm3938, %v5473, 0.0
        %v5521 = vadd.f32 %v5519, %v5520
        %v5522 = vsel %vm3938, %v5474, 0.0
        %v5523 = vadd.f32 %v5521, %v5522
        %v5524 = vsel %vm3938, %v5475, 0.0
        %v5525 = vadd.f32 %v5523, %v5524
        %v5526 = vsel %vm3938, %v5476, 0.0
        %v5527 = vadd.f32 %v5525, %v5526
        %v5528 = vsel %vm3938, %v5477, 0.0
        %v5529 = vadd.f32 %v5527, %v5528
        %v5530 = vsel %vm3938, %v5478, 0.0
        %v5531 = vadd.f32 %v5529, %v5530
        %v5532 = vsel %vm3938, %v5479, 0.0
        %v5533 = vadd.f32 %v5531, %v5532
        %v5534 = vsel %vm3938, %v5480, 0.0
        %v5535 = vadd.f32 %v5533, %v5534
        %v5536 = vsel %vm3938, %v5481, 0.0
        %v5537 = vadd.f32 %v5535, %v5536
        %v5538 = vsel %vm3938, %v5482, 0.0
        %v5539 = vadd.f32 %v5537, %v5538
        %v5540 = vsel %vm3938, %v5483, 0.0
        %v5541 = vadd.f32 %v5539, %v5540
        %v5542 = vsel %vm3938, %v5484, 0.0
        %v5543 = vadd.f32 %v5541, %v5542
        %v5544 = vsel %vm3938, %v5485, 0.0
        %v5545 = vadd.f32 %v5543, %v5544
        %v5546 = vsel %vm3938, %v5486, 0.0
        %v5547 = vadd.f32 %v5545, %v5546
        %v5548 = vsel %vm3938, %v5487, 0.0
        %v5549 = vadd.f32 %v5547, %v5548
        %v5550 = vsel %vm3938, %v5488, 0.0
        %v5551 = vadd.f32 %v5549, %v5550
        %v5552 = vrot.slane %v5551, 4
        %v5553 = vadd.f32 %v5551, %v5552
        %v5554 = vrot.slane %v5553, 2
        %v5555 = vadd.f32 %v5553, %v5554
        %v5556 = vrot.slane %v5555, 1
        %v5557 = vadd.f32 %v5555, %v5556
        %v5559 = vsel %vm3938, %v5557, 0
        %5561 = vmatprep.subr.mxu0 0.0
        %5562 = vmatpush1.msra.mxu0 %v5195
        %5563 = vmatprep.subr.mxu0 0.0
        %5564 = vmatpush1.msra.mxu0 %v5196
        %5565 = vmatprep.subr.mxu0 0.0
        %5566 = vmatpush1.msra.mxu0 %v5197
        %5567 = vmatprep.subr.mxu0 0.0
        %5568 = vmatpush1.msra.mxu0 %v5198
        %5569 = vmatprep.subr.mxu0 0.0
        %5570 = vmatpush1.msra.mxu0 0.0
        %5571 = vmatprep.subr.mxu0 0.0
        %5572 = vmatpush1.msra.mxu0 0.0
        %5573 = vmatprep.subr.mxu0 0.0
        %5574 = vmatpush1.msra.mxu0 0.0
        %5575 = vmatprep.subr.mxu0 0.0
        %5576 = vmatpush1.msra.mxu0 0.0
        %5577 = vmatprep.subr.mxu0 0.0
        %5578 = vmatpush1.msra.mxu0 0.0
        %5579 = vmatprep.subr.mxu0 0.0
        %5580 = vmatpush1.msra.mxu0 0.0
        %5581 = vmatprep.subr.mxu0 0.0
        %5582 = vmatpush1.msra.mxu0 0.0
        %5583 = vmatprep.subr.mxu0 0.0
        %5584 = vmatpush1.msra.mxu0 0.0
        %5585 = vmatprep.subr.mxu0 0.0
        %5586 = vmatpush1.msra.mxu0 0.0
        %5587 = vmatprep.subr.mxu0 0.0
        %5588 = vmatpush1.msra.mxu0 0.0
        %5589 = vmatprep.subr.mxu0 0.0
        %5590 = vmatpush1.msra.mxu0 0.0
        %5591 = vmatprep.subr.mxu0 0.0
        %5592 = vmatpush1.msra.mxu0 0.0
        %5593 = vmatprep.subr.mxu0 0.0
        %5594 = vmatpush1.msra.mxu0 0.0
        %5595 = vmatprep.subr.mxu0 0.0
        %5596 = vmatpush1.msra.mxu0 0.0
        %5597 = vmatprep.subr.mxu0 0.0
        %5598 = vmatpush1.msra.mxu0 0.0
        %5599 = vmatprep.subr.mxu0 0.0
        %5600 = vmatpush1.msra.mxu0 0.0
        %5601 = vmatprep.subr.mxu0 0.0
        %5602 = vmatpush1.msra.mxu0 0.0
        %5603 = vmatprep.subr.mxu0 0.0
        %5604 = vmatpush1.msra.mxu0 0.0
        %5605 = vmatprep.subr.mxu0 0.0
        %5606 = vmatpush1.msra.mxu0 0.0
        %5607 = vmatprep.subr.mxu0 0.0
        %5608 = vmatpush1.msra.mxu0 0.0
        %5609 = vmatprep.subr.mxu0 0.0
        %5610 = vmatpush1.msra.mxu0 0.0
        %5611 = vmatprep.subr.mxu0 0.0
        %5612 = vmatpush1.msra.mxu0 0.0
        %5613 = vmatprep.subr.mxu0 0.0
        %5614 = vmatpush1.msra.mxu0 0.0
        %5615 = vmatprep.subr.mxu0 0.0
        %5616 = vmatpush1.msra.mxu0 0.0
        %5617 = vmatprep.subr.mxu0 0.0
        %5618 = vmatpush1.msra.mxu0 0.0
        %5619 = vmatprep.subr.mxu0 0.0
        %5620 = vmatpush1.msra.mxu0 0.0
        %5621 = vmatprep.subr.mxu0 0.0
        %5622 = vmatpush1.msra.mxu0 0.0
        %5623 = vmatprep.subr.mxu0 0.0
        %5624 = vmatpush1.msra.mxu0 0.0
        %5625 = vmatprep.mubr.f32.mxu0 0.0
        %5626 = vmatmul.mubr.f32.gmra.mrb[0].mxu0 %v5559
        %v5627 = vpop.f32.mrb[0].mxu0
        %v5628 = vadd.f32 0.0, %v5627
        %v5629 = vpop.f32.mrb[0].mxu0
        %5630 = vdwg.mxu0
        %v5632 = vsel %vm3938, %v5628, 0
        %5634 = vmatprep.subr.mxu0 0.0
        %5635 = vmatpush1.msra.mxu0 %v5199
        %5636 = vmatprep.subr.mxu0 0.0
        %5637 = vmatpush1.msra.mxu0 %v5200
        %5638 = vmatprep.subr.mxu0 0.0
        %5639 = vmatpush1.msra.mxu0 %v5201
        %5640 = vmatprep.subr.mxu0 0.0
        %5641 = vmatpush1.msra.mxu0 %v5202
        %5642 = vmatprep.subr.mxu0 0.0
        %5643 = vmatpush1.msra.mxu0 0.0
        %5644 = vmatprep.subr.mxu0 0.0
        %5645 = vmatpush1.msra.mxu0 0.0
        %5646 = vmatprep.subr.mxu0 0.0
        %5647 = vmatpush1.msra.mxu0 0.0
        %5648 = vmatprep.subr.mxu0 0.0
        %5649 = vmatpush1.msra.mxu0 0.0
        %5650 = vmatprep.subr.mxu0 0.0
        %5651 = vmatpush1.msra.mxu0 0.0
        %5652 = vmatprep.subr.mxu0 0.0
        %5653 = vmatpush1.msra.mxu0 0.0
        %5654 = vmatprep.subr.mxu0 0.0
        %5655 = vmatpush1.msra.mxu0 0.0
        %5656 = vmatprep.subr.mxu0 0.0
        %5657 = vmatpush1.msra.mxu0 0.0
        %5658 = vmatprep.subr.mxu0 0.0
        %5659 = vmatpush1.msra.mxu0 0.0
        %5660 = vmatprep.subr.mxu0 0.0
        %5661 = vmatpush1.msra.mxu0 0.0
        %5662 = vmatprep.subr.mxu0 0.0
        %5663 = vmatpush1.msra.mxu0 0.0
        %5664 = vmatprep.subr.mxu0 0.0
        %5665 = vmatpush1.msra.mxu0 0.0
        %5666 = vmatprep.subr.mxu0 0.0
        %5667 = vmatpush1.msra.mxu0 0.0
        %5668 = vmatprep.subr.mxu0 0.0
        %5669 = vmatpush1.msra.mxu0 0.0
        %5670 = vmatprep.subr.mxu0 0.0
        %5671 = vmatpush1.msra.mxu0 0.0
        %5672 = vmatprep.subr.mxu0 0.0
        %5673 = vmatpush1.msra.mxu0 0.0
        %5674 = vmatprep.subr.mxu0 0.0
        %5675 = vmatpush1.msra.mxu0 0.0
        %5676 = vmatprep.subr.mxu0 0.0
        %5677 = vmatpush1.msra.mxu0 0.0
        %5678 = vmatprep.subr.mxu0 0.0
        %5679 = vmatpush1.msra.mxu0 0.0
        %5680 = vmatprep.subr.mxu0 0.0
        %5681 = vmatpush1.msra.mxu0 0.0
        %5682 = vmatprep.subr.mxu0 0.0
        %5683 = vmatpush1.msra.mxu0 0.0
        %5684 = vmatprep.subr.mxu0 0.0
        %5685 = vmatpush1.msra.mxu0 0.0
        %5686 = vmatprep.subr.mxu0 0.0
        %5687 = vmatpush1.msra.mxu0 0.0
        %5688 = vmatprep.subr.mxu0 0.0
        %5689 = vmatpush1.msra.mxu0 0.0
        %5690 = vmatprep.subr.mxu0 0.0
        %5691 = vmatpush1.msra.mxu0 0.0
        %5692 = vmatprep.subr.mxu0 0.0
        %5693 = vmatpush1.msra.mxu0 0.0
        %5694 = vmatprep.subr.mxu0 0.0
        %5695 = vmatpush1.msra.mxu0 0.0
        %5696 = vmatprep.subr.mxu0 0.0
        %5697 = vmatpush1.msra.mxu0 0.0
        %5698 = vmatprep.mubr.f32.mxu0 0.0
        %5699 = vmatmul.mubr.f32.gmra.mrb[0].mxu0 %v5632
        %v5700 = vpop.f32.mrb[0].mxu0
        %v5701 = vadd.f32 0.0, %v5700
        %v5702 = vpop.f32.mrb[0].mxu0
        %5703 = vdwg.mxu0
        %v5704 = vmul.f32 %v5701, 0.00390625
        %v5705 = vadd.f32 %v5704, 1e-05
        %v5706 = vrsqrt.pop %v5705
        %v5707 = vmul.f32 %v5706, %v5203
        %v5708 = vlaneseq
        %v5709 = vshrl.u32 %v5708, 7
        %v5710 = vsub.s32 0, %v5709
        %v5711 = vrot.slane %v5707, %v5710
        %v5712 = vmul.f32 %v5425, %v5711
        %v5713 = vmul.f32 %v5426, %v5711
        %v5714 = vmul.f32 %v5427, %v5711
        %v5715 = vmul.f32 %v5428, %v5711
        %v5716 = vmul.f32 %v5429, %v5711
        %v5717 = vmul.f32 %v5430, %v5711
        %v5718 = vmul.f32 %v5431, %v5711
        %v5719 = vmul.f32 %v5432, %v5711
        %v5720 = vmul.f32 %v5433, %v5711
        %v5721 = vmul.f32 %v5434, %v5711
        %v5722 = vmul.f32 %v5435, %v5711
        %v5723 = vmul.f32 %v5436, %v5711
        %v5724 = vmul.f32 %v5437, %v5711
        %v5725 = vmul.f32 %v5438, %v5711
        %v5726 = vmul.f32 %v5439, %v5711
        %v5727 = vmul.f32 %v5440, %v5711
        %v5728 = vmul.f32 %v5441, %v5711
        %v5729 = vmul.f32 %v5442, %v5711
        %v5730 = vmul.f32 %v5443, %v5711
        %v5731 = vmul.f32 %v5444, %v5711
        %v5732 = vmul.f32 %v5445, %v5711
        %v5733 = vmul.f32 %v5446, %v5711
        %v5734 = vmul.f32 %v5447, %v5711
        %v5735 = vmul.f32 %v5448, %v5711
        %v5736 = vmul.f32 %v5449, %v5711
        %v5737 = vmul.f32 %v5450, %v5711
        %v5738 = vmul.f32 %v5451, %v5711
        %v5739 = vmul.f32 %v5452, %v5711
        %v5740 = vmul.f32 %v5453, %v5711
        %v5741 = vmul.f32 %v5454, %v5711
        %v5742 = vmul.f32 %v5455, %v5711
        %v5743 = vmul.f32 %v5456, %v5711
        %v5745 = vlaneseq
        %v5746 = vshrl.u32 %v5745, 7
        %v5747 = vsub.s32 0, %v5746
        %v5748 = vrot.slane %v5204, %v5747
        %v5750 = vadd.f32 %v5712, %v5748
        %v5751 = vadd.f32 %v5713, %v5748
        %v5752 = vadd.f32 %v5714, %v5748
        %v5753 = vadd.f32 %v5715, %v5748
        %v5754 = vadd.f32 %v5716, %v5748
        %v5755 = vadd.f32 %v5717, %v5748
        %v5756 = vadd.f32 %v5718, %v5748
        %v5757 = vadd.f32 %v5719, %v5748
        %v5758 = vadd.f32 %v5720, %v5748
        %v5759 = vadd.f32 %v5721, %v5748
        %v5760 = vadd.f32 %v5722, %v5748
        %v5761 = vadd.f32 %v5723, %v5748
        %v5762 = vadd.f32 %v5724, %v5748
        %v5763 = vadd.f32 %v5725, %v5748
        %v5764 = vadd.f32 %v5726, %v5748
        %v5765 = vadd.f32 %v5727, %v5748
        %v5766 = vadd.f32 %v5728, %v5748
        %v5767 = vadd.f32 %v5729, %v5748
        %v5768 = vadd.f32 %v5730, %v5748
        %v5769 = vadd.f32 %v5731, %v5748
        %v5770 = vadd.f32 %v5732, %v5748
        %v5771 = vadd.f32 %v5733, %v5748
        %v5772 = vadd.f32 %v5734, %v5748
        %v5773 = vadd.f32 %v5735, %v5748
        %v5774 = vadd.f32 %v5736, %v5748
        %v5775 = vadd.f32 %v5737, %v5748
        %v5776 = vadd.f32 %v5738, %v5748
        %v5777 = vadd.f32 %v5739, %v5748
        %v5778 = vadd.f32 %v5740, %v5748
        %v5779 = vadd.f32 %v5741, %v5748
        %v5780 = vadd.f32 %v5742, %v5748
        %v5781 = vadd.f32 %v5743, %v5748
        %v5783 = vsel %vm638, %v4949, 0
        %v5786 = vsel %vm638, %v4950, 0
        %v5789 = vsel %vm638, %v4951, 0
        %v5792 = vsel %vm638, %v4952, 0
        %v5795 = vsel %vm638, %v4953, 0
        %v5798 = vsel %vm638, %v4954, 0
        %v5801 = vsel %vm638, %v4955, 0
        %v5804 = vsel %vm638, %v4956, 0
        %v5807 = vsel %vm638, %v4957, 0
        %v5810 = vsel %vm638, %v4958, 0
        %v5813 = vsel %vm638, %v4959, 0
        %v5816 = vsel %vm638, %v4960, 0
        %v5819 = vsel %vm638, %v4961, 0
        %v5822 = vsel %vm638, %v4962, 0
        %v5825 = vsel %vm638, %v4963, 0
        %v5828 = vsel %vm638, %v4964, 0
        %v5831 = vsel %vm1313, %v4965, 0
        %5833 = vmatprep.subr.bf16.mxu0 0
        %5834 = vmatpush1.bf16.msra.mxu0 %v5831
        %5835 = vmatprep.subr.bf16.mxu0 0
        %5836 = vmatpush1.bf16.msra.mxu0 0
        %5837 = vmatprep.subr.bf16.mxu0 0
        %5838 = vmatpush1.bf16.msra.mxu0 0
        %5839 = vmatprep.subr.bf16.mxu0 0
        %5840 = vmatpush1.bf16.msra.mxu0 0
        %5841 = vmatprep.subr.bf16.mxu0 0
        %5842 = vmatpush1.bf16.msra.mxu0 0
        %5843 = vmatprep.subr.bf16.mxu0 0
        %5844 = vmatpush1.bf16.msra.mxu0 0
        %5845 = vmatprep.subr.bf16.mxu0 0
        %5846 = vmatpush1.bf16.msra.mxu0 0
        %5847 = vmatprep.subr.bf16.mxu0 0
        %5848 = vmatpush1.bf16.msra.mxu0 0
        %5849 = vmatprep.subr.bf16.mxu0 0
        %5850 = vmatpush1.bf16.msra.mxu0 0
        %5851 = vmatprep.subr.bf16.mxu0 0
        %5852 = vmatpush1.bf16.msra.mxu0 0
        %5853 = vmatprep.subr.bf16.mxu0 0
        %5854 = vmatpush1.bf16.msra.mxu0 0
        %5855 = vmatprep.subr.bf16.mxu0 0
        %5856 = vmatpush1.bf16.msra.mxu0 0
        %5857 = vmatprep.subr.bf16.mxu0 0
        %5858 = vmatpush1.bf16.msra.mxu0 0
        %5859 = vmatprep.subr.bf16.mxu0 0
        %5860 = vmatpush1.bf16.msra.mxu0 0
        %5861 = vmatprep.subr.bf16.mxu0 0
        %5862 = vmatpush1.bf16.msra.mxu0 0
        %5863 = vmatprep.subr.bf16.mxu0 0
        %5864 = vmatpush1.bf16.msra.mxu0 0
        %5865 = vmatprep.mubr.bf16.mxu0 0
        %5866 = vmatmul.mubr.bf16.gmra.mrb[0].mxu0 %v5783
        %v5867 = vpop.f32.mrb[0].mxu0
        %v5868 = vadd.f32 %v5750, %v5867
        %v5869 = vpop.f32.mrb[0].mxu0
        %v5870 = vpop.f32.mrb[0].mxu0
        %v5871 = vadd.f32 %v5751, %v5870
        %v5872 = vpop.f32.mrb[0].mxu0
        %5873 = vmatprep.mubr.bf16.mxu0 0
        %5874 = vmatmul.mubr.bf16.gmra.mrb[0].mxu0 %v5786
        %v5875 = vpop.f32.mrb[0].mxu0
        %v5876 = vadd.f32 %v5752, %v5875
        %v5877 = vpop.f32.mrb[0].mxu0
        %v5878 = vpop.f32.mrb[0].mxu0
        %v5879 = vadd.f32 %v5753, %v5878
        %v5880 = vpop.f32.mrb[0].mxu0
        %5881 = vmatprep.mubr.bf16.mxu0 0
        %5882 = vmatmul.mubr.bf16.gmra.mrb[0].mxu0 %v5789
        %v5883 = vpop.f32.mrb[0].mxu0
        %v5884 = vadd.f32 %v5754, %v5883
        %v5885 = vpop.f32.mrb[0].mxu0
        %v5886 = vpop.f32.mrb[0].mxu0
        %v5887 = vadd.f32 %v5755, %v5886
        %v5888 = vpop.f32.mrb[0].mxu0
        %5889 = vmatprep.mubr.bf16.mxu0 0
        %5890 = vmatmul.mubr.bf16.gmra.mrb[0].mxu0 %v5792
        %v5891 = vpop.f32.mrb[0].mxu0
        %v5892 = vadd.f32 %v5756, %v5891
        %v5893 = vpop.f32.mrb[0].mxu0
        %v5894 = vpop.f32.mrb[0].mxu0
        %v5895 = vadd.f32 %v5757, %v5894
        %v5896 = vpop.f32.mrb[0].mxu0
        %5897 = vmatprep.mubr.bf16.mxu0 0
        %5898 = vmatmul.mubr.bf16.gmra.mrb[0].mxu0 %v5795
        %v5899 = vpop.f32.mrb[0].mxu0
        %v5900 = vadd.f32 %v5758, %v5899
        %v5901 = vpop.f32.mrb[0].mxu0
        %v5902 = vpop.f32.mrb[0].mxu0
        %v5903 = vadd.f32 %v5759, %v5902
        %v5904 = vpop.f32.mrb[0].mxu0
        %5905 = vmatprep.mubr.bf16.mxu0 0
        %5906 = vmatmul.mubr.bf16.gmra.mrb[0].mxu0 %v5798
        %v5907 = vpop.f32.mrb[0].mxu0
        %v5908 = vadd.f32 %v5760, %v5907
        %v5909 = vpop.f32.mrb[0].mxu0
        %v5910 = vpop.f32.mrb[0].mxu0
        %v5911 = vadd.f32 %v5761, %v5910
        %v5912 = vpop.f32.mrb[0].mxu0
        %5913 = vmatprep.mubr.bf16.mxu0 0
        %5914 = vmatmul.mubr.bf16.gmra.mrb[0].mxu0 %v5801
        %v5915 = vpop.f32.mrb[0].mxu0
        %v5916 = vadd.f32 %v5762, %v5915
        %v5917 = vpop.f32.mrb[0].mxu0
        %v5918 = vpop.f32.mrb[0].mxu0
        %v5919 = vadd.f32 %v5763, %v5918
        %v5920 = vpop.f32.mrb[0].mxu0
        %5921 = vmatprep.mubr.bf16.mxu0 0
        %5922 = vmatmul.mubr.bf16.gmra.mrb[0].mxu0 %v5804
        %v5923 = vpop.f32.mrb[0].mxu0
        %v5924 = vadd.f32 %v5764, %v5923
        %v5925 = vpop.f32.mrb[0].mxu0
        %v5926 = vpop.f32.mrb[0].mxu0
        %v5927 = vadd.f32 %v5765, %v5926
        %v5928 = vpop.f32.mrb[0].mxu0
        %5929 = vmatprep.mubr.bf16.mxu0 0
        %5930 = vmatmul.mubr.bf16.gmra.mrb[0].mxu0 %v5807
        %v5931 = vpop.f32.mrb[0].mxu0
        %v5932 = vadd.f32 %v5766, %v5931
        %v5933 = vpop.f32.mrb[0].mxu0
        %v5934 = vpop.f32.mrb[0].mxu0
        %v5935 = vadd.f32 %v5767, %v5934
        %v5936 = vpop.f32.mrb[0].mxu0
        %5937 = vmatprep.mubr.bf16.mxu0 0
        %5938 = vmatmul.mubr.bf16.gmra.mrb[0].mxu0 %v5810
        %v5939 = vpop.f32.mrb[0].mxu0
        %v5940 = vadd.f32 %v5768, %v5939
        %v5941 = vpop.f32.mrb[0].mxu0
        %v5942 = vpop.f32.mrb[0].mxu0
        %v5943 = vadd.f32 %v5769, %v5942
        %v5944 = vpop.f32.mrb[0].mxu0
        %5945 = vmatprep.mubr.bf16.mxu0 0
        %5946 = vmatmul.mubr.bf16.gmra.mrb[0].mxu0 %v5813
        %v5947 = vpop.f32.mrb[0].mxu0
        %v5948 = vadd.f32 %v5770, %v5947
        %v5949 = vpop.f32.mrb[0].mxu0
        %v5950 = vpop.f32.mrb[0].mxu0
        %v5951 = vadd.f32 %v5771, %v5950
        %v5952 = vpop.f32.mrb[0].mxu0
        %5953 = vmatprep.mubr.bf16.mxu0 0
        %5954 = vmatmul.mubr.bf16.gmra.mrb[0].mxu0 %v5816
        %v5955 = vpop.f32.mrb[0].mxu0
        %v5956 = vadd.f32 %v5772, %v5955
        %v5957 = vpop.f32.mrb[0].mxu0
        %v5958 = vpop.f32.mrb[0].mxu0
        %v5959 = vadd.f32 %v5773, %v5958
        %v5960 = vpop.f32.mrb[0].mxu0
        %5961 = vmatprep.mubr.bf16.mxu0 0
        %5962 = vmatmul.mubr.bf16.gmra.mrb[0].mxu0 %v5819
        %v5963 = vpop.f32.mrb[0].mxu0
        %v5964 = vadd.f32 %v5774, %v5963
        %v5965 = vpop.f32.mrb[0].mxu0
        %v5966 = vpop.f32.mrb[0].mxu0
        %v5967 = vadd.f32 %v5775, %v5966
        %v5968 = vpop.f32.mrb[0].mxu0
        %5969 = vmatprep.mubr.bf16.mxu0 0
        %5970 = vmatmul.mubr.bf16.gmra.mrb[0].mxu0 %v5822
        %v5971 = vpop.f32.mrb[0].mxu0
        %v5972 = vadd.f32 %v5776, %v5971
        %v5973 = vpop.f32.mrb[0].mxu0
        %v5974 = vpop.f32.mrb[0].mxu0
        %v5975 = vadd.f32 %v5777, %v5974
        %v5976 = vpop.f32.mrb[0].mxu0
        %5977 = vmatprep.mubr.bf16.mxu0 0
        %5978 = vmatmul.mubr.bf16.gmra.mrb[0].mxu0 %v5825
        %v5979 = vpop.f32.mrb[0].mxu0
        %v5980 = vadd.f32 %v5778, %v5979
        %v5981 = vpop.f32.mrb[0].mxu0
        %v5982 = vpop.f32.mrb[0].mxu0
        %v5983 = vadd.f32 %v5779, %v5982
        %v5984 = vpop.f32.mrb[0].mxu0
        %5985 = vmatprep.mubr.bf16.mxu0 0
        %5986 = vmatmul.mubr.bf16.gmra.mrb[0].mxu0 %v5828
        %v5987 = vpop.f32.mrb[0].mxu0
        %v5988 = vadd.f32 %v5780, %v5987
        %v5989 = vpop.f32.mrb[0].mxu0
        %v5990 = vpop.f32.mrb[0].mxu0
        %v5991 = vadd.f32 %v5781, %v5990
        %v5992 = vpop.f32.mrb[0].mxu0
        %5993 = vdwg.mxu0
        %5994 = vst.msk [vmem:[%s595] sm:$0xff] %vm3938, %v5868
        %5995 = vst.msk [vmem:[%s595 + $0x8] sm:$0xff] %vm3938, %v5871
        %5996 = vst.msk [vmem:[%s595 + $0x10] sm:$0xff] %vm3938, %v5876
        %5997 = vst.msk [vmem:[%s595 + $0x18] sm:$0xff] %vm3938, %v5879
        %5998 = vst.msk [vmem:[%s595 + $0x20] sm:$0xff] %vm3938, %v5884
        %5999 = vst.msk [vmem:[%s595 + $0x28] sm:$0xff] %vm3938, %v5887
        %6000 = vst.msk [vmem:[%s595 + $0x30] sm:$0xff] %vm3938, %v5892
        %6001 = vst.msk [vmem:[%s595 + $0x38] sm:$0xff] %vm3938, %v5895
        %6002 = vst.msk [vmem:[%s595 + $0x40] sm:$0xff] %vm3938, %v5900
        %6003 = vst.msk [vmem:[%s595 + $0x48] sm:$0xff] %vm3938, %v5903
        %6004 = vst.msk [vmem:[%s595 + $0x50] sm:$0xff] %vm3938, %v5908
        %6005 = vst.msk [vmem:[%s595 + $0x58] sm:$0xff] %vm3938, %v5911
        %6006 = vst.msk [vmem:[%s595 + $0x60] sm:$0xff] %vm3938, %v5916
        %6007 = vst.msk [vmem:[%s595 + $0x68] sm:$0xff] %vm3938, %v5919
        %6008 = vst.msk [vmem:[%s595 + $0x70] sm:$0xff] %vm3938, %v5924
        %6009 = vst.msk [vmem:[%s595 + $0x78] sm:$0xff] %vm3938, %v5927
        %6010 = vst.msk [vmem:[%s595 + $0x80] sm:$0xff] %vm3938, %v5932
        %6011 = vst.msk [vmem:[%s595 + $0x88] sm:$0xff] %vm3938, %v5935
        %6012 = vst.msk [vmem:[%s595 + $0x90] sm:$0xff] %vm3938, %v5940
        %6013 = vst.msk [vmem:[%s595 + $0x98] sm:$0xff] %vm3938, %v5943
        %6014 = vst.msk [vmem:[%s595 + $0xa0] sm:$0xff] %vm3938, %v5948
        %6015 = vst.msk [vmem:[%s595 + $0xa8] sm:$0xff] %vm3938, %v5951
        %6016 = vst.msk [vmem:[%s595 + $0xb0] sm:$0xff] %vm3938, %v5956
        %6017 = vst.msk [vmem:[%s595 + $0xb8] sm:$0xff] %vm3938, %v5959
        %6018 = vst.msk [vmem:[%s595 + $0xc0] sm:$0xff] %vm3938, %v5964
        %6019 = vst.msk [vmem:[%s595 + $0xc8] sm:$0xff] %vm3938, %v5967
        %6020 = vst.msk [vmem:[%s595 + $0xd0] sm:$0xff] %vm3938, %v5972
        %6021 = vst.msk [vmem:[%s595 + $0xd8] sm:$0xff] %vm3938, %v5975
        %6022 = vst.msk [vmem:[%s595 + $0xe0] sm:$0xff] %vm3938, %v5980
        %6023 = vst.msk [vmem:[%s595 + $0xe8] sm:$0xff] %vm3938, %v5983
        %6024 = vst.msk [vmem:[%s595 + $0xf0] sm:$0xff] %vm3938, %v5988
        %6025 = vst.msk [vmem:[%s595 + $0xf8] sm:$0xff] %vm3938, %v5991
        %s6026 = sand.u32 %s445, 1
        %s6027 = scalar_lea.sflag [#allocation4], %s6026
        %s6028 = sand.u32 %s445, 1
        %s6029 = smul.addr %s6028, 256
        %s6030 = scalar_lea.vmem [#allocation3], %s6029
        // Predicated region
        $region97: #{tpu_custom_call.1} parent=95 // pred_check
          %p6031 = pneg %p455
        $region98: #{tpu_custom_call.1} parent=95 // pred_check_branch
          %6033 = sbr.rel (%p6031) target = $region100
        $region99: #{tpu_custom_call.1} parent=95 // pred_region
          %s6035 = ssub.s32 4096, 4096
          %6036 = vsyncadd %s6027, %s6035
          %s6037 = smul.addr %s33, 32
          %s6038 = smul.addr %s6037, 128
          %s6039 = scalar_lea.hbm %s19, %s6038
          %s6040 = sshll.u32 %s6030, 4
          %s6041 = int_to_ptr.vmem [resolvable:$true] %s6040
          %6046 = dma.vmem_to_hbm [thread:$0]  %s6041, 4096, %s6039, %s6027, 128, 128, 8
        $region100: #{tpu_custom_call.1} parent=95 // pred_fallthru
          _
      $region96: #{tpu_custom_call.1} parent=5 // pred_fallthru
        _
      %p6047 = scmp.le.s32.totalorder 2, %s28
      // Predicated region
      $region101: #{tpu_custom_call.1} parent=5 // pred_check
        %p6048 = pneg %p6047
      $region102: #{tpu_custom_call.1} parent=5 // pred_check_branch
        %6050 = sbr.rel (%p6048) target = $region104
      $region103: #{tpu_custom_call.1} parent=5 // pred_region
        %s6051 = ssub.s32 %s28, 2
        // Predicated region
        $region105: #{tpu_custom_call.1} parent=103 // pred_check
          %p6052 = pneg %p461
        $region106: #{tpu_custom_call.1} parent=103 // pred_check_branch
          %6054 = sbr.rel (%p6052) target = $region108
        $region107: #{tpu_custom_call.1} parent=103 // pred_region
          %s6055 = sand.u32 %s446, 1
          %s6056 = scalar_lea.sflag [#allocation4], %s6055
          %s6057 = sand.u32 %s446, 1
          %s6058 = smul.addr %s6057, 256
          %s6059 = scalar_lea.vmem [#allocation3], %s6058
          %6060 = dma.done %s6056, 4096
        $region108: #{tpu_custom_call.1} parent=103 // pred_fallthru
          _
      $region104: #{tpu_custom_call.1} parent=5 // pred_fallthru
        _
    $region6: #{tpu_custom_call.1} parent=1 // loop_footer
      %s32 = sadd.s32 1, %s28
    $region7: #{tpu_custom_call.1} parent=1 // loop_footer_branch
      %27 = sbr.rel target = $region3
    $region8: #{tpu_custom_call.1} parent=1 // loop_exit
      _
    %6061 = vsyncpa [#allocation4], 1
    %s6062 = scalar_lea.sflag [#allocation4], 1
    %6063 = vsyncpa %s6062, 1

</llo_original>
